<compile_context>
chip_gen: v7x
topology: tpu7x:2x2x1
jax: 0.10.0
libtpu: 0.0.40
codegen_flags: <defaults>
</compile_context>

<pallas_src>
import functools

import jax
import jax.numpy as jnp
from jax.experimental import pallas as pl
from jax.experimental.pallas import tpu as pltpu


def _round_up(x, m):
    return ((x + m - 1) // m) * m


# ----------------------------------------------------------------------------
# Fused Pallas kernel: all GRU layers + h2o head + pos/neg logits.
# ----------------------------------------------------------------------------
def _make_fused_kernel(num_layers, T, B_pad, H_pad):
    def kernel(x_ref, *args):
        # args layout (pallas_call argument order):
        #   [wih_l, whh_l, bgi_l, bhn_l] * num_layers,
        #   w_ho, b_o, pos_emb, neg_emb,            (remaining inputs)
        #   pos_out, neg_out,                       (outputs)
        #   gi, hseq_a, hseq_b                      (VMEM scratch)
        nw = 4 * num_layers
        layer_refs = args[:nw]
        (who_ref, bo_ref, pos_ref, neg_ref,
         pos_out, neg_out,
         gi_ref, hseq_a, hseq_b) = args[nw:]

        hseqs = (hseq_a, hseq_b)

        for layer in range(num_layers):
            wih_ref, whh_ref, bgi_ref, bhn_ref = layer_refs[4 * layer: 4 * layer + 4]
            src = x_ref if layer == 0 else hseqs[(layer - 1) % 2]   # ping-pong
            dst = hseqs[layer % 2]
            wdt = wih_ref.dtype                                      # f32 or bf16

            # Hoisted fused input projection: one (T*B_pad, d_in) @ (d_in, 3H_pad)
            # MXU matmul; r/z biases pre-folded (b_ih + b_hh), n gets b_ih only.
            xin = src[...]
            gi_ref[...] = (
                jnp.dot(xin.astype(wdt), wih_ref[...],
                        preferred_element_type=jnp.float32)
                + bgi_ref[...])

            whh = whh_ref[...]                                       # (H_pad, 3H_pad)
            bhn_b = jnp.broadcast_to(bhn_ref[...], (B_pad, H_pad))   # hoisted bcast

            # Fully-unrolled recurrence; h carried in vregs across steps.
            h = jnp.zeros((B_pad, H_pad), jnp.float32)               # h0 = 0
            for t in range(T):
                rows = pl.ds(t * B_pad, B_pad)                       # aligned tile
                gh = jnp.dot(h.astype(wdt), whh,
                             preferred_element_type=jnp.float32)     # (B_pad, 3H_pad)
                gi_t = gi_ref[rows, :]
                # r and z on one contiguous (B, 2H) slab -> one EUP push.
                rz = jax.nn.sigmoid(gi_t[:, :2 * H_pad] + gh[:, :2 * H_pad])
                r = rz[:, :H_pad]
                z = rz[:, H_pad:]
                n = jnp.tanh(gi_t[:, 2 * H_pad:] + r * (gh[:, 2 * H_pad:] + bhn_b))
                h = (1.0 - z) * n + z * h
                dst[rows, :] = h                                     # full (8,128) tile

        # Head: tanh(h2o(out)) and pos/neg dot-product logits, fused in-kernel.
        hfin = hseqs[(num_layers - 1) % 2]
        feats = jnp.tanh(
            jnp.dot(hfin[...].astype(who_ref.dtype), who_ref[...],
                    preferred_element_type=jnp.float32)
            + bo_ref[...])                                           # (T*B_pad, O_pad)
        pos_out[...] = jnp.sum(feats * pos_ref[...], axis=-1)[None, :]   # (1, T*B_pad)
        neg_out[...] = jnp.sum(feats * neg_ref[...], axis=-1)[None, :]

    return kernel


# ----------------------------------------------------------------------------
# Parameters (deterministic, in-script), PyTorch-like fused layout
# (d_in, 3H) / (H, 3H) / (1, 3H); padded + bias-folded in the wrapper.
# ----------------------------------------------------------------------------
def init_params(key, item_num, input_size, hidden_size, output_size, num_layers):
    keys = jax.random.split(key, 3 + 4 * num_layers)
    k_emb, k_w, k_b = keys[0], keys[1], keys[2]

    item_emb = 0.1 * jax.random.normal(k_emb, (item_num + 1, input_size), jnp.float32)
    item_emb = item_emb.at[0].set(0.0)          # padding_idx=0 -> zero row

    gru = []
    for layer in range(num_layers):
        d_in = input_size if layer == 0 else hidden_size
        kk = keys[3 + 4 * layer: 3 + 4 * (layer + 1)]
        w_ih = 0.1 * jax.random.normal(kk[0], (d_in, 3 * hidden_size), jnp.float32)
        w_hh = 0.1 * jax.random.normal(kk[1], (hidden_size, 3 * hidden_size), jnp.float32)
        b_ih = 0.1 * jax.random.normal(kk[2], (1, 3 * hidden_size), jnp.float32)
        b_hh = 0.1 * jax.random.normal(kk[3], (1, 3 * hidden_size), jnp.float32)
        gru.append((w_ih, w_hh, b_ih, b_hh))

    w_ho = 0.1 * jax.random.normal(k_w, (hidden_size, output_size), jnp.float32)
    b_o = 0.1 * jax.random.normal(k_b, (1, output_size), jnp.float32)
    return {"item_emb": item_emb, "gru": gru, "w_ho": w_ho, "b_o": b_o}


# ----------------------------------------------------------------------------
# Forward (fused Pallas kernel) and pure-JAX reference.
# ----------------------------------------------------------------------------
def gru4rec_forward(params, log_seqs, pos_seqs, neg_seqs, *,
                    weights_dtype=jnp.float32):
    emb = params["item_emb"]
    B, T = log_seqs.shape
    D = emb.shape[1]
    H = params["gru"][0][1].shape[0]
    O = params["w_ho"].shape[1]
    num_layers = len(params["gru"])
    assert O == D, "dot-product logits require output_size == embedding dim"

    # Tile-aligned padded sizes: sublanes (8) for batch, lanes (128) for features.
    B_pad = _round_up(B, 8)
    D_pad = _round_up(D, 128)
    H_pad = _round_up(H, 128)
    O_pad = _round_up(O, 128)
    TB = T * B_pad

    # Zero-padded embedding table (padded lanes stay exactly zero everywhere).
    emb_pad = jnp.pad(emb, ((0, 0), (0, D_pad - D)))

    def gather_flat(idx):          # (B, T) -> (T*B_pad, D_pad), time-major rows
        g = emb_pad[idx.T.reshape(-1)].reshape(T, B, D_pad)
        g = jnp.pad(g, ((0, 0), (0, B_pad - B), (0, 0)))
        return g.reshape(TB, D_pad)

    x_flat = gather_flat(log_seqs)        # emb_dropout: identity in eval mode
    pos_flat = gather_flat(pos_seqs)
    neg_flat = gather_flat(neg_seqs)

    def pad_gate_cols(w):
        # (rows, 3H) -> (rows, 3*H_pad): each gate block laid at g*H_pad,
        # padded lanes zero (keeps recurrence exactly zero there).
        return jnp.concatenate(
            [jnp.pad(w[:, g * H:(g + 1) * H], ((0, 0), (0, H_pad - H)))
             for g in range(3)], axis=1)

    layer_args = []
    for li, (w_ih, w_hh, b_ih, b_hh) in enumerate(params["gru"]):
        d_in = w_ih.shape[0]
        d_in_pad = D_pad if li == 0 else H_pad
        wih = jnp.pad(pad_gate_cols(w_ih), ((0, d_in_pad - d_in), (0, 0)))
        whh = jnp.pad(pad_gate_cols(w_hh), ((0, H_pad - H), (0, 0)))
        # Fold b_hh into r/z biases (they sit outside r * (.)); n keeps b_ih only.
        b_fold = jnp.concatenate(
            [b_ih[:, 0:H] + b_hh[:, 0:H],
             b_ih[:, H:2 * H] + b_hh[:, H:2 * H],
             b_ih[:, 2 * H:3 * H]], axis=1)
        bgi = pad_gate_cols(b_fold)                                    # (1, 3*H_pad)
        bhn = jnp.pad(b_hh[:, 2 * H:3 * H], ((0, 0), (0, H_pad - H)))  # (1, H_pad)
        layer_args.extend([wih.astype(weights_dtype),
                           whh.astype(weights_dtype), bgi, bhn])

    w_ho = jnp.pad(params["w_ho"],
                   ((0, H_pad - H), (0, O_pad - O))).astype(weights_dtype)
    b_o = jnp.pad(params["b_o"], ((0, 0), (0, O_pad - O)))

    kernel = _make_fused_kernel(num_layers, T, B_pad, H_pad)

    pos_row, neg_row = pl.pallas_call(
        kernel,
        out_shape=(
            jax.ShapeDtypeStruct((1, TB), jnp.float32),   # lane-dense logits rows
            jax.ShapeDtypeStruct((1, TB), jnp.float32),
        ),
        scratch_shapes=[
            pltpu.VMEM((TB, 3 * H_pad), jnp.float32),     # fused gi (reused per layer)
            pltpu.VMEM((TB, H_pad), jnp.float32),         # hseq ping
            pltpu.VMEM((TB, H_pad), jnp.float32),         # hseq pong
        ],
    )(x_flat, *layer_args, w_ho, b_o, pos_flat, neg_flat)

    # Tiny glue reshape back to the PyTorch (B, T) convention, drop batch padding.
    pos_logits = pos_row.reshape(T, B_pad)[:, :B].T
    neg_logits = neg_row.reshape(T, B_pad)[:, :B].T
    return pos_logits, neg_logits


def gru4rec_reference(params, log_seqs, pos_seqs, neg_seqs):
    emb = params["item_emb"]
    x = emb[log_seqs]                            # (B, T, D)
    B = x.shape[0]
    for (w_ih, w_hh, b_ih, b_hh) in params["gru"]:
        H = w_hh.shape[0]

        def step(h, x_t):
            gi = x_t @ w_ih + b_ih[0]
            gh = h @ w_hh + b_hh[0]
            r = jax.nn.sigmoid(gi[:, :H] + gh[:, :H])
            z = jax.nn.sigmoid(gi[:, H:2 * H] + gh[:, H:2 * H])
            n = jnp.tanh(gi[:, 2 * H:] + r * gh[:, 2 * H:])
            h_new = (1.0 - z) * n + z * h
            return h_new, h_new

        _, ys = jax.lax.scan(step, jnp.zeros((B, H), jnp.float32),
                             jnp.transpose(x, (1, 0, 2)))
        x = jnp.transpose(ys, (1, 0, 2))
    feats = jnp.tanh(x @ params["w_ho"] + params["b_o"][0])
    pos = jnp.sum(feats * emb[pos_seqs], -1)
    neg = jnp.sum(feats * emb[neg_seqs], -1)
    return pos, neg


if __name__ == "__main__":
    # config
    user_num, item_num = 10, 50
    input_size = hidden_size = output_size = 32   # output_size == input_size required
    num_layers = 2
    B, T = 2, 8

    key = jax.random.PRNGKey(0)
    k_params, k_log, k_pos, k_neg = jax.random.split(key, 4)
    params = init_params(k_params, item_num, input_size, hidden_size,
                         output_size, num_layers)

    log_seqs = jax.random.randint(k_log, (B, T), 0, item_num + 1)
    pos_seqs = jax.random.randint(k_pos, (B, T), 1, item_num + 1)
    neg_seqs = jax.random.randint(k_neg, (B, T), 1, item_num + 1)

    # f32 path: strict correctness check against the pure-JAX reference.
    fwd = jax.jit(gru4rec_forward)
    pos_logits, neg_logits = fwd(params, log_seqs, pos_seqs, neg_seqs)
    jax.block_until_ready((pos_logits, neg_logits))

    ref_pos, ref_neg = gru4rec_reference(params, log_seqs, pos_seqs, neg_seqs)
    assert pos_logits.shape == (B, T) and neg_logits.shape == (B, T)
    # atol slightly loosened vs 1e-5: bias folding / fused-gate matmuls
    # reassociate a few f32 adds relative to the XLA reference.
    assert jnp.allclose(pos_logits, ref_pos, atol=1e-4), "pos_logits mismatch"
    assert jnp.allclose(neg_logits, ref_neg, atol=1e-4), "neg_logits mismatch"

    # bf16-weight production path (v6e/v7x MXU throughput / half weight VMEM):
    # exercise compile + run; gate math stays f32, numeric check kept on f32 path.
    fwd_bf16 = jax.jit(functools.partial(gru4rec_forward,
                                         weights_dtype=jnp.bfloat16))
    pos_b, neg_b = fwd_bf16(params, log_seqs, pos_seqs, neg_seqs)
    jax.block_until_ready((pos_b, neg_b))
    assert bool(jnp.all(jnp.isfinite(pos_b))) and bool(jnp.all(jnp.isfinite(neg_b)))

    print("KERNEL_OK")
</pallas_src>

<mosaic_0001>
module attributes {stable_mosaic.version = 11 : i64} {
  func.func @kernel(%arg0: memref<64x128xf32, #tpu.memory_space<vmem>>, %arg1: memref<128x384xf32, #tpu.memory_space<vmem>>, %arg2: memref<128x384xf32, #tpu.memory_space<vmem>>, %arg3: memref<1x384xf32, #tpu.memory_space<vmem>>, %arg4: memref<1x128xf32, #tpu.memory_space<vmem>>, %arg5: memref<128x384xf32, #tpu.memory_space<vmem>>, %arg6: memref<128x384xf32, #tpu.memory_space<vmem>>, %arg7: memref<1x384xf32, #tpu.memory_space<vmem>>, %arg8: memref<1x128xf32, #tpu.memory_space<vmem>>, %arg9: memref<128x128xf32, #tpu.memory_space<vmem>>, %arg10: memref<1x128xf32, #tpu.memory_space<vmem>>, %arg11: memref<64x128xf32, #tpu.memory_space<vmem>>, %arg12: memref<64x128xf32, #tpu.memory_space<vmem>>, %arg13: memref<1x64xf32, #tpu.memory_space<vmem>>, %arg14: memref<1x64xf32, #tpu.memory_space<vmem>>, %arg15: memref<64x384xf32, #tpu.memory_space<vmem>>, %arg16: memref<64x128xf32, #tpu.memory_space<vmem>>, %arg17: memref<64x128xf32, #tpu.memory_space<vmem>>) attributes {dimension_semantics = [], scalar_prefetch = 0 : i64, scratch_operands = 3 : i64, tpu.core_type = #tpu.core_type<tc>} {
    %c0 = arith.constant 0 : index
    %c0_0 = arith.constant 0 : index
    %0 = vector.load %arg0[%c0, %c0_0] : memref<64x128xf32, #tpu.memory_space<vmem>>, vector<64x128xf32>
    %c0_1 = arith.constant 0 : index
    %c0_2 = arith.constant 0 : index
    %1 = vector.load %arg1[%c0_1, %c0_2] : memref<128x384xf32, #tpu.memory_space<vmem>>, vector<128x384xf32>
    %cst = arith.constant dense<0.000000e+00> : vector<64x384xf32>
    %2 = tpu.matmul %0, %1, %cst {dimension_numbers = #tpu.dot_dimension_numbers<[1], [0], [0], [1], [0, 0, 1, 1], [], []>} : vector<64x128xf32>, vector<128x384xf32>, vector<64x384xf32> -> vector<64x384xf32>
    %c0_3 = arith.constant 0 : index
    %c0_4 = arith.constant 0 : index
    %3 = vector.load %arg3[%c0_3, %c0_4] : memref<1x384xf32, #tpu.memory_space<vmem>>, vector<1x384xf32>
    %4 = vector.broadcast %3 : vector<1x384xf32> to vector<64x384xf32>
    %5 = arith.addf %2, %4 : vector<64x384xf32>
    %c0_5 = arith.constant 0 : index
    %c0_6 = arith.constant 0 : index
    %6 = vector.load %arg15[%c0_5, %c0_6] : memref<64x384xf32, #tpu.memory_space<vmem>>, vector<64x384xf32>
    tpu.vector_store %arg15[%c0_5, %c0_6], %5 {strides = array<i32>} : memref<64x384xf32, #tpu.memory_space<vmem>>, vector<64x384xf32>,
    %c0_7 = arith.constant 0 : index
    %c0_8 = arith.constant 0 : index
    %7 = vector.load %arg2[%c0_7, %c0_8] : memref<128x384xf32, #tpu.memory_space<vmem>>, vector<128x384xf32>
    %c0_9 = arith.constant 0 : index
    %c0_10 = arith.constant 0 : index
    %8 = vector.load %arg4[%c0_9, %c0_10] : memref<1x128xf32, #tpu.memory_space<vmem>>, vector<1x128xf32>
    %9 = vector.shape_cast %8 : vector<1x128xf32> to vector<1x128xf32>
    %10 = vector.broadcast %9 : vector<1x128xf32> to vector<8x128xf32>
    %cst_11 = arith.constant 0.000000e+00 : f32
    %11 = vector.broadcast %cst_11 : f32 to vector<8x128xf32>
    %cst_12 = arith.constant dense<0.000000e+00> : vector<8x384xf32>
    %12 = tpu.matmul %11, %7, %cst_12 {dimension_numbers = #tpu.dot_dimension_numbers<[1], [0], [0], [1], [0, 0, 1, 1], [], []>} : vector<8x128xf32>, vector<128x384xf32>, vector<8x384xf32> -> vector<8x384xf32>
    %c0_13 = arith.constant 0 : index
    %c0_14 = arith.constant 0 : index
    %13 = vector.load %arg15[%c0_13, %c0_14] : memref<64x384xf32, #tpu.memory_space<vmem>>, vector<8x384xf32>
    %14 = vector.extract_strided_slice %13 {offsets = [0, 0], sizes = [8, 256], strides = [1, 1]} : vector<8x384xf32> to vector<8x256xf32>
    %15 = vector.extract_strided_slice %12 {offsets = [0, 0], sizes = [8, 256], strides = [1, 1]} : vector<8x384xf32> to vector<8x256xf32>
    %16 = arith.addf %14, %15 : vector<8x256xf32>
    %17 = arith.negf %16 : vector<8x256xf32>
    %18 = math.exp %17 : vector<8x256xf32>
    %cst_15 = arith.constant 1.000000e+00 : f32
    %19 = vector.broadcast %cst_15 : f32 to vector<8x256xf32>
    %20 = arith.addf %19, %18 : vector<8x256xf32>
    %21 = arith.divf %19, %20 : vector<8x256xf32>
    %22 = vector.extract_strided_slice %21 {offsets = [0, 0], sizes = [8, 128], strides = [1, 1]} : vector<8x256xf32> to vector<8x128xf32>
    %23 = vector.extract_strided_slice %21 {offsets = [0, 128], sizes = [8, 128], strides = [1, 1]} : vector<8x256xf32> to vector<8x128xf32>
    %24 = vector.extract_strided_slice %13 {offsets = [0, 256], sizes = [8, 128], strides = [1, 1]} : vector<8x384xf32> to vector<8x128xf32>
    %25 = vector.extract_strided_slice %12 {offsets = [0, 256], sizes = [8, 128], strides = [1, 1]} : vector<8x384xf32> to vector<8x128xf32>
    %26 = arith.addf %25, %10 : vector<8x128xf32>
    %27 = arith.mulf %22, %26 : vector<8x128xf32>
    %28 = arith.addf %24, %27 : vector<8x128xf32>
    %29 = math.tanh %28 : vector<8x128xf32>
    %cst_16 = arith.constant 1.000000e+00 : f32
    %30 = vector.broadcast %cst_16 : f32 to vector<8x128xf32>
    %31 = arith.subf %30, %23 : vector<8x128xf32>
    %32 = arith.mulf %31, %29 : vector<8x128xf32>
    %33 = arith.mulf %23, %11 : vector<8x128xf32>
    %34 = arith.addf %32, %33 : vector<8x128xf32>
    %c0_17 = arith.constant 0 : index
    %c0_18 = arith.constant 0 : index
    %35 = vector.load %arg16[%c0_17, %c0_18] : memref<64x128xf32, #tpu.memory_space<vmem>>, vector<8x128xf32>
    tpu.vector_store %arg16[%c0_17, %c0_18], %34 {strides = array<i32>} : memref<64x128xf32, #tpu.memory_space<vmem>>, vector<8x128xf32>,
    %cst_19 = arith.constant dense<0.000000e+00> : vector<8x384xf32>
    %36 = tpu.matmul %34, %7, %cst_19 {dimension_numbers = #tpu.dot_dimension_numbers<[1], [0], [0], [1], [0, 0, 1, 1], [], []>} : vector<8x128xf32>, vector<128x384xf32>, vector<8x384xf32> -> vector<8x384xf32>
    %c8 = arith.constant 8 : index
    %c0_20 = arith.constant 0 : index
    %37 = vector.load %arg15[%c8, %c0_20] : memref<64x384xf32, #tpu.memory_space<vmem>>, vector<8x384xf32>
    %38 = vector.extract_strided_slice %37 {offsets = [0, 0], sizes = [8, 256], strides = [1, 1]} : vector<8x384xf32> to vector<8x256xf32>
    %39 = vector.extract_strided_slice %36 {offsets = [0, 0], sizes = [8, 256], strides = [1, 1]} : vector<8x384xf32> to vector<8x256xf32>
    %40 = arith.addf %38, %39 : vector<8x256xf32>
    %41 = arith.negf %40 : vector<8x256xf32>
    %42 = math.exp %41 : vector<8x256xf32>
    %cst_21 = arith.constant 1.000000e+00 : f32
    %43 = vector.broadcast %cst_21 : f32 to vector<8x256xf32>
    %44 = arith.addf %43, %42 : vector<8x256xf32>
    %45 = arith.divf %43, %44 : vector<8x256xf32>
    %46 = vector.extract_strided_slice %45 {offsets = [0, 0], sizes = [8, 128], strides = [1, 1]} : vector<8x256xf32> to vector<8x128xf32>
    %47 = vector.extract_strided_slice %45 {offsets = [0, 128], sizes = [8, 128], strides = [1, 1]} : vector<8x256xf32> to vector<8x128xf32>
    %48 = vector.extract_strided_slice %37 {offsets = [0, 256], sizes = [8, 128], strides = [1, 1]} : vector<8x384xf32> to vector<8x128xf32>
    %49 = vector.extract_strided_slice %36 {offsets = [0, 256], sizes = [8, 128], strides = [1, 1]} : vector<8x384xf32> to vector<8x128xf32>
    %50 = arith.addf %49, %10 : vector<8x128xf32>
    %51 = arith.mulf %46, %50 : vector<8x128xf32>
    %52 = arith.addf %48, %51 : vector<8x128xf32>
    %53 = math.tanh %52 : vector<8x128xf32>
    %cst_22 = arith.constant 1.000000e+00 : f32
    %54 = vector.broadcast %cst_22 : f32 to vector<8x128xf32>
    %55 = arith.subf %54, %47 : vector<8x128xf32>
    %56 = arith.mulf %55, %53 : vector<8x128xf32>
    %57 = arith.mulf %47, %34 : vector<8x128xf32>
    %58 = arith.addf %56, %57 : vector<8x128xf32>
    %c8_23 = arith.constant 8 : index
    %c0_24 = arith.constant 0 : index
    %59 = vector.load %arg16[%c8_23, %c0_24] : memref<64x128xf32, #tpu.memory_space<vmem>>, vector<8x128xf32>
    tpu.vector_store %arg16[%c8_23, %c0_24], %58 {strides = array<i32>} : memref<64x128xf32, #tpu.memory_space<vmem>>, vector<8x128xf32>,
    %cst_25 = arith.constant dense<0.000000e+00> : vector<8x384xf32>
    %60 = tpu.matmul %58, %7, %cst_25 {dimension_numbers = #tpu.dot_dimension_numbers<[1], [0], [0], [1], [0, 0, 1, 1], [], []>} : vector<8x128xf32>, vector<128x384xf32>, vector<8x384xf32> -> vector<8x384xf32>
    %c16 = arith.constant 16 : index
    %c0_26 = arith.constant 0 : index
    %61 = vector.load %arg15[%c16, %c0_26] : memref<64x384xf32, #tpu.memory_space<vmem>>, vector<8x384xf32>
    %62 = vector.extract_strided_slice %61 {offsets = [0, 0], sizes = [8, 256], strides = [1, 1]} : vector<8x384xf32> to vector<8x256xf32>
    %63 = vector.extract_strided_slice %60 {offsets = [0, 0], sizes = [8, 256], strides = [1, 1]} : vector<8x384xf32> to vector<8x256xf32>
    %64 = arith.addf %62, %63 : vector<8x256xf32>
    %65 = arith.negf %64 : vector<8x256xf32>
    %66 = math.exp %65 : vector<8x256xf32>
    %cst_27 = arith.constant 1.000000e+00 : f32
    %67 = vector.broadcast %cst_27 : f32 to vector<8x256xf32>
    %68 = arith.addf %67, %66 : vector<8x256xf32>
    %69 = arith.divf %67, %68 : vector<8x256xf32>
    %70 = vector.extract_strided_slice %69 {offsets = [0, 0], sizes = [8, 128], strides = [1, 1]} : vector<8x256xf32> to vector<8x128xf32>
    %71 = vector.extract_strided_slice %69 {offsets = [0, 128], sizes = [8, 128], strides = [1, 1]} : vector<8x256xf32> to vector<8x128xf32>
    %72 = vector.extract_strided_slice %61 {offsets = [0, 256], sizes = [8, 128], strides = [1, 1]} : vector<8x384xf32> to vector<8x128xf32>
    %73 = vector.extract_strided_slice %60 {offsets = [0, 256], sizes = [8, 128], strides = [1, 1]} : vector<8x384xf32> to vector<8x128xf32>
    %74 = arith.addf %73, %10 : vector<8x128xf32>
    %75 = arith.mulf %70, %74 : vector<8x128xf32>
    %76 = arith.addf %72, %75 : vector<8x128xf32>
    %77 = math.tanh %76 : vector<8x128xf32>
    %cst_28 = arith.constant 1.000000e+00 : f32
    %78 = vector.broadcast %cst_28 : f32 to vector<8x128xf32>
    %79 = arith.subf %78, %71 : vector<8x128xf32>
    %80 = arith.mulf %79, %77 : vector<8x128xf32>
    %81 = arith.mulf %71, %58 : vector<8x128xf32>
    %82 = arith.addf %80, %81 : vector<8x128xf32>
    %c16_29 = arith.constant 16 : index
    %c0_30 = arith.constant 0 : index
    %83 = vector.load %arg16[%c16_29, %c0_30] : memref<64x128xf32, #tpu.memory_space<vmem>>, vector<8x128xf32>
    tpu.vector_store %arg16[%c16_29, %c0_30], %82 {strides = array<i32>} : memref<64x128xf32, #tpu.memory_space<vmem>>, vector<8x128xf32>,
    %cst_31 = arith.constant dense<0.000000e+00> : vector<8x384xf32>
    %84 = tpu.matmul %82, %7, %cst_31 {dimension_numbers = #tpu.dot_dimension_numbers<[1], [0], [0], [1], [0, 0, 1, 1], [], []>} : vector<8x128xf32>, vector<128x384xf32>, vector<8x384xf32> -> vector<8x384xf32>
    %c24 = arith.constant 24 : index
    %c0_32 = arith.constant 0 : index
    %85 = vector.load %arg15[%c24, %c0_32] : memref<64x384xf32, #tpu.memory_space<vmem>>, vector<8x384xf32>
    %86 = vector.extract_strided_slice %85 {offsets = [0, 0], sizes = [8, 256], strides = [1, 1]} : vector<8x384xf32> to vector<8x256xf32>
    %87 = vector.extract_strided_slice %84 {offsets = [0, 0], sizes = [8, 256], strides = [1, 1]} : vector<8x384xf32> to vector<8x256xf32>
    %88 = arith.addf %86, %87 : vector<8x256xf32>
    %89 = arith.negf %88 : vector<8x256xf32>
    %90 = math.exp %89 : vector<8x256xf32>
    %cst_33 = arith.constant 1.000000e+00 : f32
    %91 = vector.broadcast %cst_33 : f32 to vector<8x256xf32>
    %92 = arith.addf %91, %90 : vector<8x256xf32>
    %93 = arith.divf %91, %92 : vector<8x256xf32>
    %94 = vector.extract_strided_slice %93 {offsets = [0, 0], sizes = [8, 128], strides = [1, 1]} : vector<8x256xf32> to vector<8x128xf32>
    %95 = vector.extract_strided_slice %93 {offsets = [0, 128], sizes = [8, 128], strides = [1, 1]} : vector<8x256xf32> to vector<8x128xf32>
    %96 = vector.extract_strided_slice %85 {offsets = [0, 256], sizes = [8, 128], strides = [1, 1]} : vector<8x384xf32> to vector<8x128xf32>
    %97 = vector.extract_strided_slice %84 {offsets = [0, 256], sizes = [8, 128], strides = [1, 1]} : vector<8x384xf32> to vector<8x128xf32>
    %98 = arith.addf %97, %10 : vector<8x128xf32>
    %99 = arith.mulf %94, %98 : vector<8x128xf32>
    %100 = arith.addf %96, %99 : vector<8x128xf32>
    %101 = math.tanh %100 : vector<8x128xf32>
    %cst_34 = arith.constant 1.000000e+00 : f32
    %102 = vector.broadcast %cst_34 : f32 to vector<8x128xf32>
    %103 = arith.subf %102, %95 : vector<8x128xf32>
    %104 = arith.mulf %103, %101 : vector<8x128xf32>
    %105 = arith.mulf %95, %82 : vector<8x128xf32>
    %106 = arith.addf %104, %105 : vector<8x128xf32>
    %c24_35 = arith.constant 24 : index
    %c0_36 = arith.constant 0 : index
    %107 = vector.load %arg16[%c24_35, %c0_36] : memref<64x128xf32, #tpu.memory_space<vmem>>, vector<8x128xf32>
    tpu.vector_store %arg16[%c24_35, %c0_36], %106 {strides = array<i32>} : memref<64x128xf32, #tpu.memory_space<vmem>>, vector<8x128xf32>,
    %cst_37 = arith.constant dense<0.000000e+00> : vector<8x384xf32>
    %108 = tpu.matmul %106, %7, %cst_37 {dimension_numbers = #tpu.dot_dimension_numbers<[1], [0], [0], [1], [0, 0, 1, 1], [], []>} : vector<8x128xf32>, vector<128x384xf32>, vector<8x384xf32> -> vector<8x384xf32>
    %c32 = arith.constant 32 : index
    %c0_38 = arith.constant 0 : index
    %109 = vector.load %arg15[%c32, %c0_38] : memref<64x384xf32, #tpu.memory_space<vmem>>, vector<8x384xf32>
    %110 = vector.extract_strided_slice %109 {offsets = [0, 0], sizes = [8, 256], strides = [1, 1]} : vector<8x384xf32> to vector<8x256xf32>
    %111 = vector.extract_strided_slice %108 {offsets = [0, 0], sizes = [8, 256], strides = [1, 1]} : vector<8x384xf32> to vector<8x256xf32>
    %112 = arith.addf %110, %111 : vector<8x256xf32>
    %113 = arith.negf %112 : vector<8x256xf32>
    %114 = math.exp %113 : vector<8x256xf32>
    %cst_39 = arith.constant 1.000000e+00 : f32
    %115 = vector.broadcast %cst_39 : f32 to vector<8x256xf32>
    %116 = arith.addf %115, %114 : vector<8x256xf32>
    %117 = arith.divf %115, %116 : vector<8x256xf32>
    %118 = vector.extract_strided_slice %117 {offsets = [0, 0], sizes = [8, 128], strides = [1, 1]} : vector<8x256xf32> to vector<8x128xf32>
    %119 = vector.extract_strided_slice %117 {offsets = [0, 128], sizes = [8, 128], strides = [1, 1]} : vector<8x256xf32> to vector<8x128xf32>
    %120 = vector.extract_strided_slice %109 {offsets = [0, 256], sizes = [8, 128], strides = [1, 1]} : vector<8x384xf32> to vector<8x128xf32>
    %121 = vector.extract_strided_slice %108 {offsets = [0, 256], sizes = [8, 128], strides = [1, 1]} : vector<8x384xf32> to vector<8x128xf32>
    %122 = arith.addf %121, %10 : vector<8x128xf32>
    %123 = arith.mulf %118, %122 : vector<8x128xf32>
    %124 = arith.addf %120, %123 : vector<8x128xf32>
    %125 = math.tanh %124 : vector<8x128xf32>
    %cst_40 = arith.constant 1.000000e+00 : f32
    %126 = vector.broadcast %cst_40 : f32 to vector<8x128xf32>
    %127 = arith.subf %126, %119 : vector<8x128xf32>
    %128 = arith.mulf %127, %125 : vector<8x128xf32>
    %129 = arith.mulf %119, %106 : vector<8x128xf32>
    %130 = arith.addf %128, %129 : vector<8x128xf32>
    %c32_41 = arith.constant 32 : index
    %c0_42 = arith.constant 0 : index
    %131 = vector.load %arg16[%c32_41, %c0_42] : memref<64x128xf32, #tpu.memory_space<vmem>>, vector<8x128xf32>
    tpu.vector_store %arg16[%c32_41, %c0_42], %130 {strides = array<i32>} : memref<64x128xf32, #tpu.memory_space<vmem>>, vector<8x128xf32>,
    %cst_43 = arith.constant dense<0.000000e+00> : vector<8x384xf32>
    %132 = tpu.matmul %130, %7, %cst_43 {dimension_numbers = #tpu.dot_dimension_numbers<[1], [0], [0], [1], [0, 0, 1, 1], [], []>} : vector<8x128xf32>, vector<128x384xf32>, vector<8x384xf32> -> vector<8x384xf32>
    %c40 = arith.constant 40 : index
    %c0_44 = arith.constant 0 : index
    %133 = vector.load %arg15[%c40, %c0_44] : memref<64x384xf32, #tpu.memory_space<vmem>>, vector<8x384xf32>
    %134 = vector.extract_strided_slice %133 {offsets = [0, 0], sizes = [8, 256], strides = [1, 1]} : vector<8x384xf32> to vector<8x256xf32>
    %135 = vector.extract_strided_slice %132 {offsets = [0, 0], sizes = [8, 256], strides = [1, 1]} : vector<8x384xf32> to vector<8x256xf32>
    %136 = arith.addf %134, %135 : vector<8x256xf32>
    %137 = arith.negf %136 : vector<8x256xf32>
    %138 = math.exp %137 : vector<8x256xf32>
    %cst_45 = arith.constant 1.000000e+00 : f32
    %139 = vector.broadcast %cst_45 : f32 to vector<8x256xf32>
    %140 = arith.addf %139, %138 : vector<8x256xf32>
    %141 = arith.divf %139, %140 : vector<8x256xf32>
    %142 = vector.extract_strided_slice %141 {offsets = [0, 0], sizes = [8, 128], strides = [1, 1]} : vector<8x256xf32> to vector<8x128xf32>
    %143 = vector.extract_strided_slice %141 {offsets = [0, 128], sizes = [8, 128], strides = [1, 1]} : vector<8x256xf32> to vector<8x128xf32>
    %144 = vector.extract_strided_slice %133 {offsets = [0, 256], sizes = [8, 128], strides = [1, 1]} : vector<8x384xf32> to vector<8x128xf32>
    %145 = vector.extract_strided_slice %132 {offsets = [0, 256], sizes = [8, 128], strides = [1, 1]} : vector<8x384xf32> to vector<8x128xf32>
    %146 = arith.addf %145, %10 : vector<8x128xf32>
    %147 = arith.mulf %142, %146 : vector<8x128xf32>
    %148 = arith.addf %144, %147 : vector<8x128xf32>
    %149 = math.tanh %148 : vector<8x128xf32>
    %cst_46 = arith.constant 1.000000e+00 : f32
    %150 = vector.broadcast %cst_46 : f32 to vector<8x128xf32>
    %151 = arith.subf %150, %143 : vector<8x128xf32>
    %152 = arith.mulf %151, %149 : vector<8x128xf32>
    %153 = arith.mulf %143, %130 : vector<8x128xf32>
    %154 = arith.addf %152, %153 : vector<8x128xf32>
    %c40_47 = arith.constant 40 : index
    %c0_48 = arith.constant 0 : index
    %155 = vector.load %arg16[%c40_47, %c0_48] : memref<64x128xf32, #tpu.memory_space<vmem>>, vector<8x128xf32>
    tpu.vector_store %arg16[%c40_47, %c0_48], %154 {strides = array<i32>} : memref<64x128xf32, #tpu.memory_space<vmem>>, vector<8x128xf32>,
    %cst_49 = arith.constant dense<0.000000e+00> : vector<8x384xf32>
    %156 = tpu.matmul %154, %7, %cst_49 {dimension_numbers = #tpu.dot_dimension_numbers<[1], [0], [0], [1], [0, 0, 1, 1], [], []>} : vector<8x128xf32>, vector<128x384xf32>, vector<8x384xf32> -> vector<8x384xf32>
    %c48 = arith.constant 48 : index
    %c0_50 = arith.constant 0 : index
    %157 = vector.load %arg15[%c48, %c0_50] : memref<64x384xf32, #tpu.memory_space<vmem>>, vector<8x384xf32>
    %158 = vector.extract_strided_slice %157 {offsets = [0, 0], sizes = [8, 256], strides = [1, 1]} : vector<8x384xf32> to vector<8x256xf32>
    %159 = vector.extract_strided_slice %156 {offsets = [0, 0], sizes = [8, 256], strides = [1, 1]} : vector<8x384xf32> to vector<8x256xf32>
    %160 = arith.addf %158, %159 : vector<8x256xf32>
    %161 = arith.negf %160 : vector<8x256xf32>
    %162 = math.exp %161 : vector<8x256xf32>
    %cst_51 = arith.constant 1.000000e+00 : f32
    %163 = vector.broadcast %cst_51 : f32 to vector<8x256xf32>
    %164 = arith.addf %163, %162 : vector<8x256xf32>
    %165 = arith.divf %163, %164 : vector<8x256xf32>
    %166 = vector.extract_strided_slice %165 {offsets = [0, 0], sizes = [8, 128], strides = [1, 1]} : vector<8x256xf32> to vector<8x128xf32>
    %167 = vector.extract_strided_slice %165 {offsets = [0, 128], sizes = [8, 128], strides = [1, 1]} : vector<8x256xf32> to vector<8x128xf32>
    %168 = vector.extract_strided_slice %157 {offsets = [0, 256], sizes = [8, 128], strides = [1, 1]} : vector<8x384xf32> to vector<8x128xf32>
    %169 = vector.extract_strided_slice %156 {offsets = [0, 256], sizes = [8, 128], strides = [1, 1]} : vector<8x384xf32> to vector<8x128xf32>
    %170 = arith.addf %169, %10 : vector<8x128xf32>
    %171 = arith.mulf %166, %170 : vector<8x128xf32>
    %172 = arith.addf %168, %171 : vector<8x128xf32>
    %173 = math.tanh %172 : vector<8x128xf32>
    %cst_52 = arith.constant 1.000000e+00 : f32
    %174 = vector.broadcast %cst_52 : f32 to vector<8x128xf32>
    %175 = arith.subf %174, %167 : vector<8x128xf32>
    %176 = arith.mulf %175, %173 : vector<8x128xf32>
    %177 = arith.mulf %167, %154 : vector<8x128xf32>
    %178 = arith.addf %176, %177 : vector<8x128xf32>
    %c48_53 = arith.constant 48 : index
    %c0_54 = arith.constant 0 : index
    %179 = vector.load %arg16[%c48_53, %c0_54] : memref<64x128xf32, #tpu.memory_space<vmem>>, vector<8x128xf32>
    tpu.vector_store %arg16[%c48_53, %c0_54], %178 {strides = array<i32>} : memref<64x128xf32, #tpu.memory_space<vmem>>, vector<8x128xf32>,
    %cst_55 = arith.constant dense<0.000000e+00> : vector<8x384xf32>
    %180 = tpu.matmul %178, %7, %cst_55 {dimension_numbers = #tpu.dot_dimension_numbers<[1], [0], [0], [1], [0, 0, 1, 1], [], []>} : vector<8x128xf32>, vector<128x384xf32>, vector<8x384xf32> -> vector<8x384xf32>
    %c56 = arith.constant 56 : index
    %c0_56 = arith.constant 0 : index
    %181 = vector.load %arg15[%c56, %c0_56] : memref<64x384xf32, #tpu.memory_space<vmem>>, vector<8x384xf32>
    %182 = vector.extract_strided_slice %181 {offsets = [0, 0], sizes = [8, 256], strides = [1, 1]} : vector<8x384xf32> to vector<8x256xf32>
    %183 = vector.extract_strided_slice %180 {offsets = [0, 0], sizes = [8, 256], strides = [1, 1]} : vector<8x384xf32> to vector<8x256xf32>
    %184 = arith.addf %182, %183 : vector<8x256xf32>
    %185 = arith.negf %184 : vector<8x256xf32>
    %186 = math.exp %185 : vector<8x256xf32>
    %cst_57 = arith.constant 1.000000e+00 : f32
    %187 = vector.broadcast %cst_57 : f32 to vector<8x256xf32>
    %188 = arith.addf %187, %186 : vector<8x256xf32>
    %189 = arith.divf %187, %188 : vector<8x256xf32>
    %190 = vector.extract_strided_slice %189 {offsets = [0, 0], sizes = [8, 128], strides = [1, 1]} : vector<8x256xf32> to vector<8x128xf32>
    %191 = vector.extract_strided_slice %189 {offsets = [0, 128], sizes = [8, 128], strides = [1, 1]} : vector<8x256xf32> to vector<8x128xf32>
    %192 = vector.extract_strided_slice %181 {offsets = [0, 256], sizes = [8, 128], strides = [1, 1]} : vector<8x384xf32> to vector<8x128xf32>
    %193 = vector.extract_strided_slice %180 {offsets = [0, 256], sizes = [8, 128], strides = [1, 1]} : vector<8x384xf32> to vector<8x128xf32>
    %194 = arith.addf %193, %10 : vector<8x128xf32>
    %195 = arith.mulf %190, %194 : vector<8x128xf32>
    %196 = arith.addf %192, %195 : vector<8x128xf32>
    %197 = math.tanh %196 : vector<8x128xf32>
    %cst_58 = arith.constant 1.000000e+00 : f32
    %198 = vector.broadcast %cst_58 : f32 to vector<8x128xf32>
    %199 = arith.subf %198, %191 : vector<8x128xf32>
    %200 = arith.mulf %199, %197 : vector<8x128xf32>
    %201 = arith.mulf %191, %178 : vector<8x128xf32>
    %202 = arith.addf %200, %201 : vector<8x128xf32>
    %c56_59 = arith.constant 56 : index
    %c0_60 = arith.constant 0 : index
    %203 = vector.load %arg16[%c56_59, %c0_60] : memref<64x128xf32, #tpu.memory_space<vmem>>, vector<8x128xf32>
    tpu.vector_store %arg16[%c56_59, %c0_60], %202 {strides = array<i32>} : memref<64x128xf32, #tpu.memory_space<vmem>>, vector<8x128xf32>,
    %c0_61 = arith.constant 0 : index
    %c0_62 = arith.constant 0 : index
    %204 = vector.load %arg16[%c0_61, %c0_62] : memref<64x128xf32, #tpu.memory_space<vmem>>, vector<64x128xf32>
    %c0_63 = arith.constant 0 : index
    %c0_64 = arith.constant 0 : index
    %205 = vector.load %arg5[%c0_63, %c0_64] : memref<128x384xf32, #tpu.memory_space<vmem>>, vector<128x384xf32>
    %cst_65 = arith.constant dense<0.000000e+00> : vector<64x384xf32>
    %206 = tpu.matmul %204, %205, %cst_65 {dimension_numbers = #tpu.dot_dimension_numbers<[1], [0], [0], [1], [0, 0, 1, 1], [], []>} : vector<64x128xf32>, vector<128x384xf32>, vector<64x384xf32> -> vector<64x384xf32>
    %c0_66 = arith.constant 0 : index
    %c0_67 = arith.constant 0 : index
    %207 = vector.load %arg7[%c0_66, %c0_67] : memref<1x384xf32, #tpu.memory_space<vmem>>, vector<1x384xf32>
    %208 = vector.broadcast %207 : vector<1x384xf32> to vector<64x384xf32>
    %209 = arith.addf %206, %208 : vector<64x384xf32>
    %c0_68 = arith.constant 0 : index
    %c0_69 = arith.constant 0 : index
    %210 = vector.load %arg15[%c0_68, %c0_69] : memref<64x384xf32, #tpu.memory_space<vmem>>, vector<64x384xf32>
    tpu.vector_store %arg15[%c0_68, %c0_69], %209 {strides = array<i32>} : memref<64x384xf32, #tpu.memory_space<vmem>>, vector<64x384xf32>,
    %c0_70 = arith.constant 0 : index
    %c0_71 = arith.constant 0 : index
    %211 = vector.load %arg6[%c0_70, %c0_71] : memref<128x384xf32, #tpu.memory_space<vmem>>, vector<128x384xf32>
    %c0_72 = arith.constant 0 : index
    %c0_73 = arith.constant 0 : index
    %212 = vector.load %arg8[%c0_72, %c0_73] : memref<1x128xf32, #tpu.memory_space<vmem>>, vector<1x128xf32>
    %213 = vector.shape_cast %212 : vector<1x128xf32> to vector<1x128xf32>
    %214 = vector.broadcast %213 : vector<1x128xf32> to vector<8x128xf32>
    %cst_74 = arith.constant 0.000000e+00 : f32
    %215 = vector.broadcast %cst_74 : f32 to vector<8x128xf32>
    %cst_75 = arith.constant dense<0.000000e+00> : vector<8x384xf32>
    %216 = tpu.matmul %215, %211, %cst_75 {dimension_numbers = #tpu.dot_dimension_numbers<[1], [0], [0], [1], [0, 0, 1, 1], [], []>} : vector<8x128xf32>, vector<128x384xf32>, vector<8x384xf32> -> vector<8x384xf32>
    %c0_76 = arith.constant 0 : index
    %c0_77 = arith.constant 0 : index
    %217 = vector.load %arg15[%c0_76, %c0_77] : memref<64x384xf32, #tpu.memory_space<vmem>>, vector<8x384xf32>
    %218 = vector.extract_strided_slice %217 {offsets = [0, 0], sizes = [8, 256], strides = [1, 1]} : vector<8x384xf32> to vector<8x256xf32>
    %219 = vector.extract_strided_slice %216 {offsets = [0, 0], sizes = [8, 256], strides = [1, 1]} : vector<8x384xf32> to vector<8x256xf32>
    %220 = arith.addf %218, %219 : vector<8x256xf32>
    %221 = arith.negf %220 : vector<8x256xf32>
    %222 = math.exp %221 : vector<8x256xf32>
    %cst_78 = arith.constant 1.000000e+00 : f32
    %223 = vector.broadcast %cst_78 : f32 to vector<8x256xf32>
    %224 = arith.addf %223, %222 : vector<8x256xf32>
    %225 = arith.divf %223, %224 : vector<8x256xf32>
    %226 = vector.extract_strided_slice %225 {offsets = [0, 0], sizes = [8, 128], strides = [1, 1]} : vector<8x256xf32> to vector<8x128xf32>
    %227 = vector.extract_strided_slice %225 {offsets = [0, 128], sizes = [8, 128], strides = [1, 1]} : vector<8x256xf32> to vector<8x128xf32>
    %228 = vector.extract_strided_slice %217 {offsets = [0, 256], sizes = [8, 128], strides = [1, 1]} : vector<8x384xf32> to vector<8x128xf32>
    %229 = vector.extract_strided_slice %216 {offsets = [0, 256], sizes = [8, 128], strides = [1, 1]} : vector<8x384xf32> to vector<8x128xf32>
    %230 = arith.addf %229, %214 : vector<8x128xf32>
    %231 = arith.mulf %226, %230 : vector<8x128xf32>
    %232 = arith.addf %228, %231 : vector<8x128xf32>
    %233 = math.tanh %232 : vector<8x128xf32>
    %cst_79 = arith.constant 1.000000e+00 : f32
    %234 = vector.broadcast %cst_79 : f32 to vector<8x128xf32>
    %235 = arith.subf %234, %227 : vector<8x128xf32>
    %236 = arith.mulf %235, %233 : vector<8x128xf32>
    %237 = arith.mulf %227, %215 : vector<8x128xf32>
    %238 = arith.addf %236, %237 : vector<8x128xf32>
    %c0_80 = arith.constant 0 : index
    %c0_81 = arith.constant 0 : index
    %239 = vector.load %arg17[%c0_80, %c0_81] : memref<64x128xf32, #tpu.memory_space<vmem>>, vector<8x128xf32>
    tpu.vector_store %arg17[%c0_80, %c0_81], %238 {strides = array<i32>} : memref<64x128xf32, #tpu.memory_space<vmem>>, vector<8x128xf32>,
    %cst_82 = arith.constant dense<0.000000e+00> : vector<8x384xf32>
    %240 = tpu.matmul %238, %211, %cst_82 {dimension_numbers = #tpu.dot_dimension_numbers<[1], [0], [0], [1], [0, 0, 1, 1], [], []>} : vector<8x128xf32>, vector<128x384xf32>, vector<8x384xf32> -> vector<8x384xf32>
    %c8_83 = arith.constant 8 : index
    %c0_84 = arith.constant 0 : index
    %241 = vector.load %arg15[%c8_83, %c0_84] : memref<64x384xf32, #tpu.memory_space<vmem>>, vector<8x384xf32>
    %242 = vector.extract_strided_slice %241 {offsets = [0, 0], sizes = [8, 256], strides = [1, 1]} : vector<8x384xf32> to vector<8x256xf32>
    %243 = vector.extract_strided_slice %240 {offsets = [0, 0], sizes = [8, 256], strides = [1, 1]} : vector<8x384xf32> to vector<8x256xf32>
    %244 = arith.addf %242, %243 : vector<8x256xf32>
    %245 = arith.negf %244 : vector<8x256xf32>
    %246 = math.exp %245 : vector<8x256xf32>
    %cst_85 = arith.constant 1.000000e+00 : f32
    %247 = vector.broadcast %cst_85 : f32 to vector<8x256xf32>
    %248 = arith.addf %247, %246 : vector<8x256xf32>
    %249 = arith.divf %247, %248 : vector<8x256xf32>
    %250 = vector.extract_strided_slice %249 {offsets = [0, 0], sizes = [8, 128], strides = [1, 1]} : vector<8x256xf32> to vector<8x128xf32>
    %251 = vector.extract_strided_slice %249 {offsets = [0, 128], sizes = [8, 128], strides = [1, 1]} : vector<8x256xf32> to vector<8x128xf32>
    %252 = vector.extract_strided_slice %241 {offsets = [0, 256], sizes = [8, 128], strides = [1, 1]} : vector<8x384xf32> to vector<8x128xf32>
    %253 = vector.extract_strided_slice %240 {offsets = [0, 256], sizes = [8, 128], strides = [1, 1]} : vector<8x384xf32> to vector<8x128xf32>
    %254 = arith.addf %253, %214 : vector<8x128xf32>
    %255 = arith.mulf %250, %254 : vector<8x128xf32>
    %256 = arith.addf %252, %255 : vector<8x128xf32>
    %257 = math.tanh %256 : vector<8x128xf32>
    %cst_86 = arith.constant 1.000000e+00 : f32
    %258 = vector.broadcast %cst_86 : f32 to vector<8x128xf32>
    %259 = arith.subf %258, %251 : vector<8x128xf32>
    %260 = arith.mulf %259, %257 : vector<8x128xf32>
    %261 = arith.mulf %251, %238 : vector<8x128xf32>
    %262 = arith.addf %260, %261 : vector<8x128xf32>
    %c8_87 = arith.constant 8 : index
    %c0_88 = arith.constant 0 : index
    %263 = vector.load %arg17[%c8_87, %c0_88] : memref<64x128xf32, #tpu.memory_space<vmem>>, vector<8x128xf32>
    tpu.vector_store %arg17[%c8_87, %c0_88], %262 {strides = array<i32>} : memref<64x128xf32, #tpu.memory_space<vmem>>, vector<8x128xf32>,
    %cst_89 = arith.constant dense<0.000000e+00> : vector<8x384xf32>
    %264 = tpu.matmul %262, %211, %cst_89 {dimension_numbers = #tpu.dot_dimension_numbers<[1], [0], [0], [1], [0, 0, 1, 1], [], []>} : vector<8x128xf32>, vector<128x384xf32>, vector<8x384xf32> -> vector<8x384xf32>
    %c16_90 = arith.constant 16 : index
    %c0_91 = arith.constant 0 : index
    %265 = vector.load %arg15[%c16_90, %c0_91] : memref<64x384xf32, #tpu.memory_space<vmem>>, vector<8x384xf32>
    %266 = vector.extract_strided_slice %265 {offsets = [0, 0], sizes = [8, 256], strides = [1, 1]} : vector<8x384xf32> to vector<8x256xf32>
    %267 = vector.extract_strided_slice %264 {offsets = [0, 0], sizes = [8, 256], strides = [1, 1]} : vector<8x384xf32> to vector<8x256xf32>
    %268 = arith.addf %266, %267 : vector<8x256xf32>
    %269 = arith.negf %268 : vector<8x256xf32>
    %270 = math.exp %269 : vector<8x256xf32>
    %cst_92 = arith.constant 1.000000e+00 : f32
    %271 = vector.broadcast %cst_92 : f32 to vector<8x256xf32>
    %272 = arith.addf %271, %270 : vector<8x256xf32>
    %273 = arith.divf %271, %272 : vector<8x256xf32>
    %274 = vector.extract_strided_slice %273 {offsets = [0, 0], sizes = [8, 128], strides = [1, 1]} : vector<8x256xf32> to vector<8x128xf32>
    %275 = vector.extract_strided_slice %273 {offsets = [0, 128], sizes = [8, 128], strides = [1, 1]} : vector<8x256xf32> to vector<8x128xf32>
    %276 = vector.extract_strided_slice %265 {offsets = [0, 256], sizes = [8, 128], strides = [1, 1]} : vector<8x384xf32> to vector<8x128xf32>
    %277 = vector.extract_strided_slice %264 {offsets = [0, 256], sizes = [8, 128], strides = [1, 1]} : vector<8x384xf32> to vector<8x128xf32>
    %278 = arith.addf %277, %214 : vector<8x128xf32>
    %279 = arith.mulf %274, %278 : vector<8x128xf32>
    %280 = arith.addf %276, %279 : vector<8x128xf32>
    %281 = math.tanh %280 : vector<8x128xf32>
    %cst_93 = arith.constant 1.000000e+00 : f32
    %282 = vector.broadcast %cst_93 : f32 to vector<8x128xf32>
    %283 = arith.subf %282, %275 : vector<8x128xf32>
    %284 = arith.mulf %283, %281 : vector<8x128xf32>
    %285 = arith.mulf %275, %262 : vector<8x128xf32>
    %286 = arith.addf %284, %285 : vector<8x128xf32>
    %c16_94 = arith.constant 16 : index
    %c0_95 = arith.constant 0 : index
    %287 = vector.load %arg17[%c16_94, %c0_95] : memref<64x128xf32, #tpu.memory_space<vmem>>, vector<8x128xf32>
    tpu.vector_store %arg17[%c16_94, %c0_95], %286 {strides = array<i32>} : memref<64x128xf32, #tpu.memory_space<vmem>>, vector<8x128xf32>,
    %cst_96 = arith.constant dense<0.000000e+00> : vector<8x384xf32>
    %288 = tpu.matmul %286, %211, %cst_96 {dimension_numbers = #tpu.dot_dimension_numbers<[1], [0], [0], [1], [0, 0, 1, 1], [], []>} : vector<8x128xf32>, vector<128x384xf32>, vector<8x384xf32> -> vector<8x384xf32>
    %c24_97 = arith.constant 24 : index
    %c0_98 = arith.constant 0 : index
    %289 = vector.load %arg15[%c24_97, %c0_98] : memref<64x384xf32, #tpu.memory_space<vmem>>, vector<8x384xf32>
    %290 = vector.extract_strided_slice %289 {offsets = [0, 0], sizes = [8, 256], strides = [1, 1]} : vector<8x384xf32> to vector<8x256xf32>
    %291 = vector.extract_strided_slice %288 {offsets = [0, 0], sizes = [8, 256], strides = [1, 1]} : vector<8x384xf32> to vector<8x256xf32>
    %292 = arith.addf %290, %291 : vector<8x256xf32>
    %293 = arith.negf %292 : vector<8x256xf32>
    %294 = math.exp %293 : vector<8x256xf32>
    %cst_99 = arith.constant 1.000000e+00 : f32
    %295 = vector.broadcast %cst_99 : f32 to vector<8x256xf32>
    %296 = arith.addf %295, %294 : vector<8x256xf32>
    %297 = arith.divf %295, %296 : vector<8x256xf32>
    %298 = vector.extract_strided_slice %297 {offsets = [0, 0], sizes = [8, 128], strides = [1, 1]} : vector<8x256xf32> to vector<8x128xf32>
    %299 = vector.extract_strided_slice %297 {offsets = [0, 128], sizes = [8, 128], strides = [1, 1]} : vector<8x256xf32> to vector<8x128xf32>
    %300 = vector.extract_strided_slice %289 {offsets = [0, 256], sizes = [8, 128], strides = [1, 1]} : vector<8x384xf32> to vector<8x128xf32>
    %301 = vector.extract_strided_slice %288 {offsets = [0, 256], sizes = [8, 128], strides = [1, 1]} : vector<8x384xf32> to vector<8x128xf32>
    %302 = arith.addf %301, %214 : vector<8x128xf32>
    %303 = arith.mulf %298, %302 : vector<8x128xf32>
    %304 = arith.addf %300, %303 : vector<8x128xf32>
    %305 = math.tanh %304 : vector<8x128xf32>
    %cst_100 = arith.constant 1.000000e+00 : f32
    %306 = vector.broadcast %cst_100 : f32 to vector<8x128xf32>
    %307 = arith.subf %306, %299 : vector<8x128xf32>
    %308 = arith.mulf %307, %305 : vector<8x128xf32>
    %309 = arith.mulf %299, %286 : vector<8x128xf32>
    %310 = arith.addf %308, %309 : vector<8x128xf32>
    %c24_101 = arith.constant 24 : index
    %c0_102 = arith.constant 0 : index
    %311 = vector.load %arg17[%c24_101, %c0_102] : memref<64x128xf32, #tpu.memory_space<vmem>>, vector<8x128xf32>
    tpu.vector_store %arg17[%c24_101, %c0_102], %310 {strides = array<i32>} : memref<64x128xf32, #tpu.memory_space<vmem>>, vector<8x128xf32>,
    %cst_103 = arith.constant dense<0.000000e+00> : vector<8x384xf32>
    %312 = tpu.matmul %310, %211, %cst_103 {dimension_numbers = #tpu.dot_dimension_numbers<[1], [0], [0], [1], [0, 0, 1, 1], [], []>} : vector<8x128xf32>, vector<128x384xf32>, vector<8x384xf32> -> vector<8x384xf32>
    %c32_104 = arith.constant 32 : index
    %c0_105 = arith.constant 0 : index
    %313 = vector.load %arg15[%c32_104, %c0_105] : memref<64x384xf32, #tpu.memory_space<vmem>>, vector<8x384xf32>
    %314 = vector.extract_strided_slice %313 {offsets = [0, 0], sizes = [8, 256], strides = [1, 1]} : vector<8x384xf32> to vector<8x256xf32>
    %315 = vector.extract_strided_slice %312 {offsets = [0, 0], sizes = [8, 256], strides = [1, 1]} : vector<8x384xf32> to vector<8x256xf32>
    %316 = arith.addf %314, %315 : vector<8x256xf32>
    %317 = arith.negf %316 : vector<8x256xf32>
    %318 = math.exp %317 : vector<8x256xf32>
    %cst_106 = arith.constant 1.000000e+00 : f32
    %319 = vector.broadcast %cst_106 : f32 to vector<8x256xf32>
    %320 = arith.addf %319, %318 : vector<8x256xf32>
    %321 = arith.divf %319, %320 : vector<8x256xf32>
    %322 = vector.extract_strided_slice %321 {offsets = [0, 0], sizes = [8, 128], strides = [1, 1]} : vector<8x256xf32> to vector<8x128xf32>
    %323 = vector.extract_strided_slice %321 {offsets = [0, 128], sizes = [8, 128], strides = [1, 1]} : vector<8x256xf32> to vector<8x128xf32>
    %324 = vector.extract_strided_slice %313 {offsets = [0, 256], sizes = [8, 128], strides = [1, 1]} : vector<8x384xf32> to vector<8x128xf32>
    %325 = vector.extract_strided_slice %312 {offsets = [0, 256], sizes = [8, 128], strides = [1, 1]} : vector<8x384xf32> to vector<8x128xf32>
    %326 = arith.addf %325, %214 : vector<8x128xf32>
    %327 = arith.mulf %322, %326 : vector<8x128xf32>
    %328 = arith.addf %324, %327 : vector<8x128xf32>
    %329 = math.tanh %328 : vector<8x128xf32>
    %cst_107 = arith.constant 1.000000e+00 : f32
    %330 = vector.broadcast %cst_107 : f32 to vector<8x128xf32>
    %331 = arith.subf %330, %323 : vector<8x128xf32>
    %332 = arith.mulf %331, %329 : vector<8x128xf32>
    %333 = arith.mulf %323, %310 : vector<8x128xf32>
    %334 = arith.addf %332, %333 : vector<8x128xf32>
    %c32_108 = arith.constant 32 : index
    %c0_109 = arith.constant 0 : index
    %335 = vector.load %arg17[%c32_108, %c0_109] : memref<64x128xf32, #tpu.memory_space<vmem>>, vector<8x128xf32>
    tpu.vector_store %arg17[%c32_108, %c0_109], %334 {strides = array<i32>} : memref<64x128xf32, #tpu.memory_space<vmem>>, vector<8x128xf32>,
    %cst_110 = arith.constant dense<0.000000e+00> : vector<8x384xf32>
    %336 = tpu.matmul %334, %211, %cst_110 {dimension_numbers = #tpu.dot_dimension_numbers<[1], [0], [0], [1], [0, 0, 1, 1], [], []>} : vector<8x128xf32>, vector<128x384xf32>, vector<8x384xf32> -> vector<8x384xf32>
    %c40_111 = arith.constant 40 : index
    %c0_112 = arith.constant 0 : index
    %337 = vector.load %arg15[%c40_111, %c0_112] : memref<64x384xf32, #tpu.memory_space<vmem>>, vector<8x384xf32>
    %338 = vector.extract_strided_slice %337 {offsets = [0, 0], sizes = [8, 256], strides = [1, 1]} : vector<8x384xf32> to vector<8x256xf32>
    %339 = vector.extract_strided_slice %336 {offsets = [0, 0], sizes = [8, 256], strides = [1, 1]} : vector<8x384xf32> to vector<8x256xf32>
    %340 = arith.addf %338, %339 : vector<8x256xf32>
    %341 = arith.negf %340 : vector<8x256xf32>
    %342 = math.exp %341 : vector<8x256xf32>
    %cst_113 = arith.constant 1.000000e+00 : f32
    %343 = vector.broadcast %cst_113 : f32 to vector<8x256xf32>
    %344 = arith.addf %343, %342 : vector<8x256xf32>
    %345 = arith.divf %343, %344 : vector<8x256xf32>
    %346 = vector.extract_strided_slice %345 {offsets = [0, 0], sizes = [8, 128], strides = [1, 1]} : vector<8x256xf32> to vector<8x128xf32>
    %347 = vector.extract_strided_slice %345 {offsets = [0, 128], sizes = [8, 128], strides = [1, 1]} : vector<8x256xf32> to vector<8x128xf32>
    %348 = vector.extract_strided_slice %337 {offsets = [0, 256], sizes = [8, 128], strides = [1, 1]} : vector<8x384xf32> to vector<8x128xf32>
    %349 = vector.extract_strided_slice %336 {offsets = [0, 256], sizes = [8, 128], strides = [1, 1]} : vector<8x384xf32> to vector<8x128xf32>
    %350 = arith.addf %349, %214 : vector<8x128xf32>
    %351 = arith.mulf %346, %350 : vector<8x128xf32>
    %352 = arith.addf %348, %351 : vector<8x128xf32>
    %353 = math.tanh %352 : vector<8x128xf32>
    %cst_114 = arith.constant 1.000000e+00 : f32
    %354 = vector.broadcast %cst_114 : f32 to vector<8x128xf32>
    %355 = arith.subf %354, %347 : vector<8x128xf32>
    %356 = arith.mulf %355, %353 : vector<8x128xf32>
    %357 = arith.mulf %347, %334 : vector<8x128xf32>
    %358 = arith.addf %356, %357 : vector<8x128xf32>
    %c40_115 = arith.constant 40 : index
    %c0_116 = arith.constant 0 : index
    %359 = vector.load %arg17[%c40_115, %c0_116] : memref<64x128xf32, #tpu.memory_space<vmem>>, vector<8x128xf32>
    tpu.vector_store %arg17[%c40_115, %c0_116], %358 {strides = array<i32>} : memref<64x128xf32, #tpu.memory_space<vmem>>, vector<8x128xf32>,
    %cst_117 = arith.constant dense<0.000000e+00> : vector<8x384xf32>
    %360 = tpu.matmul %358, %211, %cst_117 {dimension_numbers = #tpu.dot_dimension_numbers<[1], [0], [0], [1], [0, 0, 1, 1], [], []>} : vector<8x128xf32>, vector<128x384xf32>, vector<8x384xf32> -> vector<8x384xf32>
    %c48_118 = arith.constant 48 : index
    %c0_119 = arith.constant 0 : index
    %361 = vector.load %arg15[%c48_118, %c0_119] : memref<64x384xf32, #tpu.memory_space<vmem>>, vector<8x384xf32>
    %362 = vector.extract_strided_slice %361 {offsets = [0, 0], sizes = [8, 256], strides = [1, 1]} : vector<8x384xf32> to vector<8x256xf32>
    %363 = vector.extract_strided_slice %360 {offsets = [0, 0], sizes = [8, 256], strides = [1, 1]} : vector<8x384xf32> to vector<8x256xf32>
    %364 = arith.addf %362, %363 : vector<8x256xf32>
    %365 = arith.negf %364 : vector<8x256xf32>
    %366 = math.exp %365 : vector<8x256xf32>
    %cst_120 = arith.constant 1.000000e+00 : f32
    %367 = vector.broadcast %cst_120 : f32 to vector<8x256xf32>
    %368 = arith.addf %367, %366 : vector<8x256xf32>
    %369 = arith.divf %367, %368 : vector<8x256xf32>
    %370 = vector.extract_strided_slice %369 {offsets = [0, 0], sizes = [8, 128], strides = [1, 1]} : vector<8x256xf32> to vector<8x128xf32>
    %371 = vector.extract_strided_slice %369 {offsets = [0, 128], sizes = [8, 128], strides = [1, 1]} : vector<8x256xf32> to vector<8x128xf32>
    %372 = vector.extract_strided_slice %361 {offsets = [0, 256], sizes = [8, 128], strides = [1, 1]} : vector<8x384xf32> to vector<8x128xf32>
    %373 = vector.extract_strided_slice %360 {offsets = [0, 256], sizes = [8, 128], strides = [1, 1]} : vector<8x384xf32> to vector<8x128xf32>
    %374 = arith.addf %373, %214 : vector<8x128xf32>
    %375 = arith.mulf %370, %374 : vector<8x128xf32>
    %376 = arith.addf %372, %375 : vector<8x128xf32>
    %377 = math.tanh %376 : vector<8x128xf32>
    %cst_121 = arith.constant 1.000000e+00 : f32
    %378 = vector.broadcast %cst_121 : f32 to vector<8x128xf32>
    %379 = arith.subf %378, %371 : vector<8x128xf32>
    %380 = arith.mulf %379, %377 : vector<8x128xf32>
    %381 = arith.mulf %371, %358 : vector<8x128xf32>
    %382 = arith.addf %380, %381 : vector<8x128xf32>
    %c48_122 = arith.constant 48 : index
    %c0_123 = arith.constant 0 : index
    %383 = vector.load %arg17[%c48_122, %c0_123] : memref<64x128xf32, #tpu.memory_space<vmem>>, vector<8x128xf32>
    tpu.vector_store %arg17[%c48_122, %c0_123], %382 {strides = array<i32>} : memref<64x128xf32, #tpu.memory_space<vmem>>, vector<8x128xf32>,
    %cst_124 = arith.constant dense<0.000000e+00> : vector<8x384xf32>
    %384 = tpu.matmul %382, %211, %cst_124 {dimension_numbers = #tpu.dot_dimension_numbers<[1], [0], [0], [1], [0, 0, 1, 1], [], []>} : vector<8x128xf32>, vector<128x384xf32>, vector<8x384xf32> -> vector<8x384xf32>
    %c56_125 = arith.constant 56 : index
    %c0_126 = arith.constant 0 : index
    %385 = vector.load %arg15[%c56_125, %c0_126] : memref<64x384xf32, #tpu.memory_space<vmem>>, vector<8x384xf32>
    %386 = vector.extract_strided_slice %385 {offsets = [0, 0], sizes = [8, 256], strides = [1, 1]} : vector<8x384xf32> to vector<8x256xf32>
    %387 = vector.extract_strided_slice %384 {offsets = [0, 0], sizes = [8, 256], strides = [1, 1]} : vector<8x384xf32> to vector<8x256xf32>
    %388 = arith.addf %386, %387 : vector<8x256xf32>
    %389 = arith.negf %388 : vector<8x256xf32>
    %390 = math.exp %389 : vector<8x256xf32>
    %cst_127 = arith.constant 1.000000e+00 : f32
    %391 = vector.broadcast %cst_127 : f32 to vector<8x256xf32>
    %392 = arith.addf %391, %390 : vector<8x256xf32>
    %393 = arith.divf %391, %392 : vector<8x256xf32>
    %394 = vector.extract_strided_slice %393 {offsets = [0, 0], sizes = [8, 128], strides = [1, 1]} : vector<8x256xf32> to vector<8x128xf32>
    %395 = vector.extract_strided_slice %393 {offsets = [0, 128], sizes = [8, 128], strides = [1, 1]} : vector<8x256xf32> to vector<8x128xf32>
    %396 = vector.extract_strided_slice %385 {offsets = [0, 256], sizes = [8, 128], strides = [1, 1]} : vector<8x384xf32> to vector<8x128xf32>
    %397 = vector.extract_strided_slice %384 {offsets = [0, 256], sizes = [8, 128], strides = [1, 1]} : vector<8x384xf32> to vector<8x128xf32>
    %398 = arith.addf %397, %214 : vector<8x128xf32>
    %399 = arith.mulf %394, %398 : vector<8x128xf32>
    %400 = arith.addf %396, %399 : vector<8x128xf32>
    %401 = math.tanh %400 : vector<8x128xf32>
    %cst_128 = arith.constant 1.000000e+00 : f32
    %402 = vector.broadcast %cst_128 : f32 to vector<8x128xf32>
    %403 = arith.subf %402, %395 : vector<8x128xf32>
    %404 = arith.mulf %403, %401 : vector<8x128xf32>
    %405 = arith.mulf %395, %382 : vector<8x128xf32>
    %406 = arith.addf %404, %405 : vector<8x128xf32>
    %c56_129 = arith.constant 56 : index
    %c0_130 = arith.constant 0 : index
    %407 = vector.load %arg17[%c56_129, %c0_130] : memref<64x128xf32, #tpu.memory_space<vmem>>, vector<8x128xf32>
    tpu.vector_store %arg17[%c56_129, %c0_130], %406 {strides = array<i32>} : memref<64x128xf32, #tpu.memory_space<vmem>>, vector<8x128xf32>,
    %c0_131 = arith.constant 0 : index
    %c0_132 = arith.constant 0 : index
    %408 = vector.load %arg17[%c0_131, %c0_132] : memref<64x128xf32, #tpu.memory_space<vmem>>, vector<64x128xf32>
    %c0_133 = arith.constant 0 : index
    %c0_134 = arith.constant 0 : index
    %409 = vector.load %arg9[%c0_133, %c0_134] : memref<128x128xf32, #tpu.memory_space<vmem>>, vector<128x128xf32>
    %cst_135 = arith.constant dense<0.000000e+00> : vector<64x128xf32>
    %410 = tpu.matmul %408, %409, %cst_135 {dimension_numbers = #tpu.dot_dimension_numbers<[1], [0], [0], [1], [0, 0, 1, 1], [], []>} : vector<64x128xf32>, vector<128x128xf32>, vector<64x128xf32> -> vector<64x128xf32>
    %c0_136 = arith.constant 0 : index
    %c0_137 = arith.constant 0 : index
    %411 = vector.load %arg10[%c0_136, %c0_137] : memref<1x128xf32, #tpu.memory_space<vmem>>, vector<1x128xf32>
    %412 = vector.broadcast %411 : vector<1x128xf32> to vector<64x128xf32>
    %413 = arith.addf %410, %412 : vector<64x128xf32>
    %414 = math.tanh %413 : vector<64x128xf32>
    %c0_138 = arith.constant 0 : index
    %c0_139 = arith.constant 0 : index
    %415 = vector.load %arg11[%c0_138, %c0_139] : memref<64x128xf32, #tpu.memory_space<vmem>>, vector<64x128xf32>
    %416 = arith.mulf %414, %415 : vector<64x128xf32>
    %cst_140 = arith.constant dense<0.000000e+00> : vector<64xf32>
    %417 = vector.multi_reduction <add>, %416, %cst_140 [1] : vector<64x128xf32> to vector<64xf32>
    %418 = vector.shape_cast %417 : vector<64xf32> to vector<1x64xf32>
    %c0_141 = arith.constant 0 : index
    %c0_142 = arith.constant 0 : index
    %419 = vector.load %arg13[%c0_141, %c0_142] : memref<1x64xf32, #tpu.memory_space<vmem>>, vector<1x64xf32>
    tpu.vector_store %arg13[%c0_141, %c0_142], %418 {strides = array<i32>} : memref<1x64xf32, #tpu.memory_space<vmem>>, vector<1x64xf32>,
    %c0_143 = arith.constant 0 : index
    %c0_144 = arith.constant 0 : index
    %420 = vector.load %arg12[%c0_143, %c0_144] : memref<64x128xf32, #tpu.memory_space<vmem>>, vector<64x128xf32>
    %421 = arith.mulf %414, %420 : vector<64x128xf32>
    %cst_145 = arith.constant dense<0.000000e+00> : vector<64xf32>
    %422 = vector.multi_reduction <add>, %421, %cst_145 [1] : vector<64x128xf32> to vector<64xf32>
    %423 = vector.shape_cast %422 : vector<64xf32> to vector<1x64xf32>
    %c0_146 = arith.constant 0 : index
    %c0_147 = arith.constant 0 : index
    %424 = vector.load %arg14[%c0_146, %c0_147] : memref<1x64xf32, #tpu.memory_space<vmem>>, vector<1x64xf32>
    tpu.vector_store %arg14[%c0_146, %c0_147], %423 {strides = array<i32>} : memref<1x64xf32, #tpu.memory_space<vmem>>, vector<1x64xf32>,
    return
  }
}

</mosaic_0001>

<llo_original>
// kernel: gru4rec_forward.1
$region0: #{gru4rec_forward.1}
  #allocation0 [shape = 'u32[]', space=smem, size = 0x4, offset = 0x4, fixed_abs, tag = 'smem constant byte address 0x4 - core index']
  #allocation1 [shape = 'u32[144,128]{1,0:T(1,128)}', space=vmem, size = 0x12000, scoped, tag = 'internal scratch']
  #allocation2 [shape = 'f32[64,384]{1,0:T(8,128)}', space=vmem, size = 0x18000, scoped, tag = 'scratch operand']
  #allocation3 [shape = 'f32[64,128]{1,0:T(8,128)}', space=vmem, size = 0x8000, scoped, tag = 'scratch operand']
  #allocation4 [shape = 'f32[64,128]{1,0:T(8,128)}', space=vmem, size = 0x8000, scoped, tag = 'scratch operand']
  %s0 = inlined_call_operand.vmem [shape: f32[64,128], index: 0, kind: input, shape index: {}]
  %s1 = inlined_call_operand.vmem [shape: f32[128,384], index: 1, kind: input, shape index: {}]
  %s2 = inlined_call_operand.vmem [shape: f32[128,384], index: 2, kind: input, shape index: {}]
  %s3 = inlined_call_operand.vmem [shape: f32[1,384], index: 3, kind: input, shape index: {}]
  %s4 = inlined_call_operand.vmem [shape: f32[1,128], index: 4, kind: input, shape index: {}]
  %s5 = inlined_call_operand.vmem [shape: f32[128,384], index: 5, kind: input, shape index: {}]
  %s6 = inlined_call_operand.vmem [shape: f32[128,384], index: 6, kind: input, shape index: {}]
  %s7 = inlined_call_operand.vmem [shape: f32[1,384], index: 7, kind: input, shape index: {}]
  %s8 = inlined_call_operand.vmem [shape: f32[1,128], index: 8, kind: input, shape index: {}]
  %s9 = inlined_call_operand.vmem [shape: f32[128,128], index: 9, kind: input, shape index: {}]
  %s10 = inlined_call_operand.vmem [shape: f32[1,128], index: 10, kind: input, shape index: {}]
  %s11 = inlined_call_operand.vmem [shape: f32[64,128], index: 11, kind: input, shape index: {}]
  %s12 = inlined_call_operand.vmem [shape: f32[64,128], index: 12, kind: input, shape index: {}]
  %s13 = inlined_call_operand.vmem [shape: f32[1,64], index: 13, kind: output, shape index: {0}]
  %s14 = inlined_call_operand.vmem [shape: f32[1,64], index: 14, kind: output, shape index: {1}]
  %15 = xla_tuple %s13, %s14
  %s16 = sld [smem:[#allocation0]]
  $region70: #{gru4rec_forward.1} parent=0
    _
  %s18 = ssub.s32 1, %s16
  %s19 = scalar_select 0, %s18, %s16
  // Predicated region
  $region2: #{gru4rec_forward.1} parent=0 // pred_check
    _
  $region3: #{gru4rec_forward.1} parent=0 // pred_check_branch
    %21 = sbr.rel (0) target = $region5
  $region4: #{gru4rec_forward.1} parent=0 // pred_region
    _
  $region5: #{gru4rec_forward.1} parent=0 // pred_fallthru
    _
  // Predicated region
  $region6: #{gru4rec_forward.1} parent=0 // pred_check
    _
  $region7: #{gru4rec_forward.1} parent=0 // pred_check_branch
    %23 = sbr.rel (0) target = $region9
  $region8: #{gru4rec_forward.1} parent=0 // pred_region
    _
  $region9: #{gru4rec_forward.1} parent=0 // pred_fallthru
    _
  // Predicated region
  $region10: #{gru4rec_forward.1} parent=0 // pred_check
    _
  $region11: #{gru4rec_forward.1} parent=0 // pred_check_branch
    %25 = sbr.rel (0) target = $region13
  $region12: #{gru4rec_forward.1} parent=0 // pred_region
    _
  $region13: #{gru4rec_forward.1} parent=0 // pred_fallthru
    _
  // Predicated region
  $region14: #{gru4rec_forward.1} parent=0 // pred_check
    _
  $region15: #{gru4rec_forward.1} parent=0 // pred_check_branch
    %27 = sbr.rel (0) target = $region17
  $region16: #{gru4rec_forward.1} parent=0 // pred_region
    _
  $region17: #{gru4rec_forward.1} parent=0 // pred_fallthru
    _
  // Predicated region
  $region18: #{gru4rec_forward.1} parent=0 // pred_check
    _
  $region19: #{gru4rec_forward.1} parent=0 // pred_check_branch
    %29 = sbr.rel (0) target = $region21
  $region20: #{gru4rec_forward.1} parent=0 // pred_region
    _
  $region21: #{gru4rec_forward.1} parent=0 // pred_fallthru
    _
  // Predicated region
  $region22: #{gru4rec_forward.1} parent=0 // pred_check
    _
  $region23: #{gru4rec_forward.1} parent=0 // pred_check_branch
    %31 = sbr.rel (0) target = $region25
  $region24: #{gru4rec_forward.1} parent=0 // pred_region
    _
  $region25: #{gru4rec_forward.1} parent=0 // pred_fallthru
    _
  // Predicated region
  $region26: #{gru4rec_forward.1} parent=0 // pred_check
    _
  $region27: #{gru4rec_forward.1} parent=0 // pred_check_branch
    %33 = sbr.rel (0) target = $region29
  $region28: #{gru4rec_forward.1} parent=0 // pred_region
    _
  $region29: #{gru4rec_forward.1} parent=0 // pred_fallthru
    _
  // Predicated region
  $region30: #{gru4rec_forward.1} parent=0 // pred_check
    _
  $region31: #{gru4rec_forward.1} parent=0 // pred_check_branch
    %35 = sbr.rel (0) target = $region33
  $region32: #{gru4rec_forward.1} parent=0 // pred_region
    _
  $region33: #{gru4rec_forward.1} parent=0 // pred_fallthru
    _
  // Predicated region
  $region34: #{gru4rec_forward.1} parent=0 // pred_check
    _
  $region35: #{gru4rec_forward.1} parent=0 // pred_check_branch
    %37 = sbr.rel (0) target = $region37
  $region36: #{gru4rec_forward.1} parent=0 // pred_region
    _
  $region37: #{gru4rec_forward.1} parent=0 // pred_fallthru
    _
  // Predicated region
  $region38: #{gru4rec_forward.1} parent=0 // pred_check
    _
  $region39: #{gru4rec_forward.1} parent=0 // pred_check_branch
    %39 = sbr.rel (0) target = $region41
  $region40: #{gru4rec_forward.1} parent=0 // pred_region
    _
  $region41: #{gru4rec_forward.1} parent=0 // pred_fallthru
    _
  // Predicated region
  $region42: #{gru4rec_forward.1} parent=0 // pred_check
    _
  $region43: #{gru4rec_forward.1} parent=0 // pred_check_branch
    %41 = sbr.rel (0) target = $region45
  $region44: #{gru4rec_forward.1} parent=0 // pred_region
    _
  $region45: #{gru4rec_forward.1} parent=0 // pred_fallthru
    _
  // Predicated region
  $region46: #{gru4rec_forward.1} parent=0 // pred_check
    _
  $region47: #{gru4rec_forward.1} parent=0 // pred_check_branch
    %43 = sbr.rel (0) target = $region49
  $region48: #{gru4rec_forward.1} parent=0 // pred_region
    _
  $region49: #{gru4rec_forward.1} parent=0 // pred_fallthru
    _
  // Predicated region
  $region50: #{gru4rec_forward.1} parent=0 // pred_check
    _
  $region51: #{gru4rec_forward.1} parent=0 // pred_check_branch
    %45 = sbr.rel (0) target = $region53
  $region52: #{gru4rec_forward.1} parent=0 // pred_region
    _
  $region53: #{gru4rec_forward.1} parent=0 // pred_fallthru
    _
  %v46 = vld [vmem:[%s0] sm:$0xff]
  %v47 = vld [vmem:[%s0 + $0x8] sm:$0xff]
  %v48 = vld [vmem:[%s0 + $0x10] sm:$0xff]
  %v49 = vld [vmem:[%s0 + $0x18] sm:$0xff]
  %v50 = vld [vmem:[%s0 + $0x20] sm:$0xff]
  %v51 = vld [vmem:[%s0 + $0x28] sm:$0xff]
  %v52 = vld [vmem:[%s0 + $0x30] sm:$0xff]
  %v53 = vld [vmem:[%s0 + $0x38] sm:$0xff]
  %v54 = vld [vmem:[%s1] sm:$0xff]
  %v55 = vld [vmem:[%s1 + $0x8] sm:$0xff]
  %v56 = vld [vmem:[%s1 + $0x10] sm:$0xff]
  %v57 = vld [vmem:[%s1 + $0x18] sm:$0xff]
  %v58 = vld [vmem:[%s1 + $0x20] sm:$0xff]
  %v59 = vld [vmem:[%s1 + $0x28] sm:$0xff]
  %v60 = vld [vmem:[%s1 + $0x30] sm:$0xff]
  %v61 = vld [vmem:[%s1 + $0x38] sm:$0xff]
  %v62 = vld [vmem:[%s1 + $0x40] sm:$0xff]
  %v63 = vld [vmem:[%s1 + $0x48] sm:$0xff]
  %v64 = vld [vmem:[%s1 + $0x50] sm:$0xff]
  %v65 = vld [vmem:[%s1 + $0x58] sm:$0xff]
  %v66 = vld [vmem:[%s1 + $0x60] sm:$0xff]
  %v67 = vld [vmem:[%s1 + $0x68] sm:$0xff]
  %v68 = vld [vmem:[%s1 + $0x70] sm:$0xff]
  %v69 = vld [vmem:[%s1 + $0x78] sm:$0xff]
  %v70 = vld [vmem:[%s1 + $0x80] sm:$0xff]
  %v71 = vld [vmem:[%s1 + $0x88] sm:$0xff]
  %v72 = vld [vmem:[%s1 + $0x90] sm:$0xff]
  %v73 = vld [vmem:[%s1 + $0x98] sm:$0xff]
  %v74 = vld [vmem:[%s1 + $0xa0] sm:$0xff]
  %v75 = vld [vmem:[%s1 + $0xa8] sm:$0xff]
  %v76 = vld [vmem:[%s1 + $0xb0] sm:$0xff]
  %v77 = vld [vmem:[%s1 + $0xb8] sm:$0xff]
  %v78 = vld [vmem:[%s1 + $0xc0] sm:$0xff]
  %v79 = vld [vmem:[%s1 + $0xc8] sm:$0xff]
  %v80 = vld [vmem:[%s1 + $0xd0] sm:$0xff]
  %v81 = vld [vmem:[%s1 + $0xd8] sm:$0xff]
  %v82 = vld [vmem:[%s1 + $0xe0] sm:$0xff]
  %v83 = vld [vmem:[%s1 + $0xe8] sm:$0xff]
  %v84 = vld [vmem:[%s1 + $0xf0] sm:$0xff]
  %v85 = vld [vmem:[%s1 + $0xf8] sm:$0xff]
  %v86 = vld [vmem:[%s1 + $0x100] sm:$0xff]
  %v87 = vld [vmem:[%s1 + $0x108] sm:$0xff]
  %v88 = vld [vmem:[%s1 + $0x110] sm:$0xff]
  %v89 = vld [vmem:[%s1 + $0x118] sm:$0xff]
  %v90 = vld [vmem:[%s1 + $0x120] sm:$0xff]
  %v91 = vld [vmem:[%s1 + $0x128] sm:$0xff]
  %v92 = vld [vmem:[%s1 + $0x130] sm:$0xff]
  %v93 = vld [vmem:[%s1 + $0x138] sm:$0xff]
  %v94 = vld [vmem:[%s1 + $0x140] sm:$0xff]
  %v95 = vld [vmem:[%s1 + $0x148] sm:$0xff]
  %v96 = vld [vmem:[%s1 + $0x150] sm:$0xff]
  %v97 = vld [vmem:[%s1 + $0x158] sm:$0xff]
  %v98 = vld [vmem:[%s1 + $0x160] sm:$0xff]
  %v99 = vld [vmem:[%s1 + $0x168] sm:$0xff]
  %v100 = vld [vmem:[%s1 + $0x170] sm:$0xff]
  %v101 = vld [vmem:[%s1 + $0x178] sm:$0xff]
  %v102 = vld [vmem:[%s3] sm:$0x7]
  %v104 = vlaneseq
  %v105 = vshrl.u32 %v104, 7
  %v106 = vsub.s32 0, %v105
  %v107 = vrot.slane %v102, %v106
  %v108 = vlaneseq
  %v109 = vshrl.u32 %v108, 7
  %v110 = vsub.s32 1, %v109
  %v111 = vrot.slane %v102, %v110
  %v112 = vlaneseq
  %v113 = vshrl.u32 %v112, 7
  %v114 = vsub.s32 2, %v113
  %v115 = vrot.slane %v102, %v114
  %119 = vmatprep.subr.mxu0 %v55
  %120 = vmatpush1.msra.mxu0 %v54
  %121 = vmatprep.subr.mxu0 %v58
  %122 = vmatpush1.msra.mxu0 %v57
  %123 = vmatprep.subr.mxu0 %v61
  %124 = vmatpush1.msra.mxu0 %v60
  %125 = vmatprep.subr.mxu0 %v64
  %126 = vmatpush1.msra.mxu0 %v63
  %127 = vmatprep.subr.mxu0 %v67
  %128 = vmatpush1.msra.mxu0 %v66
  %129 = vmatprep.subr.mxu0 %v70
  %130 = vmatpush1.msra.mxu0 %v69
  %131 = vmatprep.subr.mxu0 %v73
  %132 = vmatpush1.msra.mxu0 %v72
  %133 = vmatprep.subr.mxu0 %v76
  %134 = vmatpush1.msra.mxu0 %v75
  %135 = vmatprep.subr.mxu0 %v79
  %136 = vmatpush1.msra.mxu0 %v78
  %137 = vmatprep.subr.mxu0 %v82
  %138 = vmatpush1.msra.mxu0 %v81
  %139 = vmatprep.subr.mxu0 %v85
  %140 = vmatpush1.msra.mxu0 %v84
  %141 = vmatprep.subr.mxu0 %v88
  %142 = vmatpush1.msra.mxu0 %v87
  %143 = vmatprep.subr.mxu0 %v91
  %144 = vmatpush1.msra.mxu0 %v90
  %145 = vmatprep.subr.mxu0 %v94
  %146 = vmatpush1.msra.mxu0 %v93
  %147 = vmatprep.subr.mxu0 %v97
  %148 = vmatpush1.msra.mxu0 %v96
  %149 = vmatprep.subr.mxu0 %v100
  %150 = vmatpush1.msra.mxu0 %v99
  %151 = vmatprep.subr.mxu0 0.0
  %152 = vmatpush1.msra.mxu0 0.0
  %153 = vmatprep.subr.mxu0 0.0
  %154 = vmatpush1.msra.mxu0 0.0
  %155 = vmatprep.subr.mxu0 0.0
  %156 = vmatpush1.msra.mxu0 0.0
  %157 = vmatprep.subr.mxu0 0.0
  %158 = vmatpush1.msra.mxu0 0.0
  %159 = vmatprep.subr.mxu0 0.0
  %160 = vmatpush1.msra.mxu0 0.0
  %161 = vmatprep.subr.mxu0 0.0
  %162 = vmatpush1.msra.mxu0 0.0
  %163 = vmatprep.subr.mxu0 0.0
  %164 = vmatpush1.msra.mxu0 0.0
  %165 = vmatprep.subr.mxu0 0.0
  %166 = vmatpush1.msra.mxu0 0.0
  %167 = vmatprep.subr.mxu0 0.0
  %168 = vmatpush1.msra.mxu0 0.0
  %169 = vmatprep.subr.mxu0 0.0
  %170 = vmatpush1.msra.mxu0 0.0
  %171 = vmatprep.subr.mxu0 0.0
  %172 = vmatpush1.msra.mxu0 0.0
  %173 = vmatprep.subr.mxu0 0.0
  %174 = vmatpush1.msra.mxu0 0.0
  %175 = vmatprep.subr.mxu0 0.0
  %176 = vmatpush1.msra.mxu0 0.0
  %177 = vmatprep.subr.mxu0 0.0
  %178 = vmatpush1.msra.mxu0 0.0
  %179 = vmatprep.subr.mxu0 0.0
  %180 = vmatpush1.msra.mxu0 0.0
  %181 = vmatprep.subr.mxu0 0.0
  %182 = vmatpush1.msra.mxu0 0.0
  %183 = vmatprep.mubr.f32.mxu0 0.0
  %184 = vmatmul.mubr.f32.gmra.mrb[0].mxu0 %v46
  %v185 = vpop.f32.mrb[0].mxu0
  %v186 = vadd.f32 %v107, %v185
  %v187 = vpop.f32.mrb[0].mxu0
  %v188 = vadd.f32 %v111, %v187
  %189 = vmatprep.mubr.f32.mxu0 0.0
  %190 = vmatmul.mubr.f32.gmra.mrb[0].mxu0 %v47
  %v191 = vpop.f32.mrb[0].mxu0
  %v192 = vadd.f32 %v107, %v191
  %v193 = vpop.f32.mrb[0].mxu0
  %v194 = vadd.f32 %v111, %v193
  %195 = vmatprep.mubr.f32.mxu0 0.0
  %196 = vmatmul.mubr.f32.gmra.mrb[0].mxu0 %v48
  %v197 = vpop.f32.mrb[0].mxu0
  %v198 = vadd.f32 %v107, %v197
  %v199 = vpop.f32.mrb[0].mxu0
  %v200 = vadd.f32 %v111, %v199
  %201 = vmatprep.mubr.f32.mxu0 0.0
  %202 = vmatmul.mubr.f32.gmra.mrb[0].mxu0 %v49
  %v203 = vpop.f32.mrb[0].mxu0
  %v204 = vadd.f32 %v107, %v203
  %v205 = vpop.f32.mrb[0].mxu0
  %v206 = vadd.f32 %v111, %v205
  %207 = vmatprep.mubr.f32.mxu0 0.0
  %208 = vmatmul.mubr.f32.gmra.mrb[0].mxu0 %v50
  %v209 = vpop.f32.mrb[0].mxu0
  %v210 = vadd.f32 %v107, %v209
  %v211 = vpop.f32.mrb[0].mxu0
  %v212 = vadd.f32 %v111, %v211
  %213 = vmatprep.mubr.f32.mxu0 0.0
  %214 = vmatmul.mubr.f32.gmra.mrb[0].mxu0 %v51
  %v215 = vpop.f32.mrb[0].mxu0
  %v216 = vadd.f32 %v107, %v215
  %v217 = vpop.f32.mrb[0].mxu0
  %v218 = vadd.f32 %v111, %v217
  %219 = vmatprep.mubr.f32.mxu0 0.0
  %220 = vmatmul.mubr.f32.gmra.mrb[0].mxu0 %v52
  %v221 = vpop.f32.mrb[0].mxu0
  %v222 = vadd.f32 %v107, %v221
  %v223 = vpop.f32.mrb[0].mxu0
  %v224 = vadd.f32 %v111, %v223
  %225 = vmatprep.mubr.f32.mxu0 0.0
  %226 = vmatmul.mubr.f32.gmra.mrb[0].mxu0 %v53
  %v227 = vpop.f32.mrb[0].mxu0
  %v228 = vadd.f32 %v107, %v227
  %v229 = vpop.f32.mrb[0].mxu0
  %v230 = vadd.f32 %v111, %v229
  %231 = vdwg.mxu0
  %232 = vmatprep.subr.mxu0 0.0
  %233 = vmatpush1.msra.mxu0 %v56
  %234 = vmatprep.subr.mxu0 0.0
  %235 = vmatpush1.msra.mxu0 %v59
  %236 = vmatprep.subr.mxu0 0.0
  %237 = vmatpush1.msra.mxu0 %v62
  %238 = vmatprep.subr.mxu0 0.0
  %239 = vmatpush1.msra.mxu0 %v65
  %240 = vmatprep.subr.mxu0 0.0
  %241 = vmatpush1.msra.mxu0 %v68
  %242 = vmatprep.subr.mxu0 0.0
  %243 = vmatpush1.msra.mxu0 %v71
  %244 = vmatprep.subr.mxu0 0.0
  %245 = vmatpush1.msra.mxu0 %v74
  %246 = vmatprep.subr.mxu0 0.0
  %247 = vmatpush1.msra.mxu0 %v77
  %248 = vmatprep.subr.mxu0 0.0
  %249 = vmatpush1.msra.mxu0 %v80
  %250 = vmatprep.subr.mxu0 0.0
  %251 = vmatpush1.msra.mxu0 %v83
  %252 = vmatprep.subr.mxu0 0.0
  %253 = vmatpush1.msra.mxu0 %v86
  %254 = vmatprep.subr.mxu0 0.0
  %255 = vmatpush1.msra.mxu0 %v89
  %256 = vmatprep.subr.mxu0 0.0
  %257 = vmatpush1.msra.mxu0 %v92
  %258 = vmatprep.subr.mxu0 0.0
  %259 = vmatpush1.msra.mxu0 %v95
  %260 = vmatprep.subr.mxu0 0.0
  %261 = vmatpush1.msra.mxu0 %v98
  %262 = vmatprep.subr.mxu0 0.0
  %263 = vmatpush1.msra.mxu0 %v101
  %264 = vmatprep.subr.mxu0 0.0
  %265 = vmatpush1.msra.mxu0 0.0
  %266 = vmatprep.subr.mxu0 0.0
  %267 = vmatpush1.msra.mxu0 0.0
  %268 = vmatprep.subr.mxu0 0.0
  %269 = vmatpush1.msra.mxu0 0.0
  %270 = vmatprep.subr.mxu0 0.0
  %271 = vmatpush1.msra.mxu0 0.0
  %272 = vmatprep.subr.mxu0 0.0
  %273 = vmatpush1.msra.mxu0 0.0
  %274 = vmatprep.subr.mxu0 0.0
  %275 = vmatpush1.msra.mxu0 0.0
  %276 = vmatprep.subr.mxu0 0.0
  %277 = vmatpush1.msra.mxu0 0.0
  %278 = vmatprep.subr.mxu0 0.0
  %279 = vmatpush1.msra.mxu0 0.0
  %280 = vmatprep.subr.mxu0 0.0
  %281 = vmatpush1.msra.mxu0 0.0
  %282 = vmatprep.subr.mxu0 0.0
  %283 = vmatpush1.msra.mxu0 0.0
  %284 = vmatprep.subr.mxu0 0.0
  %285 = vmatpush1.msra.mxu0 0.0
  %286 = vmatprep.subr.mxu0 0.0
  %287 = vmatpush1.msra.mxu0 0.0
  %288 = vmatprep.subr.mxu0 0.0
  %289 = vmatpush1.msra.mxu0 0.0
  %290 = vmatprep.subr.mxu0 0.0
  %291 = vmatpush1.msra.mxu0 0.0
  %292 = vmatprep.subr.mxu0 0.0
  %293 = vmatpush1.msra.mxu0 0.0
  %294 = vmatprep.subr.mxu0 0.0
  %295 = vmatpush1.msra.mxu0 0.0
  %296 = vmatprep.mubr.f32.mxu0 0.0
  %297 = vmatmul.mubr.f32.gmra.mrb[0].mxu0 %v46
  %v298 = vpop.f32.mrb[0].mxu0
  %v299 = vadd.f32 %v115, %v298
  %v300 = vpop.f32.mrb[0].mxu0
  %301 = vmatprep.mubr.f32.mxu0 0.0
  %302 = vmatmul.mubr.f32.gmra.mrb[0].mxu0 %v47
  %v303 = vpop.f32.mrb[0].mxu0
  %v304 = vadd.f32 %v115, %v303
  %v305 = vpop.f32.mrb[0].mxu0
  %306 = vmatprep.mubr.f32.mxu0 0.0
  %307 = vmatmul.mubr.f32.gmra.mrb[0].mxu0 %v48
  %v308 = vpop.f32.mrb[0].mxu0
  %v309 = vadd.f32 %v115, %v308
  %v310 = vpop.f32.mrb[0].mxu0
  %311 = vmatprep.mubr.f32.mxu0 0.0
  %312 = vmatmul.mubr.f32.gmra.mrb[0].mxu0 %v49
  %v313 = vpop.f32.mrb[0].mxu0
  %v314 = vadd.f32 %v115, %v313
  %v315 = vpop.f32.mrb[0].mxu0
  %316 = vmatprep.mubr.f32.mxu0 0.0
  %317 = vmatmul.mubr.f32.gmra.mrb[0].mxu0 %v50
  %v318 = vpop.f32.mrb[0].mxu0
  %v319 = vadd.f32 %v115, %v318
  %v320 = vpop.f32.mrb[0].mxu0
  %321 = vmatprep.mubr.f32.mxu0 0.0
  %322 = vmatmul.mubr.f32.gmra.mrb[0].mxu0 %v51
  %v323 = vpop.f32.mrb[0].mxu0
  %v324 = vadd.f32 %v115, %v323
  %v325 = vpop.f32.mrb[0].mxu0
  %326 = vmatprep.mubr.f32.mxu0 0.0
  %327 = vmatmul.mubr.f32.gmra.mrb[0].mxu0 %v52
  %v328 = vpop.f32.mrb[0].mxu0
  %v329 = vadd.f32 %v115, %v328
  %v330 = vpop.f32.mrb[0].mxu0
  %331 = vmatprep.mubr.f32.mxu0 0.0
  %332 = vmatmul.mubr.f32.gmra.mrb[0].mxu0 %v53
  %v333 = vpop.f32.mrb[0].mxu0
  %v334 = vadd.f32 %v115, %v333
  %v335 = vpop.f32.mrb[0].mxu0
  %336 = vdwg.mxu0
  %337 = vst [vmem:[#allocation2] sm:$0xff] %v186
  %338 = vst [vmem:[#allocation2 + $0x8] sm:$0xff] %v188
  %339 = vst [vmem:[#allocation2 + $0x10] sm:$0xff] %v299
  %340 = vst [vmem:[#allocation2 + $0x18] sm:$0xff] %v192
  %341 = vst [vmem:[#allocation2 + $0x20] sm:$0xff] %v194
  %342 = vst [vmem:[#allocation2 + $0x28] sm:$0xff] %v304
  %343 = vst [vmem:[#allocation2 + $0x30] sm:$0xff] %v198
  %344 = vst [vmem:[#allocation2 + $0x38] sm:$0xff] %v200
  %345 = vst [vmem:[#allocation2 + $0x40] sm:$0xff] %v309
  %346 = vst [vmem:[#allocation2 + $0x48] sm:$0xff] %v204
  %347 = vst [vmem:[#allocation2 + $0x50] sm:$0xff] %v206
  %348 = vst [vmem:[#allocation2 + $0x58] sm:$0xff] %v314
  %349 = vst [vmem:[#allocation2 + $0x60] sm:$0xff] %v210
  %350 = vst [vmem:[#allocation2 + $0x68] sm:$0xff] %v212
  %351 = vst [vmem:[#allocation2 + $0x70] sm:$0xff] %v319
  %352 = vst [vmem:[#allocation2 + $0x78] sm:$0xff] %v216
  %353 = vst [vmem:[#allocation2 + $0x80] sm:$0xff] %v218
  %354 = vst [vmem:[#allocation2 + $0x88] sm:$0xff] %v324
  %355 = vst [vmem:[#allocation2 + $0x90] sm:$0xff] %v222
  %356 = vst [vmem:[#allocation2 + $0x98] sm:$0xff] %v224
  %357 = vst [vmem:[#allocation2 + $0xa0] sm:$0xff] %v329
  %358 = vst [vmem:[#allocation2 + $0xa8] sm:$0xff] %v228
  %359 = vst [vmem:[#allocation2 + $0xb0] sm:$0xff] %v230
  %360 = vst [vmem:[#allocation2 + $0xb8] sm:$0xff] %v334
  %v361 = vld [vmem:[%s2] sm:$0xff]
  %v362 = vld [vmem:[%s2 + $0x8] sm:$0xff]
  %v363 = vld [vmem:[%s2 + $0x10] sm:$0xff]
  %v364 = vld [vmem:[%s2 + $0x18] sm:$0xff]
  %v365 = vld [vmem:[%s2 + $0x20] sm:$0xff]
  %v366 = vld [vmem:[%s2 + $0x28] sm:$0xff]
  %v367 = vld [vmem:[%s2 + $0x30] sm:$0xff]
  %v368 = vld [vmem:[%s2 + $0x38] sm:$0xff]
  %v369 = vld [vmem:[%s2 + $0x40] sm:$0xff]
  %v370 = vld [vmem:[%s2 + $0x48] sm:$0xff]
  %v371 = vld [vmem:[%s2 + $0x50] sm:$0xff]
  %v372 = vld [vmem:[%s2 + $0x58] sm:$0xff]
  %v373 = vld [vmem:[%s2 + $0x60] sm:$0xff]
  %v374 = vld [vmem:[%s2 + $0x68] sm:$0xff]
  %v375 = vld [vmem:[%s2 + $0x70] sm:$0xff]
  %v376 = vld [vmem:[%s2 + $0x78] sm:$0xff]
  %v377 = vld [vmem:[%s2 + $0x80] sm:$0xff]
  %v378 = vld [vmem:[%s2 + $0x88] sm:$0xff]
  %v379 = vld [vmem:[%s2 + $0x90] sm:$0xff]
  %v380 = vld [vmem:[%s2 + $0x98] sm:$0xff]
  %v381 = vld [vmem:[%s2 + $0xa0] sm:$0xff]
  %v382 = vld [vmem:[%s2 + $0xa8] sm:$0xff]
  %v383 = vld [vmem:[%s2 + $0xb0] sm:$0xff]
  %v384 = vld [vmem:[%s2 + $0xb8] sm:$0xff]
  %v385 = vld [vmem:[%s2 + $0xc0] sm:$0xff]
  %v386 = vld [vmem:[%s2 + $0xc8] sm:$0xff]
  %v387 = vld [vmem:[%s2 + $0xd0] sm:$0xff]
  %v388 = vld [vmem:[%s2 + $0xd8] sm:$0xff]
  %v389 = vld [vmem:[%s2 + $0xe0] sm:$0xff]
  %v390 = vld [vmem:[%s2 + $0xe8] sm:$0xff]
  %v391 = vld [vmem:[%s2 + $0xf0] sm:$0xff]
  %v392 = vld [vmem:[%s2 + $0xf8] sm:$0xff]
  %v393 = vld [vmem:[%s2 + $0x100] sm:$0xff]
  %v394 = vld [vmem:[%s2 + $0x108] sm:$0xff]
  %v395 = vld [vmem:[%s2 + $0x110] sm:$0xff]
  %v396 = vld [vmem:[%s2 + $0x118] sm:$0xff]
  %v397 = vld [vmem:[%s2 + $0x120] sm:$0xff]
  %v398 = vld [vmem:[%s2 + $0x128] sm:$0xff]
  %v399 = vld [vmem:[%s2 + $0x130] sm:$0xff]
  %v400 = vld [vmem:[%s2 + $0x138] sm:$0xff]
  %v401 = vld [vmem:[%s2 + $0x140] sm:$0xff]
  %v402 = vld [vmem:[%s2 + $0x148] sm:$0xff]
  %v403 = vld [vmem:[%s2 + $0x150] sm:$0xff]
  %v404 = vld [vmem:[%s2 + $0x158] sm:$0xff]
  %v405 = vld [vmem:[%s2 + $0x160] sm:$0xff]
  %v406 = vld [vmem:[%s2 + $0x168] sm:$0xff]
  %v407 = vld [vmem:[%s2 + $0x170] sm:$0xff]
  %v408 = vld [vmem:[%s2 + $0x178] sm:$0xff]
  %v409 = vld [vmem:[%s4] sm:$0x1]
  %v411 = vlaneseq
  %v412 = vshrl.u32 %v411, 7
  %v413 = vsub.s32 0, %v412
  %v414 = vrot.slane %v409, %v413
  %416 = vmatprep.subr.mxu0 %v362
  %417 = vmatpush1.msra.mxu0 %v361
  %418 = vmatprep.subr.mxu0 %v365
  %419 = vmatpush1.msra.mxu0 %v364
  %420 = vmatprep.subr.mxu0 %v368
  %421 = vmatpush1.msra.mxu0 %v367
  %422 = vmatprep.subr.mxu0 %v371
  %423 = vmatpush1.msra.mxu0 %v370
  %424 = vmatprep.subr.mxu0 %v374
  %425 = vmatpush1.msra.mxu0 %v373
  %426 = vmatprep.subr.mxu0 %v377
  %427 = vmatpush1.msra.mxu0 %v376
  %428 = vmatprep.subr.mxu0 %v380
  %429 = vmatpush1.msra.mxu0 %v379
  %430 = vmatprep.subr.mxu0 %v383
  %431 = vmatpush1.msra.mxu0 %v382
  %432 = vmatprep.subr.mxu0 %v386
  %433 = vmatpush1.msra.mxu0 %v385
  %434 = vmatprep.subr.mxu0 %v389
  %435 = vmatpush1.msra.mxu0 %v388
  %436 = vmatprep.subr.mxu0 %v392
  %437 = vmatpush1.msra.mxu0 %v391
  %438 = vmatprep.subr.mxu0 %v395
  %439 = vmatpush1.msra.mxu0 %v394
  %440 = vmatprep.subr.mxu0 %v398
  %441 = vmatpush1.msra.mxu0 %v397
  %442 = vmatprep.subr.mxu0 %v401
  %443 = vmatpush1.msra.mxu0 %v400
  %444 = vmatprep.subr.mxu0 %v404
  %445 = vmatpush1.msra.mxu0 %v403
  %446 = vmatprep.subr.mxu0 %v407
  %447 = vmatpush1.msra.mxu0 %v406
  %448 = vmatprep.subr.mxu0 0.0
  %449 = vmatpush1.msra.mxu0 0.0
  %450 = vmatprep.subr.mxu0 0.0
  %451 = vmatpush1.msra.mxu0 0.0
  %452 = vmatprep.subr.mxu0 0.0
  %453 = vmatpush1.msra.mxu0 0.0
  %454 = vmatprep.subr.mxu0 0.0
  %455 = vmatpush1.msra.mxu0 0.0
  %456 = vmatprep.subr.mxu0 0.0
  %457 = vmatpush1.msra.mxu0 0.0
  %458 = vmatprep.subr.mxu0 0.0
  %459 = vmatpush1.msra.mxu0 0.0
  %460 = vmatprep.subr.mxu0 0.0
  %461 = vmatpush1.msra.mxu0 0.0
  %462 = vmatprep.subr.mxu0 0.0
  %463 = vmatpush1.msra.mxu0 0.0
  %464 = vmatprep.subr.mxu0 0.0
  %465 = vmatpush1.msra.mxu0 0.0
  %466 = vmatprep.subr.mxu0 0.0
  %467 = vmatpush1.msra.mxu0 0.0
  %468 = vmatprep.subr.mxu0 0.0
  %469 = vmatpush1.msra.mxu0 0.0
  %470 = vmatprep.subr.mxu0 0.0
  %471 = vmatpush1.msra.mxu0 0.0
  %472 = vmatprep.subr.mxu0 0.0
  %473 = vmatpush1.msra.mxu0 0.0
  %474 = vmatprep.subr.mxu0 0.0
  %475 = vmatpush1.msra.mxu0 0.0
  %476 = vmatprep.subr.mxu0 0.0
  %477 = vmatpush1.msra.mxu0 0.0
  %478 = vmatprep.subr.mxu0 0.0
  %479 = vmatpush1.msra.mxu0 0.0
  %480 = vmatprep.mubr.f32.mxu0 0.0
  %481 = vmatmul.mubr.f32.gmra.mrb[0].mxu0 0.0
  %v482 = vpop.f32.mrb[0].mxu0
  %v483 = vadd.f32 0.0, %v482
  %v484 = vpop.f32.mrb[0].mxu0
  %v485 = vadd.f32 0.0, %v484
  %486 = vdwg.mxu0
  %487 = vmatprep.subr.mxu0 0.0
  %488 = vmatpush1.msra.mxu0 %v363
  %489 = vmatprep.subr.mxu0 0.0
  %490 = vmatpush1.msra.mxu0 %v366
  %491 = vmatprep.subr.mxu0 0.0
  %492 = vmatpush1.msra.mxu0 %v369
  %493 = vmatprep.subr.mxu0 0.0
  %494 = vmatpush1.msra.mxu0 %v372
  %495 = vmatprep.subr.mxu0 0.0
  %496 = vmatpush1.msra.mxu0 %v375
  %497 = vmatprep.subr.mxu0 0.0
  %498 = vmatpush1.msra.mxu0 %v378
  %499 = vmatprep.subr.mxu0 0.0
  %500 = vmatpush1.msra.mxu0 %v381
  %501 = vmatprep.subr.mxu0 0.0
  %502 = vmatpush1.msra.mxu0 %v384
  %503 = vmatprep.subr.mxu0 0.0
  %504 = vmatpush1.msra.mxu0 %v387
  %505 = vmatprep.subr.mxu0 0.0
  %506 = vmatpush1.msra.mxu0 %v390
  %507 = vmatprep.subr.mxu0 0.0
  %508 = vmatpush1.msra.mxu0 %v393
  %509 = vmatprep.subr.mxu0 0.0
  %510 = vmatpush1.msra.mxu0 %v396
  %511 = vmatprep.subr.mxu0 0.0
  %512 = vmatpush1.msra.mxu0 %v399
  %513 = vmatprep.subr.mxu0 0.0
  %514 = vmatpush1.msra.mxu0 %v402
  %515 = vmatprep.subr.mxu0 0.0
  %516 = vmatpush1.msra.mxu0 %v405
  %517 = vmatprep.subr.mxu0 0.0
  %518 = vmatpush1.msra.mxu0 %v408
  %519 = vmatprep.subr.mxu0 0.0
  %520 = vmatpush1.msra.mxu0 0.0
  %521 = vmatprep.subr.mxu0 0.0
  %522 = vmatpush1.msra.mxu0 0.0
  %523 = vmatprep.subr.mxu0 0.0
  %524 = vmatpush1.msra.mxu0 0.0
  %525 = vmatprep.subr.mxu0 0.0
  %526 = vmatpush1.msra.mxu0 0.0
  %527 = vmatprep.subr.mxu0 0.0
  %528 = vmatpush1.msra.mxu0 0.0
  %529 = vmatprep.subr.mxu0 0.0
  %530 = vmatpush1.msra.mxu0 0.0
  %531 = vmatprep.subr.mxu0 0.0
  %532 = vmatpush1.msra.mxu0 0.0
  %533 = vmatprep.subr.mxu0 0.0
  %534 = vmatpush1.msra.mxu0 0.0
  %535 = vmatprep.subr.mxu0 0.0
  %536 = vmatpush1.msra.mxu0 0.0
  %537 = vmatprep.subr.mxu0 0.0
  %538 = vmatpush1.msra.mxu0 0.0
  %539 = vmatprep.subr.mxu0 0.0
  %540 = vmatpush1.msra.mxu0 0.0
  %541 = vmatprep.subr.mxu0 0.0
  %542 = vmatpush1.msra.mxu0 0.0
  %543 = vmatprep.subr.mxu0 0.0
  %544 = vmatpush1.msra.mxu0 0.0
  %545 = vmatprep.subr.mxu0 0.0
  %546 = vmatpush1.msra.mxu0 0.0
  %547 = vmatprep.subr.mxu0 0.0
  %548 = vmatpush1.msra.mxu0 0.0
  %549 = vmatprep.subr.mxu0 0.0
  %550 = vmatpush1.msra.mxu0 0.0
  %551 = vmatprep.mubr.f32.mxu0 0.0
  %552 = vmatmul.mubr.f32.gmra.mrb[0].mxu0 0.0
  %v553 = vpop.f32.mrb[0].mxu0
  %v554 = vadd.f32 0.0, %v553
  %v555 = vpop.f32.mrb[0].mxu0
  %556 = vdwg.mxu0
  %v557 = vld [vmem:[#allocation2] sm:$0xff]
  %v558 = vld [vmem:[#allocation2 + $0x8] sm:$0xff]
  %v559 = vld [vmem:[#allocation2 + $0x10] sm:$0xff]
  %v560 = vadd.f32 %v557, %v483
  %v561 = vadd.f32 %v558, %v485
  %v562 = vxor.u32 %v560, 2147483648
  %v563 = vxor.u32 %v561, 2147483648
  %v564 = vmul.f32 %v562, 1.442695
  %v565 = vpow.pop %v564
  %v566 = vmul.f32 %v563, 1.442695
  %v567 = vpow.pop %v566
  %v568 = vadd.f32 %v565, 1.0
  %v569 = vadd.f32 %v567, 1.0
  %v570 = vrcp.pop %v568
  %v571 = vmul.f32 1.0, %v570
  %v572 = vrcp.pop %v569
  %v573 = vmul.f32 1.0, %v572
  %v574 = vadd.f32 %v554, %v414
  %v575 = vmul.f32 %v571, %v574
  %v576 = vadd.f32 %v559, %v575
  %v577 = vtanh.pop %v576
  %v578 = vsub.f32 1.0, %v573
  %v579 = vmul.f32 %v578, %v577
  %v580 = vmul.f32 %v573, 0.0
  %v581 = vadd.f32 %v579, %v580
  %582 = vst [vmem:[#allocation3] sm:$0xff] %v581
  %583 = vmatprep.subr.mxu0 %v362
  %584 = vmatpush1.msra.mxu0 %v361
  %585 = vmatprep.subr.mxu0 %v365
  %586 = vmatpush1.msra.mxu0 %v364
  %587 = vmatprep.subr.mxu0 %v368
  %588 = vmatpush1.msra.mxu0 %v367
  %589 = vmatprep.subr.mxu0 %v371
  %590 = vmatpush1.msra.mxu0 %v370
  %591 = vmatprep.subr.mxu0 %v374
  %592 = vmatpush1.msra.mxu0 %v373
  %593 = vmatprep.subr.mxu0 %v377
  %594 = vmatpush1.msra.mxu0 %v376
  %595 = vmatprep.subr.mxu0 %v380
  %596 = vmatpush1.msra.mxu0 %v379
  %597 = vmatprep.subr.mxu0 %v383
  %598 = vmatpush1.msra.mxu0 %v382
  %599 = vmatprep.subr.mxu0 %v386
  %600 = vmatpush1.msra.mxu0 %v385
  %601 = vmatprep.subr.mxu0 %v389
  %602 = vmatpush1.msra.mxu0 %v388
  %603 = vmatprep.subr.mxu0 %v392
  %604 = vmatpush1.msra.mxu0 %v391
  %605 = vmatprep.subr.mxu0 %v395
  %606 = vmatpush1.msra.mxu0 %v394
  %607 = vmatprep.subr.mxu0 %v398
  %608 = vmatpush1.msra.mxu0 %v397
  %609 = vmatprep.subr.mxu0 %v401
  %610 = vmatpush1.msra.mxu0 %v400
  %611 = vmatprep.subr.mxu0 %v404
  %612 = vmatpush1.msra.mxu0 %v403
  %613 = vmatprep.subr.mxu0 %v407
  %614 = vmatpush1.msra.mxu0 %v406
  %615 = vmatprep.subr.mxu0 0.0
  %616 = vmatpush1.msra.mxu0 0.0
  %617 = vmatprep.subr.mxu0 0.0
  %618 = vmatpush1.msra.mxu0 0.0
  %619 = vmatprep.subr.mxu0 0.0
  %620 = vmatpush1.msra.mxu0 0.0
  %621 = vmatprep.subr.mxu0 0.0
  %622 = vmatpush1.msra.mxu0 0.0
  %623 = vmatprep.subr.mxu0 0.0
  %624 = vmatpush1.msra.mxu0 0.0
  %625 = vmatprep.subr.mxu0 0.0
  %626 = vmatpush1.msra.mxu0 0.0
  %627 = vmatprep.subr.mxu0 0.0
  %628 = vmatpush1.msra.mxu0 0.0
  %629 = vmatprep.subr.mxu0 0.0
  %630 = vmatpush1.msra.mxu0 0.0
  %631 = vmatprep.subr.mxu0 0.0
  %632 = vmatpush1.msra.mxu0 0.0
  %633 = vmatprep.subr.mxu0 0.0
  %634 = vmatpush1.msra.mxu0 0.0
  %635 = vmatprep.subr.mxu0 0.0
  %636 = vmatpush1.msra.mxu0 0.0
  %637 = vmatprep.subr.mxu0 0.0
  %638 = vmatpush1.msra.mxu0 0.0
  %639 = vmatprep.subr.mxu0 0.0
  %640 = vmatpush1.msra.mxu0 0.0
  %641 = vmatprep.subr.mxu0 0.0
  %642 = vmatpush1.msra.mxu0 0.0
  %643 = vmatprep.subr.mxu0 0.0
  %644 = vmatpush1.msra.mxu0 0.0
  %645 = vmatprep.subr.mxu0 0.0
  %646 = vmatpush1.msra.mxu0 0.0
  %647 = vmatprep.mubr.f32.mxu0 0.0
  %648 = vmatmul.mubr.f32.gmra.mrb[0].mxu0 %v581
  %v649 = vpop.f32.mrb[0].mxu0
  %v650 = vadd.f32 0.0, %v649
  %v651 = vpop.f32.mrb[0].mxu0
  %v652 = vadd.f32 0.0, %v651
  %653 = vdwg.mxu0
  %654 = vmatprep.subr.mxu0 0.0
  %655 = vmatpush1.msra.mxu0 %v363
  %656 = vmatprep.subr.mxu0 0.0
  %657 = vmatpush1.msra.mxu0 %v366
  %658 = vmatprep.subr.mxu0 0.0
  %659 = vmatpush1.msra.mxu0 %v369
  %660 = vmatprep.subr.mxu0 0.0
  %661 = vmatpush1.msra.mxu0 %v372
  %662 = vmatprep.subr.mxu0 0.0
  %663 = vmatpush1.msra.mxu0 %v375
  %664 = vmatprep.subr.mxu0 0.0
  %665 = vmatpush1.msra.mxu0 %v378
  %666 = vmatprep.subr.mxu0 0.0
  %667 = vmatpush1.msra.mxu0 %v381
  %668 = vmatprep.subr.mxu0 0.0
  %669 = vmatpush1.msra.mxu0 %v384
  %670 = vmatprep.subr.mxu0 0.0
  %671 = vmatpush1.msra.mxu0 %v387
  %672 = vmatprep.subr.mxu0 0.0
  %673 = vmatpush1.msra.mxu0 %v390
  %674 = vmatprep.subr.mxu0 0.0
  %675 = vmatpush1.msra.mxu0 %v393
  %676 = vmatprep.subr.mxu0 0.0
  %677 = vmatpush1.msra.mxu0 %v396
  %678 = vmatprep.subr.mxu0 0.0
  %679 = vmatpush1.msra.mxu0 %v399
  %680 = vmatprep.subr.mxu0 0.0
  %681 = vmatpush1.msra.mxu0 %v402
  %682 = vmatprep.subr.mxu0 0.0
  %683 = vmatpush1.msra.mxu0 %v405
  %684 = vmatprep.subr.mxu0 0.0
  %685 = vmatpush1.msra.mxu0 %v408
  %686 = vmatprep.subr.mxu0 0.0
  %687 = vmatpush1.msra.mxu0 0.0
  %688 = vmatprep.subr.mxu0 0.0
  %689 = vmatpush1.msra.mxu0 0.0
  %690 = vmatprep.subr.mxu0 0.0
  %691 = vmatpush1.msra.mxu0 0.0
  %692 = vmatprep.subr.mxu0 0.0
  %693 = vmatpush1.msra.mxu0 0.0
  %694 = vmatprep.subr.mxu0 0.0
  %695 = vmatpush1.msra.mxu0 0.0
  %696 = vmatprep.subr.mxu0 0.0
  %697 = vmatpush1.msra.mxu0 0.0
  %698 = vmatprep.subr.mxu0 0.0
  %699 = vmatpush1.msra.mxu0 0.0
  %700 = vmatprep.subr.mxu0 0.0
  %701 = vmatpush1.msra.mxu0 0.0
  %702 = vmatprep.subr.mxu0 0.0
  %703 = vmatpush1.msra.mxu0 0.0
  %704 = vmatprep.subr.mxu0 0.0
  %705 = vmatpush1.msra.mxu0 0.0
  %706 = vmatprep.subr.mxu0 0.0
  %707 = vmatpush1.msra.mxu0 0.0
  %708 = vmatprep.subr.mxu0 0.0
  %709 = vmatpush1.msra.mxu0 0.0
  %710 = vmatprep.subr.mxu0 0.0
  %711 = vmatpush1.msra.mxu0 0.0
  %712 = vmatprep.subr.mxu0 0.0
  %713 = vmatpush1.msra.mxu0 0.0
  %714 = vmatprep.subr.mxu0 0.0
  %715 = vmatpush1.msra.mxu0 0.0
  %716 = vmatprep.subr.mxu0 0.0
  %717 = vmatpush1.msra.mxu0 0.0
  %718 = vmatprep.mubr.f32.mxu0 0.0
  %719 = vmatmul.mubr.f32.gmra.mrb[0].mxu0 %v581
  %v720 = vpop.f32.mrb[0].mxu0
  %v721 = vadd.f32 0.0, %v720
  %v722 = vpop.f32.mrb[0].mxu0
  %723 = vdwg.mxu0
  %v724 = vld [vmem:[#allocation2 + $0x18] sm:$0xff]
  %v725 = vld [vmem:[#allocation2 + $0x20] sm:$0xff]
  %v726 = vld [vmem:[#allocation2 + $0x28] sm:$0xff]
  %v727 = vadd.f32 %v724, %v650
  %v728 = vadd.f32 %v725, %v652
  %v729 = vxor.u32 %v727, 2147483648
  %v730 = vxor.u32 %v728, 2147483648
  %v731 = vmul.f32 %v729, 1.442695
  %v732 = vpow.pop %v731
  %v733 = vmul.f32 %v730, 1.442695
  %v734 = vpow.pop %v733
  %v735 = vadd.f32 %v732, 1.0
  %v736 = vadd.f32 %v734, 1.0
  %v737 = vrcp.pop %v735
  %v738 = vmul.f32 1.0, %v737
  %v739 = vrcp.pop %v736
  %v740 = vmul.f32 1.0, %v739
  %v741 = vadd.f32 %v721, %v414
  %v742 = vmul.f32 %v738, %v741
  %v743 = vadd.f32 %v726, %v742
  %v744 = vtanh.pop %v743
  %v745 = vsub.f32 1.0, %v740
  %v746 = vmul.f32 %v745, %v744
  %v747 = vmul.f32 %v740, %v581
  %v748 = vadd.f32 %v746, %v747
  %749 = vst [vmem:[#allocation3 + $0x8] sm:$0xff] %v748
  %750 = vmatprep.subr.mxu0 %v362
  %751 = vmatpush1.msra.mxu0 %v361
  %752 = vmatprep.subr.mxu0 %v365
  %753 = vmatpush1.msra.mxu0 %v364
  %754 = vmatprep.subr.mxu0 %v368
  %755 = vmatpush1.msra.mxu0 %v367
  %756 = vmatprep.subr.mxu0 %v371
  %757 = vmatpush1.msra.mxu0 %v370
  %758 = vmatprep.subr.mxu0 %v374
  %759 = vmatpush1.msra.mxu0 %v373
  %760 = vmatprep.subr.mxu0 %v377
  %761 = vmatpush1.msra.mxu0 %v376
  %762 = vmatprep.subr.mxu0 %v380
  %763 = vmatpush1.msra.mxu0 %v379
  %764 = vmatprep.subr.mxu0 %v383
  %765 = vmatpush1.msra.mxu0 %v382
  %766 = vmatprep.subr.mxu0 %v386
  %767 = vmatpush1.msra.mxu0 %v385
  %768 = vmatprep.subr.mxu0 %v389
  %769 = vmatpush1.msra.mxu0 %v388
  %770 = vmatprep.subr.mxu0 %v392
  %771 = vmatpush1.msra.mxu0 %v391
  %772 = vmatprep.subr.mxu0 %v395
  %773 = vmatpush1.msra.mxu0 %v394
  %774 = vmatprep.subr.mxu0 %v398
  %775 = vmatpush1.msra.mxu0 %v397
  %776 = vmatprep.subr.mxu0 %v401
  %777 = vmatpush1.msra.mxu0 %v400
  %778 = vmatprep.subr.mxu0 %v404
  %779 = vmatpush1.msra.mxu0 %v403
  %780 = vmatprep.subr.mxu0 %v407
  %781 = vmatpush1.msra.mxu0 %v406
  %782 = vmatprep.subr.mxu0 0.0
  %783 = vmatpush1.msra.mxu0 0.0
  %784 = vmatprep.subr.mxu0 0.0
  %785 = vmatpush1.msra.mxu0 0.0
  %786 = vmatprep.subr.mxu0 0.0
  %787 = vmatpush1.msra.mxu0 0.0
  %788 = vmatprep.subr.mxu0 0.0
  %789 = vmatpush1.msra.mxu0 0.0
  %790 = vmatprep.subr.mxu0 0.0
  %791 = vmatpush1.msra.mxu0 0.0
  %792 = vmatprep.subr.mxu0 0.0
  %793 = vmatpush1.msra.mxu0 0.0
  %794 = vmatprep.subr.mxu0 0.0
  %795 = vmatpush1.msra.mxu0 0.0
  %796 = vmatprep.subr.mxu0 0.0
  %797 = vmatpush1.msra.mxu0 0.0
  %798 = vmatprep.subr.mxu0 0.0
  %799 = vmatpush1.msra.mxu0 0.0
  %800 = vmatprep.subr.mxu0 0.0
  %801 = vmatpush1.msra.mxu0 0.0
  %802 = vmatprep.subr.mxu0 0.0
  %803 = vmatpush1.msra.mxu0 0.0
  %804 = vmatprep.subr.mxu0 0.0
  %805 = vmatpush1.msra.mxu0 0.0
  %806 = vmatprep.subr.mxu0 0.0
  %807 = vmatpush1.msra.mxu0 0.0
  %808 = vmatprep.subr.mxu0 0.0
  %809 = vmatpush1.msra.mxu0 0.0
  %810 = vmatprep.subr.mxu0 0.0
  %811 = vmatpush1.msra.mxu0 0.0
  %812 = vmatprep.subr.mxu0 0.0
  %813 = vmatpush1.msra.mxu0 0.0
  %814 = vmatprep.mubr.f32.mxu0 0.0
  %815 = vmatmul.mubr.f32.gmra.mrb[0].mxu0 %v748
  %v816 = vpop.f32.mrb[0].mxu0
  %v817 = vadd.f32 0.0, %v816
  %v818 = vpop.f32.mrb[0].mxu0
  %v819 = vadd.f32 0.0, %v818
  %820 = vdwg.mxu0
  %821 = vmatprep.subr.mxu0 0.0
  %822 = vmatpush1.msra.mxu0 %v363
  %823 = vmatprep.subr.mxu0 0.0
  %824 = vmatpush1.msra.mxu0 %v366
  %825 = vmatprep.subr.mxu0 0.0
  %826 = vmatpush1.msra.mxu0 %v369
  %827 = vmatprep.subr.mxu0 0.0
  %828 = vmatpush1.msra.mxu0 %v372
  %829 = vmatprep.subr.mxu0 0.0
  %830 = vmatpush1.msra.mxu0 %v375
  %831 = vmatprep.subr.mxu0 0.0
  %832 = vmatpush1.msra.mxu0 %v378
  %833 = vmatprep.subr.mxu0 0.0
  %834 = vmatpush1.msra.mxu0 %v381
  %835 = vmatprep.subr.mxu0 0.0
  %836 = vmatpush1.msra.mxu0 %v384
  %837 = vmatprep.subr.mxu0 0.0
  %838 = vmatpush1.msra.mxu0 %v387
  %839 = vmatprep.subr.mxu0 0.0
  %840 = vmatpush1.msra.mxu0 %v390
  %841 = vmatprep.subr.mxu0 0.0
  %842 = vmatpush1.msra.mxu0 %v393
  %843 = vmatprep.subr.mxu0 0.0
  %844 = vmatpush1.msra.mxu0 %v396
  %845 = vmatprep.subr.mxu0 0.0
  %846 = vmatpush1.msra.mxu0 %v399
  %847 = vmatprep.subr.mxu0 0.0
  %848 = vmatpush1.msra.mxu0 %v402
  %849 = vmatprep.subr.mxu0 0.0
  %850 = vmatpush1.msra.mxu0 %v405
  %851 = vmatprep.subr.mxu0 0.0
  %852 = vmatpush1.msra.mxu0 %v408
  %853 = vmatprep.subr.mxu0 0.0
  %854 = vmatpush1.msra.mxu0 0.0
  %855 = vmatprep.subr.mxu0 0.0
  %856 = vmatpush1.msra.mxu0 0.0
  %857 = vmatprep.subr.mxu0 0.0
  %858 = vmatpush1.msra.mxu0 0.0
  %859 = vmatprep.subr.mxu0 0.0
  %860 = vmatpush1.msra.mxu0 0.0
  %861 = vmatprep.subr.mxu0 0.0
  %862 = vmatpush1.msra.mxu0 0.0
  %863 = vmatprep.subr.mxu0 0.0
  %864 = vmatpush1.msra.mxu0 0.0
  %865 = vmatprep.subr.mxu0 0.0
  %866 = vmatpush1.msra.mxu0 0.0
  %867 = vmatprep.subr.mxu0 0.0
  %868 = vmatpush1.msra.mxu0 0.0
  %869 = vmatprep.subr.mxu0 0.0
  %870 = vmatpush1.msra.mxu0 0.0
  %871 = vmatprep.subr.mxu0 0.0
  %872 = vmatpush1.msra.mxu0 0.0
  %873 = vmatprep.subr.mxu0 0.0
  %874 = vmatpush1.msra.mxu0 0.0
  %875 = vmatprep.subr.mxu0 0.0
  %876 = vmatpush1.msra.mxu0 0.0
  %877 = vmatprep.subr.mxu0 0.0
  %878 = vmatpush1.msra.mxu0 0.0
  %879 = vmatprep.subr.mxu0 0.0
  %880 = vmatpush1.msra.mxu0 0.0
  %881 = vmatprep.subr.mxu0 0.0
  %882 = vmatpush1.msra.mxu0 0.0
  %883 = vmatprep.subr.mxu0 0.0
  %884 = vmatpush1.msra.mxu0 0.0
  %885 = vmatprep.mubr.f32.mxu0 0.0
  %886 = vmatmul.mubr.f32.gmra.mrb[0].mxu0 %v748
  %v887 = vpop.f32.mrb[0].mxu0
  %v888 = vadd.f32 0.0, %v887
  %v889 = vpop.f32.mrb[0].mxu0
  %890 = vdwg.mxu0
  %v891 = vld [vmem:[#allocation2 + $0x30] sm:$0xff]
  %v892 = vld [vmem:[#allocation2 + $0x38] sm:$0xff]
  %v893 = vld [vmem:[#allocation2 + $0x40] sm:$0xff]
  %v894 = vadd.f32 %v891, %v817
  %v895 = vadd.f32 %v892, %v819
  %v896 = vxor.u32 %v894, 2147483648
  %v897 = vxor.u32 %v895, 2147483648
  %v898 = vmul.f32 %v896, 1.442695
  %v899 = vpow.pop %v898
  %v900 = vmul.f32 %v897, 1.442695
  %v901 = vpow.pop %v900
  %v902 = vadd.f32 %v899, 1.0
  %v903 = vadd.f32 %v901, 1.0
  %v904 = vrcp.pop %v902
  %v905 = vmul.f32 1.0, %v904
  %v906 = vrcp.pop %v903
  %v907 = vmul.f32 1.0, %v906
  %v908 = vadd.f32 %v888, %v414
  %v909 = vmul.f32 %v905, %v908
  %v910 = vadd.f32 %v893, %v909
  %v911 = vtanh.pop %v910
  %v912 = vsub.f32 1.0, %v907
  %v913 = vmul.f32 %v912, %v911
  %v914 = vmul.f32 %v907, %v748
  %v915 = vadd.f32 %v913, %v914
  %916 = vst [vmem:[#allocation3 + $0x10] sm:$0xff] %v915
  %917 = vmatprep.subr.mxu0 %v362
  %918 = vmatpush1.msra.mxu0 %v361
  %919 = vmatprep.subr.mxu0 %v365
  %920 = vmatpush1.msra.mxu0 %v364
  %921 = vmatprep.subr.mxu0 %v368
  %922 = vmatpush1.msra.mxu0 %v367
  %923 = vmatprep.subr.mxu0 %v371
  %924 = vmatpush1.msra.mxu0 %v370
  %925 = vmatprep.subr.mxu0 %v374
  %926 = vmatpush1.msra.mxu0 %v373
  %927 = vmatprep.subr.mxu0 %v377
  %928 = vmatpush1.msra.mxu0 %v376
  %929 = vmatprep.subr.mxu0 %v380
  %930 = vmatpush1.msra.mxu0 %v379
  %931 = vmatprep.subr.mxu0 %v383
  %932 = vmatpush1.msra.mxu0 %v382
  %933 = vmatprep.subr.mxu0 %v386
  %934 = vmatpush1.msra.mxu0 %v385
  %935 = vmatprep.subr.mxu0 %v389
  %936 = vmatpush1.msra.mxu0 %v388
  %937 = vmatprep.subr.mxu0 %v392
  %938 = vmatpush1.msra.mxu0 %v391
  %939 = vmatprep.subr.mxu0 %v395
  %940 = vmatpush1.msra.mxu0 %v394
  %941 = vmatprep.subr.mxu0 %v398
  %942 = vmatpush1.msra.mxu0 %v397
  %943 = vmatprep.subr.mxu0 %v401
  %944 = vmatpush1.msra.mxu0 %v400
  %945 = vmatprep.subr.mxu0 %v404
  %946 = vmatpush1.msra.mxu0 %v403
  %947 = vmatprep.subr.mxu0 %v407
  %948 = vmatpush1.msra.mxu0 %v406
  %949 = vmatprep.subr.mxu0 0.0
  %950 = vmatpush1.msra.mxu0 0.0
  %951 = vmatprep.subr.mxu0 0.0
  %952 = vmatpush1.msra.mxu0 0.0
  %953 = vmatprep.subr.mxu0 0.0
  %954 = vmatpush1.msra.mxu0 0.0
  %955 = vmatprep.subr.mxu0 0.0
  %956 = vmatpush1.msra.mxu0 0.0
  %957 = vmatprep.subr.mxu0 0.0
  %958 = vmatpush1.msra.mxu0 0.0
  %959 = vmatprep.subr.mxu0 0.0
  %960 = vmatpush1.msra.mxu0 0.0
  %961 = vmatprep.subr.mxu0 0.0
  %962 = vmatpush1.msra.mxu0 0.0
  %963 = vmatprep.subr.mxu0 0.0
  %964 = vmatpush1.msra.mxu0 0.0
  %965 = vmatprep.subr.mxu0 0.0
  %966 = vmatpush1.msra.mxu0 0.0
  %967 = vmatprep.subr.mxu0 0.0
  %968 = vmatpush1.msra.mxu0 0.0
  %969 = vmatprep.subr.mxu0 0.0
  %970 = vmatpush1.msra.mxu0 0.0
  %971 = vmatprep.subr.mxu0 0.0
  %972 = vmatpush1.msra.mxu0 0.0
  %973 = vmatprep.subr.mxu0 0.0
  %974 = vmatpush1.msra.mxu0 0.0
  %975 = vmatprep.subr.mxu0 0.0
  %976 = vmatpush1.msra.mxu0 0.0
  %977 = vmatprep.subr.mxu0 0.0
  %978 = vmatpush1.msra.mxu0 0.0
  %979 = vmatprep.subr.mxu0 0.0
  %980 = vmatpush1.msra.mxu0 0.0
  %981 = vmatprep.mubr.f32.mxu0 0.0
  %982 = vmatmul.mubr.f32.gmra.mrb[0].mxu0 %v915
  %v983 = vpop.f32.mrb[0].mxu0
  %v984 = vadd.f32 0.0, %v983
  %v985 = vpop.f32.mrb[0].mxu0
  %v986 = vadd.f32 0.0, %v985
  %987 = vdwg.mxu0
  %988 = vmatprep.subr.mxu0 0.0
  %989 = vmatpush1.msra.mxu0 %v363
  %990 = vmatprep.subr.mxu0 0.0
  %991 = vmatpush1.msra.mxu0 %v366
  %992 = vmatprep.subr.mxu0 0.0
  %993 = vmatpush1.msra.mxu0 %v369
  %994 = vmatprep.subr.mxu0 0.0
  %995 = vmatpush1.msra.mxu0 %v372
  %996 = vmatprep.subr.mxu0 0.0
  %997 = vmatpush1.msra.mxu0 %v375
  %998 = vmatprep.subr.mxu0 0.0
  %999 = vmatpush1.msra.mxu0 %v378
  %1000 = vmatprep.subr.mxu0 0.0
  %1001 = vmatpush1.msra.mxu0 %v381
  %1002 = vmatprep.subr.mxu0 0.0
  %1003 = vmatpush1.msra.mxu0 %v384
  %1004 = vmatprep.subr.mxu0 0.0
  %1005 = vmatpush1.msra.mxu0 %v387
  %1006 = vmatprep.subr.mxu0 0.0
  %1007 = vmatpush1.msra.mxu0 %v390
  %1008 = vmatprep.subr.mxu0 0.0
  %1009 = vmatpush1.msra.mxu0 %v393
  %1010 = vmatprep.subr.mxu0 0.0
  %1011 = vmatpush1.msra.mxu0 %v396
  %1012 = vmatprep.subr.mxu0 0.0
  %1013 = vmatpush1.msra.mxu0 %v399
  %1014 = vmatprep.subr.mxu0 0.0
  %1015 = vmatpush1.msra.mxu0 %v402
  %1016 = vmatprep.subr.mxu0 0.0
  %1017 = vmatpush1.msra.mxu0 %v405
  %1018 = vmatprep.subr.mxu0 0.0
  %1019 = vmatpush1.msra.mxu0 %v408
  %1020 = vmatprep.subr.mxu0 0.0
  %1021 = vmatpush1.msra.mxu0 0.0
  %1022 = vmatprep.subr.mxu0 0.0
  %1023 = vmatpush1.msra.mxu0 0.0
  %1024 = vmatprep.subr.mxu0 0.0
  %1025 = vmatpush1.msra.mxu0 0.0
  %1026 = vmatprep.subr.mxu0 0.0
  %1027 = vmatpush1.msra.mxu0 0.0
  %1028 = vmatprep.subr.mxu0 0.0
  %1029 = vmatpush1.msra.mxu0 0.0
  %1030 = vmatprep.subr.mxu0 0.0
  %1031 = vmatpush1.msra.mxu0 0.0
  %1032 = vmatprep.subr.mxu0 0.0
  %1033 = vmatpush1.msra.mxu0 0.0
  %1034 = vmatprep.subr.mxu0 0.0
  %1035 = vmatpush1.msra.mxu0 0.0
  %1036 = vmatprep.subr.mxu0 0.0
  %1037 = vmatpush1.msra.mxu0 0.0
  %1038 = vmatprep.subr.mxu0 0.0
  %1039 = vmatpush1.msra.mxu0 0.0
  %1040 = vmatprep.subr.mxu0 0.0
  %1041 = vmatpush1.msra.mxu0 0.0
  %1042 = vmatprep.subr.mxu0 0.0
  %1043 = vmatpush1.msra.mxu0 0.0
  %1044 = vmatprep.subr.mxu0 0.0
  %1045 = vmatpush1.msra.mxu0 0.0
  %1046 = vmatprep.subr.mxu0 0.0
  %1047 = vmatpush1.msra.mxu0 0.0
  %1048 = vmatprep.subr.mxu0 0.0
  %1049 = vmatpush1.msra.mxu0 0.0
  %1050 = vmatprep.subr.mxu0 0.0
  %1051 = vmatpush1.msra.mxu0 0.0
  %1052 = vmatprep.mubr.f32.mxu0 0.0
  %1053 = vmatmul.mubr.f32.gmra.mrb[0].mxu0 %v915
  %v1054 = vpop.f32.mrb[0].mxu0
  %v1055 = vadd.f32 0.0, %v1054
  %v1056 = vpop.f32.mrb[0].mxu0
  %1057 = vdwg.mxu0
  %v1058 = vld [vmem:[#allocation2 + $0x48] sm:$0xff]
  %v1059 = vld [vmem:[#allocation2 + $0x50] sm:$0xff]
  %v1060 = vld [vmem:[#allocation2 + $0x58] sm:$0xff]
  %v1061 = vadd.f32 %v1058, %v984
  %v1062 = vadd.f32 %v1059, %v986
  %v1063 = vxor.u32 %v1061, 2147483648
  %v1064 = vxor.u32 %v1062, 2147483648
  %v1065 = vmul.f32 %v1063, 1.442695
  %v1066 = vpow.pop %v1065
  %v1067 = vmul.f32 %v1064, 1.442695
  %v1068 = vpow.pop %v1067
  %v1069 = vadd.f32 %v1066, 1.0
  %v1070 = vadd.f32 %v1068, 1.0
  %v1071 = vrcp.pop %v1069
  %v1072 = vmul.f32 1.0, %v1071
  %v1073 = vrcp.pop %v1070
  %v1074 = vmul.f32 1.0, %v1073
  %v1075 = vadd.f32 %v1055, %v414
  %v1076 = vmul.f32 %v1072, %v1075
  %v1077 = vadd.f32 %v1060, %v1076
  %v1078 = vtanh.pop %v1077
  %v1079 = vsub.f32 1.0, %v1074
  %v1080 = vmul.f32 %v1079, %v1078
  %v1081 = vmul.f32 %v1074, %v915
  %v1082 = vadd.f32 %v1080, %v1081
  %1083 = vst [vmem:[#allocation3 + $0x18] sm:$0xff] %v1082
  %1084 = vmatprep.subr.mxu0 %v362
  %1085 = vmatpush1.msra.mxu0 %v361
  %1086 = vmatprep.subr.mxu0 %v365
  %1087 = vmatpush1.msra.mxu0 %v364
  %1088 = vmatprep.subr.mxu0 %v368
  %1089 = vmatpush1.msra.mxu0 %v367
  %1090 = vmatprep.subr.mxu0 %v371
  %1091 = vmatpush1.msra.mxu0 %v370
  %1092 = vmatprep.subr.mxu0 %v374
  %1093 = vmatpush1.msra.mxu0 %v373
  %1094 = vmatprep.subr.mxu0 %v377
  %1095 = vmatpush1.msra.mxu0 %v376
  %1096 = vmatprep.subr.mxu0 %v380
  %1097 = vmatpush1.msra.mxu0 %v379
  %1098 = vmatprep.subr.mxu0 %v383
  %1099 = vmatpush1.msra.mxu0 %v382
  %1100 = vmatprep.subr.mxu0 %v386
  %1101 = vmatpush1.msra.mxu0 %v385
  %1102 = vmatprep.subr.mxu0 %v389
  %1103 = vmatpush1.msra.mxu0 %v388
  %1104 = vmatprep.subr.mxu0 %v392
  %1105 = vmatpush1.msra.mxu0 %v391
  %1106 = vmatprep.subr.mxu0 %v395
  %1107 = vmatpush1.msra.mxu0 %v394
  %1108 = vmatprep.subr.mxu0 %v398
  %1109 = vmatpush1.msra.mxu0 %v397
  %1110 = vmatprep.subr.mxu0 %v401
  %1111 = vmatpush1.msra.mxu0 %v400
  %1112 = vmatprep.subr.mxu0 %v404
  %1113 = vmatpush1.msra.mxu0 %v403
  %1114 = vmatprep.subr.mxu0 %v407
  %1115 = vmatpush1.msra.mxu0 %v406
  %1116 = vmatprep.subr.mxu0 0.0
  %1117 = vmatpush1.msra.mxu0 0.0
  %1118 = vmatprep.subr.mxu0 0.0
  %1119 = vmatpush1.msra.mxu0 0.0
  %1120 = vmatprep.subr.mxu0 0.0
  %1121 = vmatpush1.msra.mxu0 0.0
  %1122 = vmatprep.subr.mxu0 0.0
  %1123 = vmatpush1.msra.mxu0 0.0
  %1124 = vmatprep.subr.mxu0 0.0
  %1125 = vmatpush1.msra.mxu0 0.0
  %1126 = vmatprep.subr.mxu0 0.0
  %1127 = vmatpush1.msra.mxu0 0.0
  %1128 = vmatprep.subr.mxu0 0.0
  %1129 = vmatpush1.msra.mxu0 0.0
  %1130 = vmatprep.subr.mxu0 0.0
  %1131 = vmatpush1.msra.mxu0 0.0
  %1132 = vmatprep.subr.mxu0 0.0
  %1133 = vmatpush1.msra.mxu0 0.0
  %1134 = vmatprep.subr.mxu0 0.0
  %1135 = vmatpush1.msra.mxu0 0.0
  %1136 = vmatprep.subr.mxu0 0.0
  %1137 = vmatpush1.msra.mxu0 0.0
  %1138 = vmatprep.subr.mxu0 0.0
  %1139 = vmatpush1.msra.mxu0 0.0
  %1140 = vmatprep.subr.mxu0 0.0
  %1141 = vmatpush1.msra.mxu0 0.0
  %1142 = vmatprep.subr.mxu0 0.0
  %1143 = vmatpush1.msra.mxu0 0.0
  %1144 = vmatprep.subr.mxu0 0.0
  %1145 = vmatpush1.msra.mxu0 0.0
  %1146 = vmatprep.subr.mxu0 0.0
  %1147 = vmatpush1.msra.mxu0 0.0
  %1148 = vmatprep.mubr.f32.mxu0 0.0
  %1149 = vmatmul.mubr.f32.gmra.mrb[0].mxu0 %v1082
  %v1150 = vpop.f32.mrb[0].mxu0
  %v1151 = vadd.f32 0.0, %v1150
  %v1152 = vpop.f32.mrb[0].mxu0
  %v1153 = vadd.f32 0.0, %v1152
  %1154 = vdwg.mxu0
  %1155 = vmatprep.subr.mxu0 0.0
  %1156 = vmatpush1.msra.mxu0 %v363
  %1157 = vmatprep.subr.mxu0 0.0
  %1158 = vmatpush1.msra.mxu0 %v366
  %1159 = vmatprep.subr.mxu0 0.0
  %1160 = vmatpush1.msra.mxu0 %v369
  %1161 = vmatprep.subr.mxu0 0.0
  %1162 = vmatpush1.msra.mxu0 %v372
  %1163 = vmatprep.subr.mxu0 0.0
  %1164 = vmatpush1.msra.mxu0 %v375
  %1165 = vmatprep.subr.mxu0 0.0
  %1166 = vmatpush1.msra.mxu0 %v378
  %1167 = vmatprep.subr.mxu0 0.0
  %1168 = vmatpush1.msra.mxu0 %v381
  %1169 = vmatprep.subr.mxu0 0.0
  %1170 = vmatpush1.msra.mxu0 %v384
  %1171 = vmatprep.subr.mxu0 0.0
  %1172 = vmatpush1.msra.mxu0 %v387
  %1173 = vmatprep.subr.mxu0 0.0
  %1174 = vmatpush1.msra.mxu0 %v390
  %1175 = vmatprep.subr.mxu0 0.0
  %1176 = vmatpush1.msra.mxu0 %v393
  %1177 = vmatprep.subr.mxu0 0.0
  %1178 = vmatpush1.msra.mxu0 %v396
  %1179 = vmatprep.subr.mxu0 0.0
  %1180 = vmatpush1.msra.mxu0 %v399
  %1181 = vmatprep.subr.mxu0 0.0
  %1182 = vmatpush1.msra.mxu0 %v402
  %1183 = vmatprep.subr.mxu0 0.0
  %1184 = vmatpush1.msra.mxu0 %v405
  %1185 = vmatprep.subr.mxu0 0.0
  %1186 = vmatpush1.msra.mxu0 %v408
  %1187 = vmatprep.subr.mxu0 0.0
  %1188 = vmatpush1.msra.mxu0 0.0
  %1189 = vmatprep.subr.mxu0 0.0
  %1190 = vmatpush1.msra.mxu0 0.0
  %1191 = vmatprep.subr.mxu0 0.0
  %1192 = vmatpush1.msra.mxu0 0.0
  %1193 = vmatprep.subr.mxu0 0.0
  %1194 = vmatpush1.msra.mxu0 0.0
  %1195 = vmatprep.subr.mxu0 0.0
  %1196 = vmatpush1.msra.mxu0 0.0
  %1197 = vmatprep.subr.mxu0 0.0
  %1198 = vmatpush1.msra.mxu0 0.0
  %1199 = vmatprep.subr.mxu0 0.0
  %1200 = vmatpush1.msra.mxu0 0.0
  %1201 = vmatprep.subr.mxu0 0.0
  %1202 = vmatpush1.msra.mxu0 0.0
  %1203 = vmatprep.subr.mxu0 0.0
  %1204 = vmatpush1.msra.mxu0 0.0
  %1205 = vmatprep.subr.mxu0 0.0
  %1206 = vmatpush1.msra.mxu0 0.0
  %1207 = vmatprep.subr.mxu0 0.0
  %1208 = vmatpush1.msra.mxu0 0.0
  %1209 = vmatprep.subr.mxu0 0.0
  %1210 = vmatpush1.msra.mxu0 0.0
  %1211 = vmatprep.subr.mxu0 0.0
  %1212 = vmatpush1.msra.mxu0 0.0
  %1213 = vmatprep.subr.mxu0 0.0
  %1214 = vmatpush1.msra.mxu0 0.0
  %1215 = vmatprep.subr.mxu0 0.0
  %1216 = vmatpush1.msra.mxu0 0.0
  %1217 = vmatprep.subr.mxu0 0.0
  %1218 = vmatpush1.msra.mxu0 0.0
  %1219 = vmatprep.mubr.f32.mxu0 0.0
  %1220 = vmatmul.mubr.f32.gmra.mrb[0].mxu0 %v1082
  %v1221 = vpop.f32.mrb[0].mxu0
  %v1222 = vadd.f32 0.0, %v1221
  %v1223 = vpop.f32.mrb[0].mxu0
  %1224 = vdwg.mxu0
  %v1225 = vld [vmem:[#allocation2 + $0x60] sm:$0xff]
  %v1226 = vld [vmem:[#allocation2 + $0x68] sm:$0xff]
  %v1227 = vld [vmem:[#allocation2 + $0x70] sm:$0xff]
  %v1228 = vadd.f32 %v1225, %v1151
  %v1229 = vadd.f32 %v1226, %v1153
  %v1230 = vxor.u32 %v1228, 2147483648
  %v1231 = vxor.u32 %v1229, 2147483648
  %v1232 = vmul.f32 %v1230, 1.442695
  %v1233 = vpow.pop %v1232
  %v1234 = vmul.f32 %v1231, 1.442695
  %v1235 = vpow.pop %v1234
  %v1236 = vadd.f32 %v1233, 1.0
  %v1237 = vadd.f32 %v1235, 1.0
  %v1238 = vrcp.pop %v1236
  %v1239 = vmul.f32 1.0, %v1238
  %v1240 = vrcp.pop %v1237
  %v1241 = vmul.f32 1.0, %v1240
  %v1242 = vadd.f32 %v1222, %v414
  %v1243 = vmul.f32 %v1239, %v1242
  %v1244 = vadd.f32 %v1227, %v1243
  %v1245 = vtanh.pop %v1244
  %v1246 = vsub.f32 1.0, %v1241
  %v1247 = vmul.f32 %v1246, %v1245
  %v1248 = vmul.f32 %v1241, %v1082
  %v1249 = vadd.f32 %v1247, %v1248
  %1250 = vst [vmem:[#allocation3 + $0x20] sm:$0xff] %v1249
  %1251 = vmatprep.subr.mxu0 %v362
  %1252 = vmatpush1.msra.mxu0 %v361
  %1253 = vmatprep.subr.mxu0 %v365
  %1254 = vmatpush1.msra.mxu0 %v364
  %1255 = vmatprep.subr.mxu0 %v368
  %1256 = vmatpush1.msra.mxu0 %v367
  %1257 = vmatprep.subr.mxu0 %v371
  %1258 = vmatpush1.msra.mxu0 %v370
  %1259 = vmatprep.subr.mxu0 %v374
  %1260 = vmatpush1.msra.mxu0 %v373
  %1261 = vmatprep.subr.mxu0 %v377
  %1262 = vmatpush1.msra.mxu0 %v376
  %1263 = vmatprep.subr.mxu0 %v380
  %1264 = vmatpush1.msra.mxu0 %v379
  %1265 = vmatprep.subr.mxu0 %v383
  %1266 = vmatpush1.msra.mxu0 %v382
  %1267 = vmatprep.subr.mxu0 %v386
  %1268 = vmatpush1.msra.mxu0 %v385
  %1269 = vmatprep.subr.mxu0 %v389
  %1270 = vmatpush1.msra.mxu0 %v388
  %1271 = vmatprep.subr.mxu0 %v392
  %1272 = vmatpush1.msra.mxu0 %v391
  %1273 = vmatprep.subr.mxu0 %v395
  %1274 = vmatpush1.msra.mxu0 %v394
  %1275 = vmatprep.subr.mxu0 %v398
  %1276 = vmatpush1.msra.mxu0 %v397
  %1277 = vmatprep.subr.mxu0 %v401
  %1278 = vmatpush1.msra.mxu0 %v400
  %1279 = vmatprep.subr.mxu0 %v404
  %1280 = vmatpush1.msra.mxu0 %v403
  %1281 = vmatprep.subr.mxu0 %v407
  %1282 = vmatpush1.msra.mxu0 %v406
  %1283 = vmatprep.subr.mxu0 0.0
  %1284 = vmatpush1.msra.mxu0 0.0
  %1285 = vmatprep.subr.mxu0 0.0
  %1286 = vmatpush1.msra.mxu0 0.0
  %1287 = vmatprep.subr.mxu0 0.0
  %1288 = vmatpush1.msra.mxu0 0.0
  %1289 = vmatprep.subr.mxu0 0.0
  %1290 = vmatpush1.msra.mxu0 0.0
  %1291 = vmatprep.subr.mxu0 0.0
  %1292 = vmatpush1.msra.mxu0 0.0
  %1293 = vmatprep.subr.mxu0 0.0
  %1294 = vmatpush1.msra.mxu0 0.0
  %1295 = vmatprep.subr.mxu0 0.0
  %1296 = vmatpush1.msra.mxu0 0.0
  %1297 = vmatprep.subr.mxu0 0.0
  %1298 = vmatpush1.msra.mxu0 0.0
  %1299 = vmatprep.subr.mxu0 0.0
  %1300 = vmatpush1.msra.mxu0 0.0
  %1301 = vmatprep.subr.mxu0 0.0
  %1302 = vmatpush1.msra.mxu0 0.0
  %1303 = vmatprep.subr.mxu0 0.0
  %1304 = vmatpush1.msra.mxu0 0.0
  %1305 = vmatprep.subr.mxu0 0.0
  %1306 = vmatpush1.msra.mxu0 0.0
  %1307 = vmatprep.subr.mxu0 0.0
  %1308 = vmatpush1.msra.mxu0 0.0
  %1309 = vmatprep.subr.mxu0 0.0
  %1310 = vmatpush1.msra.mxu0 0.0
  %1311 = vmatprep.subr.mxu0 0.0
  %1312 = vmatpush1.msra.mxu0 0.0
  %1313 = vmatprep.subr.mxu0 0.0
  %1314 = vmatpush1.msra.mxu0 0.0
  %1315 = vmatprep.mubr.f32.mxu0 0.0
  %1316 = vmatmul.mubr.f32.gmra.mrb[0].mxu0 %v1249
  %v1317 = vpop.f32.mrb[0].mxu0
  %v1318 = vadd.f32 0.0, %v1317
  %v1319 = vpop.f32.mrb[0].mxu0
  %v1320 = vadd.f32 0.0, %v1319
  %1321 = vdwg.mxu0
  %1322 = vmatprep.subr.mxu0 0.0
  %1323 = vmatpush1.msra.mxu0 %v363
  %1324 = vmatprep.subr.mxu0 0.0
  %1325 = vmatpush1.msra.mxu0 %v366
  %1326 = vmatprep.subr.mxu0 0.0
  %1327 = vmatpush1.msra.mxu0 %v369
  %1328 = vmatprep.subr.mxu0 0.0
  %1329 = vmatpush1.msra.mxu0 %v372
  %1330 = vmatprep.subr.mxu0 0.0
  %1331 = vmatpush1.msra.mxu0 %v375
  %1332 = vmatprep.subr.mxu0 0.0
  %1333 = vmatpush1.msra.mxu0 %v378
  %1334 = vmatprep.subr.mxu0 0.0
  %1335 = vmatpush1.msra.mxu0 %v381
  %1336 = vmatprep.subr.mxu0 0.0
  %1337 = vmatpush1.msra.mxu0 %v384
  %1338 = vmatprep.subr.mxu0 0.0
  %1339 = vmatpush1.msra.mxu0 %v387
  %1340 = vmatprep.subr.mxu0 0.0
  %1341 = vmatpush1.msra.mxu0 %v390
  %1342 = vmatprep.subr.mxu0 0.0
  %1343 = vmatpush1.msra.mxu0 %v393
  %1344 = vmatprep.subr.mxu0 0.0
  %1345 = vmatpush1.msra.mxu0 %v396
  %1346 = vmatprep.subr.mxu0 0.0
  %1347 = vmatpush1.msra.mxu0 %v399
  %1348 = vmatprep.subr.mxu0 0.0
  %1349 = vmatpush1.msra.mxu0 %v402
  %1350 = vmatprep.subr.mxu0 0.0
  %1351 = vmatpush1.msra.mxu0 %v405
  %1352 = vmatprep.subr.mxu0 0.0
  %1353 = vmatpush1.msra.mxu0 %v408
  %1354 = vmatprep.subr.mxu0 0.0
  %1355 = vmatpush1.msra.mxu0 0.0
  %1356 = vmatprep.subr.mxu0 0.0
  %1357 = vmatpush1.msra.mxu0 0.0
  %1358 = vmatprep.subr.mxu0 0.0
  %1359 = vmatpush1.msra.mxu0 0.0
  %1360 = vmatprep.subr.mxu0 0.0
  %1361 = vmatpush1.msra.mxu0 0.0
  %1362 = vmatprep.subr.mxu0 0.0
  %1363 = vmatpush1.msra.mxu0 0.0
  %1364 = vmatprep.subr.mxu0 0.0
  %1365 = vmatpush1.msra.mxu0 0.0
  %1366 = vmatprep.subr.mxu0 0.0
  %1367 = vmatpush1.msra.mxu0 0.0
  %1368 = vmatprep.subr.mxu0 0.0
  %1369 = vmatpush1.msra.mxu0 0.0
  %1370 = vmatprep.subr.mxu0 0.0
  %1371 = vmatpush1.msra.mxu0 0.0
  %1372 = vmatprep.subr.mxu0 0.0
  %1373 = vmatpush1.msra.mxu0 0.0
  %1374 = vmatprep.subr.mxu0 0.0
  %1375 = vmatpush1.msra.mxu0 0.0
  %1376 = vmatprep.subr.mxu0 0.0
  %1377 = vmatpush1.msra.mxu0 0.0
  %1378 = vmatprep.subr.mxu0 0.0
  %1379 = vmatpush1.msra.mxu0 0.0
  %1380 = vmatprep.subr.mxu0 0.0
  %1381 = vmatpush1.msra.mxu0 0.0
  %1382 = vmatprep.subr.mxu0 0.0
  %1383 = vmatpush1.msra.mxu0 0.0
  %1384 = vmatprep.subr.mxu0 0.0
  %1385 = vmatpush1.msra.mxu0 0.0
  %1386 = vmatprep.mubr.f32.mxu0 0.0
  %1387 = vmatmul.mubr.f32.gmra.mrb[0].mxu0 %v1249
  %v1388 = vpop.f32.mrb[0].mxu0
  %v1389 = vadd.f32 0.0, %v1388
  %v1390 = vpop.f32.mrb[0].mxu0
  %1391 = vdwg.mxu0
  %v1392 = vld [vmem:[#allocation2 + $0x78] sm:$0xff]
  %v1393 = vld [vmem:[#allocation2 + $0x80] sm:$0xff]
  %v1394 = vld [vmem:[#allocation2 + $0x88] sm:$0xff]
  %v1395 = vadd.f32 %v1392, %v1318
  %v1396 = vadd.f32 %v1393, %v1320
  %v1397 = vxor.u32 %v1395, 2147483648
  %v1398 = vxor.u32 %v1396, 2147483648
  %v1399 = vmul.f32 %v1397, 1.442695
  %v1400 = vpow.pop %v1399
  %v1401 = vmul.f32 %v1398, 1.442695
  %v1402 = vpow.pop %v1401
  %v1403 = vadd.f32 %v1400, 1.0
  %v1404 = vadd.f32 %v1402, 1.0
  %v1405 = vrcp.pop %v1403
  %v1406 = vmul.f32 1.0, %v1405
  %v1407 = vrcp.pop %v1404
  %v1408 = vmul.f32 1.0, %v1407
  %v1409 = vadd.f32 %v1389, %v414
  %v1410 = vmul.f32 %v1406, %v1409
  %v1411 = vadd.f32 %v1394, %v1410
  %v1412 = vtanh.pop %v1411
  %v1413 = vsub.f32 1.0, %v1408
  %v1414 = vmul.f32 %v1413, %v1412
  %v1415 = vmul.f32 %v1408, %v1249
  %v1416 = vadd.f32 %v1414, %v1415
  %1417 = vst [vmem:[#allocation3 + $0x28] sm:$0xff] %v1416
  %1418 = vmatprep.subr.mxu0 %v362
  %1419 = vmatpush1.msra.mxu0 %v361
  %1420 = vmatprep.subr.mxu0 %v365
  %1421 = vmatpush1.msra.mxu0 %v364
  %1422 = vmatprep.subr.mxu0 %v368
  %1423 = vmatpush1.msra.mxu0 %v367
  %1424 = vmatprep.subr.mxu0 %v371
  %1425 = vmatpush1.msra.mxu0 %v370
  %1426 = vmatprep.subr.mxu0 %v374
  %1427 = vmatpush1.msra.mxu0 %v373
  %1428 = vmatprep.subr.mxu0 %v377
  %1429 = vmatpush1.msra.mxu0 %v376
  %1430 = vmatprep.subr.mxu0 %v380
  %1431 = vmatpush1.msra.mxu0 %v379
  %1432 = vmatprep.subr.mxu0 %v383
  %1433 = vmatpush1.msra.mxu0 %v382
  %1434 = vmatprep.subr.mxu0 %v386
  %1435 = vmatpush1.msra.mxu0 %v385
  %1436 = vmatprep.subr.mxu0 %v389
  %1437 = vmatpush1.msra.mxu0 %v388
  %1438 = vmatprep.subr.mxu0 %v392
  %1439 = vmatpush1.msra.mxu0 %v391
  %1440 = vmatprep.subr.mxu0 %v395
  %1441 = vmatpush1.msra.mxu0 %v394
  %1442 = vmatprep.subr.mxu0 %v398
  %1443 = vmatpush1.msra.mxu0 %v397
  %1444 = vmatprep.subr.mxu0 %v401
  %1445 = vmatpush1.msra.mxu0 %v400
  %1446 = vmatprep.subr.mxu0 %v404
  %1447 = vmatpush1.msra.mxu0 %v403
  %1448 = vmatprep.subr.mxu0 %v407
  %1449 = vmatpush1.msra.mxu0 %v406
  %1450 = vmatprep.subr.mxu0 0.0
  %1451 = vmatpush1.msra.mxu0 0.0
  %1452 = vmatprep.subr.mxu0 0.0
  %1453 = vmatpush1.msra.mxu0 0.0
  %1454 = vmatprep.subr.mxu0 0.0
  %1455 = vmatpush1.msra.mxu0 0.0
  %1456 = vmatprep.subr.mxu0 0.0
  %1457 = vmatpush1.msra.mxu0 0.0
  %1458 = vmatprep.subr.mxu0 0.0
  %1459 = vmatpush1.msra.mxu0 0.0
  %1460 = vmatprep.subr.mxu0 0.0
  %1461 = vmatpush1.msra.mxu0 0.0
  %1462 = vmatprep.subr.mxu0 0.0
  %1463 = vmatpush1.msra.mxu0 0.0
  %1464 = vmatprep.subr.mxu0 0.0
  %1465 = vmatpush1.msra.mxu0 0.0
  %1466 = vmatprep.subr.mxu0 0.0
  %1467 = vmatpush1.msra.mxu0 0.0
  %1468 = vmatprep.subr.mxu0 0.0
  %1469 = vmatpush1.msra.mxu0 0.0
  %1470 = vmatprep.subr.mxu0 0.0
  %1471 = vmatpush1.msra.mxu0 0.0
  %1472 = vmatprep.subr.mxu0 0.0
  %1473 = vmatpush1.msra.mxu0 0.0
  %1474 = vmatprep.subr.mxu0 0.0
  %1475 = vmatpush1.msra.mxu0 0.0
  %1476 = vmatprep.subr.mxu0 0.0
  %1477 = vmatpush1.msra.mxu0 0.0
  %1478 = vmatprep.subr.mxu0 0.0
  %1479 = vmatpush1.msra.mxu0 0.0
  %1480 = vmatprep.subr.mxu0 0.0
  %1481 = vmatpush1.msra.mxu0 0.0
  %1482 = vmatprep.mubr.f32.mxu0 0.0
  %1483 = vmatmul.mubr.f32.gmra.mrb[0].mxu0 %v1416
  %v1484 = vpop.f32.mrb[0].mxu0
  %v1485 = vadd.f32 0.0, %v1484
  %v1486 = vpop.f32.mrb[0].mxu0
  %v1487 = vadd.f32 0.0, %v1486
  %1488 = vdwg.mxu0
  %1489 = vmatprep.subr.mxu0 0.0
  %1490 = vmatpush1.msra.mxu0 %v363
  %1491 = vmatprep.subr.mxu0 0.0
  %1492 = vmatpush1.msra.mxu0 %v366
  %1493 = vmatprep.subr.mxu0 0.0
  %1494 = vmatpush1.msra.mxu0 %v369
  %1495 = vmatprep.subr.mxu0 0.0
  %1496 = vmatpush1.msra.mxu0 %v372
  %1497 = vmatprep.subr.mxu0 0.0
  %1498 = vmatpush1.msra.mxu0 %v375
  %1499 = vmatprep.subr.mxu0 0.0
  %1500 = vmatpush1.msra.mxu0 %v378
  %1501 = vmatprep.subr.mxu0 0.0
  %1502 = vmatpush1.msra.mxu0 %v381
  %1503 = vmatprep.subr.mxu0 0.0
  %1504 = vmatpush1.msra.mxu0 %v384
  %1505 = vmatprep.subr.mxu0 0.0
  %1506 = vmatpush1.msra.mxu0 %v387
  %1507 = vmatprep.subr.mxu0 0.0
  %1508 = vmatpush1.msra.mxu0 %v390
  %1509 = vmatprep.subr.mxu0 0.0
  %1510 = vmatpush1.msra.mxu0 %v393
  %1511 = vmatprep.subr.mxu0 0.0
  %1512 = vmatpush1.msra.mxu0 %v396
  %1513 = vmatprep.subr.mxu0 0.0
  %1514 = vmatpush1.msra.mxu0 %v399
  %1515 = vmatprep.subr.mxu0 0.0
  %1516 = vmatpush1.msra.mxu0 %v402
  %1517 = vmatprep.subr.mxu0 0.0
  %1518 = vmatpush1.msra.mxu0 %v405
  %1519 = vmatprep.subr.mxu0 0.0
  %1520 = vmatpush1.msra.mxu0 %v408
  %1521 = vmatprep.subr.mxu0 0.0
  %1522 = vmatpush1.msra.mxu0 0.0
  %1523 = vmatprep.subr.mxu0 0.0
  %1524 = vmatpush1.msra.mxu0 0.0
  %1525 = vmatprep.subr.mxu0 0.0
  %1526 = vmatpush1.msra.mxu0 0.0
  %1527 = vmatprep.subr.mxu0 0.0
  %1528 = vmatpush1.msra.mxu0 0.0
  %1529 = vmatprep.subr.mxu0 0.0
  %1530 = vmatpush1.msra.mxu0 0.0
  %1531 = vmatprep.subr.mxu0 0.0
  %1532 = vmatpush1.msra.mxu0 0.0
  %1533 = vmatprep.subr.mxu0 0.0
  %1534 = vmatpush1.msra.mxu0 0.0
  %1535 = vmatprep.subr.mxu0 0.0
  %1536 = vmatpush1.msra.mxu0 0.0
  %1537 = vmatprep.subr.mxu0 0.0
  %1538 = vmatpush1.msra.mxu0 0.0
  %1539 = vmatprep.subr.mxu0 0.0
  %1540 = vmatpush1.msra.mxu0 0.0
  %1541 = vmatprep.subr.mxu0 0.0
  %1542 = vmatpush1.msra.mxu0 0.0
  %1543 = vmatprep.subr.mxu0 0.0
  %1544 = vmatpush1.msra.mxu0 0.0
  %1545 = vmatprep.subr.mxu0 0.0
  %1546 = vmatpush1.msra.mxu0 0.0
  %1547 = vmatprep.subr.mxu0 0.0
  %1548 = vmatpush1.msra.mxu0 0.0
  %1549 = vmatprep.subr.mxu0 0.0
  %1550 = vmatpush1.msra.mxu0 0.0
  %1551 = vmatprep.subr.mxu0 0.0
  %1552 = vmatpush1.msra.mxu0 0.0
  %1553 = vmatprep.mubr.f32.mxu0 0.0
  %1554 = vmatmul.mubr.f32.gmra.mrb[0].mxu0 %v1416
  %v1555 = vpop.f32.mrb[0].mxu0
  %v1556 = vadd.f32 0.0, %v1555
  %v1557 = vpop.f32.mrb[0].mxu0
  %1558 = vdwg.mxu0
  %v1559 = vld [vmem:[#allocation2 + $0x90] sm:$0xff]
  %v1560 = vld [vmem:[#allocation2 + $0x98] sm:$0xff]
  %v1561 = vld [vmem:[#allocation2 + $0xa0] sm:$0xff]
  %v1562 = vadd.f32 %v1559, %v1485
  %v1563 = vadd.f32 %v1560, %v1487
  %v1564 = vxor.u32 %v1562, 2147483648
  %v1565 = vxor.u32 %v1563, 2147483648
  %v1566 = vmul.f32 %v1564, 1.442695
  %v1567 = vpow.pop %v1566
  %v1568 = vmul.f32 %v1565, 1.442695
  %v1569 = vpow.pop %v1568
  %v1570 = vadd.f32 %v1567, 1.0
  %v1571 = vadd.f32 %v1569, 1.0
  %v1572 = vrcp.pop %v1570
  %v1573 = vmul.f32 1.0, %v1572
  %v1574 = vrcp.pop %v1571
  %v1575 = vmul.f32 1.0, %v1574
  %v1576 = vadd.f32 %v1556, %v414
  %v1577 = vmul.f32 %v1573, %v1576
  %v1578 = vadd.f32 %v1561, %v1577
  %v1579 = vtanh.pop %v1578
  %v1580 = vsub.f32 1.0, %v1575
  %v1581 = vmul.f32 %v1580, %v1579
  %v1582 = vmul.f32 %v1575, %v1416
  %v1583 = vadd.f32 %v1581, %v1582
  %1584 = vst [vmem:[#allocation3 + $0x30] sm:$0xff] %v1583
  %1585 = vmatprep.subr.mxu0 %v362
  %1586 = vmatpush1.msra.mxu0 %v361
  %1587 = vmatprep.subr.mxu0 %v365
  %1588 = vmatpush1.msra.mxu0 %v364
  %1589 = vmatprep.subr.mxu0 %v368
  %1590 = vmatpush1.msra.mxu0 %v367
  %1591 = vmatprep.subr.mxu0 %v371
  %1592 = vmatpush1.msra.mxu0 %v370
  %1593 = vmatprep.subr.mxu0 %v374
  %1594 = vmatpush1.msra.mxu0 %v373
  %1595 = vmatprep.subr.mxu0 %v377
  %1596 = vmatpush1.msra.mxu0 %v376
  %1597 = vmatprep.subr.mxu0 %v380
  %1598 = vmatpush1.msra.mxu0 %v379
  %1599 = vmatprep.subr.mxu0 %v383
  %1600 = vmatpush1.msra.mxu0 %v382
  %1601 = vmatprep.subr.mxu0 %v386
  %1602 = vmatpush1.msra.mxu0 %v385
  %1603 = vmatprep.subr.mxu0 %v389
  %1604 = vmatpush1.msra.mxu0 %v388
  %1605 = vmatprep.subr.mxu0 %v392
  %1606 = vmatpush1.msra.mxu0 %v391
  %1607 = vmatprep.subr.mxu0 %v395
  %1608 = vmatpush1.msra.mxu0 %v394
  %1609 = vmatprep.subr.mxu0 %v398
  %1610 = vmatpush1.msra.mxu0 %v397
  %1611 = vmatprep.subr.mxu0 %v401
  %1612 = vmatpush1.msra.mxu0 %v400
  %1613 = vmatprep.subr.mxu0 %v404
  %1614 = vmatpush1.msra.mxu0 %v403
  %1615 = vmatprep.subr.mxu0 %v407
  %1616 = vmatpush1.msra.mxu0 %v406
  %1617 = vmatprep.subr.mxu0 0.0
  %1618 = vmatpush1.msra.mxu0 0.0
  %1619 = vmatprep.subr.mxu0 0.0
  %1620 = vmatpush1.msra.mxu0 0.0
  %1621 = vmatprep.subr.mxu0 0.0
  %1622 = vmatpush1.msra.mxu0 0.0
  %1623 = vmatprep.subr.mxu0 0.0
  %1624 = vmatpush1.msra.mxu0 0.0
  %1625 = vmatprep.subr.mxu0 0.0
  %1626 = vmatpush1.msra.mxu0 0.0
  %1627 = vmatprep.subr.mxu0 0.0
  %1628 = vmatpush1.msra.mxu0 0.0
  %1629 = vmatprep.subr.mxu0 0.0
  %1630 = vmatpush1.msra.mxu0 0.0
  %1631 = vmatprep.subr.mxu0 0.0
  %1632 = vmatpush1.msra.mxu0 0.0
  %1633 = vmatprep.subr.mxu0 0.0
  %1634 = vmatpush1.msra.mxu0 0.0
  %1635 = vmatprep.subr.mxu0 0.0
  %1636 = vmatpush1.msra.mxu0 0.0
  %1637 = vmatprep.subr.mxu0 0.0
  %1638 = vmatpush1.msra.mxu0 0.0
  %1639 = vmatprep.subr.mxu0 0.0
  %1640 = vmatpush1.msra.mxu0 0.0
  %1641 = vmatprep.subr.mxu0 0.0
  %1642 = vmatpush1.msra.mxu0 0.0
  %1643 = vmatprep.subr.mxu0 0.0
  %1644 = vmatpush1.msra.mxu0 0.0
  %1645 = vmatprep.subr.mxu0 0.0
  %1646 = vmatpush1.msra.mxu0 0.0
  %1647 = vmatprep.subr.mxu0 0.0
  %1648 = vmatpush1.msra.mxu0 0.0
  %1649 = vmatprep.mubr.f32.mxu0 0.0
  %1650 = vmatmul.mubr.f32.gmra.mrb[0].mxu0 %v1583
  %v1651 = vpop.f32.mrb[0].mxu0
  %v1652 = vadd.f32 0.0, %v1651
  %v1653 = vpop.f32.mrb[0].mxu0
  %v1654 = vadd.f32 0.0, %v1653
  %1655 = vdwg.mxu0
  %1656 = vmatprep.subr.mxu0 0.0
  %1657 = vmatpush1.msra.mxu0 %v363
  %1658 = vmatprep.subr.mxu0 0.0
  %1659 = vmatpush1.msra.mxu0 %v366
  %1660 = vmatprep.subr.mxu0 0.0
  %1661 = vmatpush1.msra.mxu0 %v369
  %1662 = vmatprep.subr.mxu0 0.0
  %1663 = vmatpush1.msra.mxu0 %v372
  %1664 = vmatprep.subr.mxu0 0.0
  %1665 = vmatpush1.msra.mxu0 %v375
  %1666 = vmatprep.subr.mxu0 0.0
  %1667 = vmatpush1.msra.mxu0 %v378
  %1668 = vmatprep.subr.mxu0 0.0
  %1669 = vmatpush1.msra.mxu0 %v381
  %1670 = vmatprep.subr.mxu0 0.0
  %1671 = vmatpush1.msra.mxu0 %v384
  %1672 = vmatprep.subr.mxu0 0.0
  %1673 = vmatpush1.msra.mxu0 %v387
  %1674 = vmatprep.subr.mxu0 0.0
  %1675 = vmatpush1.msra.mxu0 %v390
  %1676 = vmatprep.subr.mxu0 0.0
  %1677 = vmatpush1.msra.mxu0 %v393
  %1678 = vmatprep.subr.mxu0 0.0
  %1679 = vmatpush1.msra.mxu0 %v396
  %1680 = vmatprep.subr.mxu0 0.0
  %1681 = vmatpush1.msra.mxu0 %v399
  %1682 = vmatprep.subr.mxu0 0.0
  %1683 = vmatpush1.msra.mxu0 %v402
  %1684 = vmatprep.subr.mxu0 0.0
  %1685 = vmatpush1.msra.mxu0 %v405
  %1686 = vmatprep.subr.mxu0 0.0
  %1687 = vmatpush1.msra.mxu0 %v408
  %1688 = vmatprep.subr.mxu0 0.0
  %1689 = vmatpush1.msra.mxu0 0.0
  %1690 = vmatprep.subr.mxu0 0.0
  %1691 = vmatpush1.msra.mxu0 0.0
  %1692 = vmatprep.subr.mxu0 0.0
  %1693 = vmatpush1.msra.mxu0 0.0
  %1694 = vmatprep.subr.mxu0 0.0
  %1695 = vmatpush1.msra.mxu0 0.0
  %1696 = vmatprep.subr.mxu0 0.0
  %1697 = vmatpush1.msra.mxu0 0.0
  %1698 = vmatprep.subr.mxu0 0.0
  %1699 = vmatpush1.msra.mxu0 0.0
  %1700 = vmatprep.subr.mxu0 0.0
  %1701 = vmatpush1.msra.mxu0 0.0
  %1702 = vmatprep.subr.mxu0 0.0
  %1703 = vmatpush1.msra.mxu0 0.0
  %1704 = vmatprep.subr.mxu0 0.0
  %1705 = vmatpush1.msra.mxu0 0.0
  %1706 = vmatprep.subr.mxu0 0.0
  %1707 = vmatpush1.msra.mxu0 0.0
  %1708 = vmatprep.subr.mxu0 0.0
  %1709 = vmatpush1.msra.mxu0 0.0
  %1710 = vmatprep.subr.mxu0 0.0
  %1711 = vmatpush1.msra.mxu0 0.0
  %1712 = vmatprep.subr.mxu0 0.0
  %1713 = vmatpush1.msra.mxu0 0.0
  %1714 = vmatprep.subr.mxu0 0.0
  %1715 = vmatpush1.msra.mxu0 0.0
  %1716 = vmatprep.subr.mxu0 0.0
  %1717 = vmatpush1.msra.mxu0 0.0
  %1718 = vmatprep.subr.mxu0 0.0
  %1719 = vmatpush1.msra.mxu0 0.0
  %1720 = vmatprep.mubr.f32.mxu0 0.0
  %1721 = vmatmul.mubr.f32.gmra.mrb[0].mxu0 %v1583
  %v1722 = vpop.f32.mrb[0].mxu0
  %v1723 = vadd.f32 0.0, %v1722
  %v1724 = vpop.f32.mrb[0].mxu0
  %1725 = vdwg.mxu0
  %v1726 = vld [vmem:[#allocation2 + $0xa8] sm:$0xff]
  %v1727 = vld [vmem:[#allocation2 + $0xb0] sm:$0xff]
  %v1728 = vld [vmem:[#allocation2 + $0xb8] sm:$0xff]
  %v1729 = vadd.f32 %v1726, %v1652
  %v1730 = vadd.f32 %v1727, %v1654
  %v1731 = vxor.u32 %v1729, 2147483648
  %v1732 = vxor.u32 %v1730, 2147483648
  %v1733 = vmul.f32 %v1731, 1.442695
  %v1734 = vpow.pop %v1733
  %v1735 = vmul.f32 %v1732, 1.442695
  %v1736 = vpow.pop %v1735
  %v1737 = vadd.f32 %v1734, 1.0
  %v1738 = vadd.f32 %v1736, 1.0
  %v1739 = vrcp.pop %v1737
  %v1740 = vmul.f32 1.0, %v1739
  %v1741 = vrcp.pop %v1738
  %v1742 = vmul.f32 1.0, %v1741
  %v1743 = vadd.f32 %v1723, %v414
  %v1744 = vmul.f32 %v1740, %v1743
  %v1745 = vadd.f32 %v1728, %v1744
  %v1746 = vtanh.pop %v1745
  %v1747 = vsub.f32 1.0, %v1742
  %v1748 = vmul.f32 %v1747, %v1746
  %v1749 = vmul.f32 %v1742, %v1583
  %v1750 = vadd.f32 %v1748, %v1749
  %1751 = vst [vmem:[#allocation3 + $0x38] sm:$0xff] %v1750
  %v1752 = vld [vmem:[#allocation3] sm:$0xff]
  %v1753 = vld [vmem:[#allocation3 + $0x8] sm:$0xff]
  %v1754 = vld [vmem:[#allocation3 + $0x10] sm:$0xff]
  %v1755 = vld [vmem:[#allocation3 + $0x18] sm:$0xff]
  %v1756 = vld [vmem:[#allocation3 + $0x20] sm:$0xff]
  %v1757 = vld [vmem:[#allocation3 + $0x28] sm:$0xff]
  %v1758 = vld [vmem:[#allocation3 + $0x30] sm:$0xff]
  %v1759 = vld [vmem:[#allocation3 + $0x38] sm:$0xff]
  %v1760 = vld [vmem:[%s5] sm:$0xff]
  %v1761 = vld [vmem:[%s5 + $0x8] sm:$0xff]
  %v1762 = vld [vmem:[%s5 + $0x10] sm:$0xff]
  %v1763 = vld [vmem:[%s5 + $0x18] sm:$0xff]
  %v1764 = vld [vmem:[%s5 + $0x20] sm:$0xff]
  %v1765 = vld [vmem:[%s5 + $0x28] sm:$0xff]
  %v1766 = vld [vmem:[%s5 + $0x30] sm:$0xff]
  %v1767 = vld [vmem:[%s5 + $0x38] sm:$0xff]
  %v1768 = vld [vmem:[%s5 + $0x40] sm:$0xff]
  %v1769 = vld [vmem:[%s5 + $0x48] sm:$0xff]
  %v1770 = vld [vmem:[%s5 + $0x50] sm:$0xff]
  %v1771 = vld [vmem:[%s5 + $0x58] sm:$0xff]
  %v1772 = vld [vmem:[%s5 + $0x60] sm:$0xff]
  %v1773 = vld [vmem:[%s5 + $0x68] sm:$0xff]
  %v1774 = vld [vmem:[%s5 + $0x70] sm:$0xff]
  %v1775 = vld [vmem:[%s5 + $0x78] sm:$0xff]
  %v1776 = vld [vmem:[%s5 + $0x80] sm:$0xff]
  %v1777 = vld [vmem:[%s5 + $0x88] sm:$0xff]
  %v1778 = vld [vmem:[%s5 + $0x90] sm:$0xff]
  %v1779 = vld [vmem:[%s5 + $0x98] sm:$0xff]
  %v1780 = vld [vmem:[%s5 + $0xa0] sm:$0xff]
  %v1781 = vld [vmem:[%s5 + $0xa8] sm:$0xff]
  %v1782 = vld [vmem:[%s5 + $0xb0] sm:$0xff]
  %v1783 = vld [vmem:[%s5 + $0xb8] sm:$0xff]
  %v1784 = vld [vmem:[%s5 + $0xc0] sm:$0xff]
  %v1785 = vld [vmem:[%s5 + $0xc8] sm:$0xff]
  %v1786 = vld [vmem:[%s5 + $0xd0] sm:$0xff]
  %v1787 = vld [vmem:[%s5 + $0xd8] sm:$0xff]
  %v1788 = vld [vmem:[%s5 + $0xe0] sm:$0xff]
  %v1789 = vld [vmem:[%s5 + $0xe8] sm:$0xff]
  %v1790 = vld [vmem:[%s5 + $0xf0] sm:$0xff]
  %v1791 = vld [vmem:[%s5 + $0xf8] sm:$0xff]
  %v1792 = vld [vmem:[%s5 + $0x100] sm:$0xff]
  %v1793 = vld [vmem:[%s5 + $0x108] sm:$0xff]
  %v1794 = vld [vmem:[%s5 + $0x110] sm:$0xff]
  %v1795 = vld [vmem:[%s5 + $0x118] sm:$0xff]
  %v1796 = vld [vmem:[%s5 + $0x120] sm:$0xff]
  %v1797 = vld [vmem:[%s5 + $0x128] sm:$0xff]
  %v1798 = vld [vmem:[%s5 + $0x130] sm:$0xff]
  %v1799 = vld [vmem:[%s5 + $0x138] sm:$0xff]
  %v1800 = vld [vmem:[%s5 + $0x140] sm:$0xff]
  %v1801 = vld [vmem:[%s5 + $0x148] sm:$0xff]
  %v1802 = vld [vmem:[%s5 + $0x150] sm:$0xff]
  %v1803 = vld [vmem:[%s5 + $0x158] sm:$0xff]
  %v1804 = vld [vmem:[%s5 + $0x160] sm:$0xff]
  %v1805 = vld [vmem:[%s5 + $0x168] sm:$0xff]
  %v1806 = vld [vmem:[%s5 + $0x170] sm:$0xff]
  %v1807 = vld [vmem:[%s5 + $0x178] sm:$0xff]
  %v1808 = vld [vmem:[%s7] sm:$0x7]
  %v1810 = vlaneseq
  %v1811 = vshrl.u32 %v1810, 7
  %v1812 = vsub.s32 0, %v1811
  %v1813 = vrot.slane %v1808, %v1812
  %v1814 = vlaneseq
  %v1815 = vshrl.u32 %v1814, 7
  %v1816 = vsub.s32 1, %v1815
  %v1817 = vrot.slane %v1808, %v1816
  %v1818 = vlaneseq
  %v1819 = vshrl.u32 %v1818, 7
  %v1820 = vsub.s32 2, %v1819
  %v1821 = vrot.slane %v1808, %v1820
  %1825 = vmatprep.subr.mxu0 %v1761
  %1826 = vmatpush1.msra.mxu0 %v1760
  %1827 = vmatprep.subr.mxu0 %v1764
  %1828 = vmatpush1.msra.mxu0 %v1763
  %1829 = vmatprep.subr.mxu0 %v1767
  %1830 = vmatpush1.msra.mxu0 %v1766
  %1831 = vmatprep.subr.mxu0 %v1770
  %1832 = vmatpush1.msra.mxu0 %v1769
  %1833 = vmatprep.subr.mxu0 %v1773
  %1834 = vmatpush1.msra.mxu0 %v1772
  %1835 = vmatprep.subr.mxu0 %v1776
  %1836 = vmatpush1.msra.mxu0 %v1775
  %1837 = vmatprep.subr.mxu0 %v1779
  %1838 = vmatpush1.msra.mxu0 %v1778
  %1839 = vmatprep.subr.mxu0 %v1782
  %1840 = vmatpush1.msra.mxu0 %v1781
  %1841 = vmatprep.subr.mxu0 %v1785
  %1842 = vmatpush1.msra.mxu0 %v1784
  %1843 = vmatprep.subr.mxu0 %v1788
  %1844 = vmatpush1.msra.mxu0 %v1787
  %1845 = vmatprep.subr.mxu0 %v1791
  %1846 = vmatpush1.msra.mxu0 %v1790
  %1847 = vmatprep.subr.mxu0 %v1794
  %1848 = vmatpush1.msra.mxu0 %v1793
  %1849 = vmatprep.subr.mxu0 %v1797
  %1850 = vmatpush1.msra.mxu0 %v1796
  %1851 = vmatprep.subr.mxu0 %v1800
  %1852 = vmatpush1.msra.mxu0 %v1799
  %1853 = vmatprep.subr.mxu0 %v1803
  %1854 = vmatpush1.msra.mxu0 %v1802
  %1855 = vmatprep.subr.mxu0 %v1806
  %1856 = vmatpush1.msra.mxu0 %v1805
  %1857 = vmatprep.subr.mxu0 0.0
  %1858 = vmatpush1.msra.mxu0 0.0
  %1859 = vmatprep.subr.mxu0 0.0
  %1860 = vmatpush1.msra.mxu0 0.0
  %1861 = vmatprep.subr.mxu0 0.0
  %1862 = vmatpush1.msra.mxu0 0.0
  %1863 = vmatprep.subr.mxu0 0.0
  %1864 = vmatpush1.msra.mxu0 0.0
  %1865 = vmatprep.subr.mxu0 0.0
  %1866 = vmatpush1.msra.mxu0 0.0
  %1867 = vmatprep.subr.mxu0 0.0
  %1868 = vmatpush1.msra.mxu0 0.0
  %1869 = vmatprep.subr.mxu0 0.0
  %1870 = vmatpush1.msra.mxu0 0.0
  %1871 = vmatprep.subr.mxu0 0.0
  %1872 = vmatpush1.msra.mxu0 0.0
  %1873 = vmatprep.subr.mxu0 0.0
  %1874 = vmatpush1.msra.mxu0 0.0
  %1875 = vmatprep.subr.mxu0 0.0
  %1876 = vmatpush1.msra.mxu0 0.0
  %1877 = vmatprep.subr.mxu0 0.0
  %1878 = vmatpush1.msra.mxu0 0.0
  %1879 = vmatprep.subr.mxu0 0.0
  %1880 = vmatpush1.msra.mxu0 0.0
  %1881 = vmatprep.subr.mxu0 0.0
  %1882 = vmatpush1.msra.mxu0 0.0
  %1883 = vmatprep.subr.mxu0 0.0
  %1884 = vmatpush1.msra.mxu0 0.0
  %1885 = vmatprep.subr.mxu0 0.0
  %1886 = vmatpush1.msra.mxu0 0.0
  %1887 = vmatprep.subr.mxu0 0.0
  %1888 = vmatpush1.msra.mxu0 0.0
  %1889 = vmatprep.mubr.f32.mxu0 0.0
  %1890 = vmatmul.mubr.f32.gmra.mrb[0].mxu0 %v1752
  %v1891 = vpop.f32.mrb[0].mxu0
  %v1892 = vadd.f32 %v1813, %v1891
  %v1893 = vpop.f32.mrb[0].mxu0
  %v1894 = vadd.f32 %v1817, %v1893
  %1895 = vmatprep.mubr.f32.mxu0 0.0
  %1896 = vmatmul.mubr.f32.gmra.mrb[0].mxu0 %v1753
  %v1897 = vpop.f32.mrb[0].mxu0
  %v1898 = vadd.f32 %v1813, %v1897
  %v1899 = vpop.f32.mrb[0].mxu0
  %v1900 = vadd.f32 %v1817, %v1899
  %1901 = vmatprep.mubr.f32.mxu0 0.0
  %1902 = vmatmul.mubr.f32.gmra.mrb[0].mxu0 %v1754
  %v1903 = vpop.f32.mrb[0].mxu0
  %v1904 = vadd.f32 %v1813, %v1903
  %v1905 = vpop.f32.mrb[0].mxu0
  %v1906 = vadd.f32 %v1817, %v1905
  %1907 = vmatprep.mubr.f32.mxu0 0.0
  %1908 = vmatmul.mubr.f32.gmra.mrb[0].mxu0 %v1755
  %v1909 = vpop.f32.mrb[0].mxu0
  %v1910 = vadd.f32 %v1813, %v1909
  %v1911 = vpop.f32.mrb[0].mxu0
  %v1912 = vadd.f32 %v1817, %v1911
  %1913 = vmatprep.mubr.f32.mxu0 0.0
  %1914 = vmatmul.mubr.f32.gmra.mrb[0].mxu0 %v1756
  %v1915 = vpop.f32.mrb[0].mxu0
  %v1916 = vadd.f32 %v1813, %v1915
  %v1917 = vpop.f32.mrb[0].mxu0
  %v1918 = vadd.f32 %v1817, %v1917
  %1919 = vmatprep.mubr.f32.mxu0 0.0
  %1920 = vmatmul.mubr.f32.gmra.mrb[0].mxu0 %v1757
  %v1921 = vpop.f32.mrb[0].mxu0
  %v1922 = vadd.f32 %v1813, %v1921
  %v1923 = vpop.f32.mrb[0].mxu0
  %v1924 = vadd.f32 %v1817, %v1923
  %1925 = vmatprep.mubr.f32.mxu0 0.0
  %1926 = vmatmul.mubr.f32.gmra.mrb[0].mxu0 %v1758
  %v1927 = vpop.f32.mrb[0].mxu0
  %v1928 = vadd.f32 %v1813, %v1927
  %v1929 = vpop.f32.mrb[0].mxu0
  %v1930 = vadd.f32 %v1817, %v1929
  %1931 = vmatprep.mubr.f32.mxu0 0.0
  %1932 = vmatmul.mubr.f32.gmra.mrb[0].mxu0 %v1759
  %v1933 = vpop.f32.mrb[0].mxu0
  %v1934 = vadd.f32 %v1813, %v1933
  %v1935 = vpop.f32.mrb[0].mxu0
  %v1936 = vadd.f32 %v1817, %v1935
  %1937 = vdwg.mxu0
  %1938 = vmatprep.subr.mxu0 0.0
  %1939 = vmatpush1.msra.mxu0 %v1762
  %1940 = vmatprep.subr.mxu0 0.0
  %1941 = vmatpush1.msra.mxu0 %v1765
  %1942 = vmatprep.subr.mxu0 0.0
  %1943 = vmatpush1.msra.mxu0 %v1768
  %1944 = vmatprep.subr.mxu0 0.0
  %1945 = vmatpush1.msra.mxu0 %v1771
  %1946 = vmatprep.subr.mxu0 0.0
  %1947 = vmatpush1.msra.mxu0 %v1774
  %1948 = vmatprep.subr.mxu0 0.0
  %1949 = vmatpush1.msra.mxu0 %v1777
  %1950 = vmatprep.subr.mxu0 0.0
  %1951 = vmatpush1.msra.mxu0 %v1780
  %1952 = vmatprep.subr.mxu0 0.0
  %1953 = vmatpush1.msra.mxu0 %v1783
  %1954 = vmatprep.subr.mxu0 0.0
  %1955 = vmatpush1.msra.mxu0 %v1786
  %1956 = vmatprep.subr.mxu0 0.0
  %1957 = vmatpush1.msra.mxu0 %v1789
  %1958 = vmatprep.subr.mxu0 0.0
  %1959 = vmatpush1.msra.mxu0 %v1792
  %1960 = vmatprep.subr.mxu0 0.0
  %1961 = vmatpush1.msra.mxu0 %v1795
  %1962 = vmatprep.subr.mxu0 0.0
  %1963 = vmatpush1.msra.mxu0 %v1798
  %1964 = vmatprep.subr.mxu0 0.0
  %1965 = vmatpush1.msra.mxu0 %v1801
  %1966 = vmatprep.subr.mxu0 0.0
  %1967 = vmatpush1.msra.mxu0 %v1804
  %1968 = vmatprep.subr.mxu0 0.0
  %1969 = vmatpush1.msra.mxu0 %v1807
  %1970 = vmatprep.subr.mxu0 0.0
  %1971 = vmatpush1.msra.mxu0 0.0
  %1972 = vmatprep.subr.mxu0 0.0
  %1973 = vmatpush1.msra.mxu0 0.0
  %1974 = vmatprep.subr.mxu0 0.0
  %1975 = vmatpush1.msra.mxu0 0.0
  %1976 = vmatprep.subr.mxu0 0.0
  %1977 = vmatpush1.msra.mxu0 0.0
  %1978 = vmatprep.subr.mxu0 0.0
  %1979 = vmatpush1.msra.mxu0 0.0
  %1980 = vmatprep.subr.mxu0 0.0
  %1981 = vmatpush1.msra.mxu0 0.0
  %1982 = vmatprep.subr.mxu0 0.0
  %1983 = vmatpush1.msra.mxu0 0.0
  %1984 = vmatprep.subr.mxu0 0.0
  %1985 = vmatpush1.msra.mxu0 0.0
  %1986 = vmatprep.subr.mxu0 0.0
  %1987 = vmatpush1.msra.mxu0 0.0
  %1988 = vmatprep.subr.mxu0 0.0
  %1989 = vmatpush1.msra.mxu0 0.0
  %1990 = vmatprep.subr.mxu0 0.0
  %1991 = vmatpush1.msra.mxu0 0.0
  %1992 = vmatprep.subr.mxu0 0.0
  %1993 = vmatpush1.msra.mxu0 0.0
  %1994 = vmatprep.subr.mxu0 0.0
  %1995 = vmatpush1.msra.mxu0 0.0
  %1996 = vmatprep.subr.mxu0 0.0
  %1997 = vmatpush1.msra.mxu0 0.0
  %1998 = vmatprep.subr.mxu0 0.0
  %1999 = vmatpush1.msra.mxu0 0.0
  %2000 = vmatprep.subr.mxu0 0.0
  %2001 = vmatpush1.msra.mxu0 0.0
  %2002 = vmatprep.mubr.f32.mxu0 0.0
  %2003 = vmatmul.mubr.f32.gmra.mrb[0].mxu0 %v1752
  %v2004 = vpop.f32.mrb[0].mxu0
  %v2005 = vadd.f32 %v1821, %v2004
  %v2006 = vpop.f32.mrb[0].mxu0
  %2007 = vmatprep.mubr.f32.mxu0 0.0
  %2008 = vmatmul.mubr.f32.gmra.mrb[0].mxu0 %v1753
  %v2009 = vpop.f32.mrb[0].mxu0
  %v2010 = vadd.f32 %v1821, %v2009
  %v2011 = vpop.f32.mrb[0].mxu0
  %2012 = vmatprep.mubr.f32.mxu0 0.0
  %2013 = vmatmul.mubr.f32.gmra.mrb[0].mxu0 %v1754
  %v2014 = vpop.f32.mrb[0].mxu0
  %v2015 = vadd.f32 %v1821, %v2014
  %v2016 = vpop.f32.mrb[0].mxu0
  %2017 = vmatprep.mubr.f32.mxu0 0.0
  %2018 = vmatmul.mubr.f32.gmra.mrb[0].mxu0 %v1755
  %v2019 = vpop.f32.mrb[0].mxu0
  %v2020 = vadd.f32 %v1821, %v2019
  %v2021 = vpop.f32.mrb[0].mxu0
  %2022 = vmatprep.mubr.f32.mxu0 0.0
  %2023 = vmatmul.mubr.f32.gmra.mrb[0].mxu0 %v1756
  %v2024 = vpop.f32.mrb[0].mxu0
  %v2025 = vadd.f32 %v1821, %v2024
  %v2026 = vpop.f32.mrb[0].mxu0
  %2027 = vmatprep.mubr.f32.mxu0 0.0
  %2028 = vmatmul.mubr.f32.gmra.mrb[0].mxu0 %v1757
  %v2029 = vpop.f32.mrb[0].mxu0
  %v2030 = vadd.f32 %v1821, %v2029
  %v2031 = vpop.f32.mrb[0].mxu0
  %2032 = vmatprep.mubr.f32.mxu0 0.0
  %2033 = vmatmul.mubr.f32.gmra.mrb[0].mxu0 %v1758
  %v2034 = vpop.f32.mrb[0].mxu0
  %v2035 = vadd.f32 %v1821, %v2034
  %v2036 = vpop.f32.mrb[0].mxu0
  %2037 = vmatprep.mubr.f32.mxu0 0.0
  %2038 = vmatmul.mubr.f32.gmra.mrb[0].mxu0 %v1759
  %v2039 = vpop.f32.mrb[0].mxu0
  %v2040 = vadd.f32 %v1821, %v2039
  %v2041 = vpop.f32.mrb[0].mxu0
  %2042 = vdwg.mxu0
  %2043 = vst [vmem:[#allocation2] sm:$0xff] %v1892
  %2044 = vst [vmem:[#allocation2 + $0x8] sm:$0xff] %v1894
  %2045 = vst [vmem:[#allocation2 + $0x10] sm:$0xff] %v2005
  %2046 = vst [vmem:[#allocation2 + $0x18] sm:$0xff] %v1898
  %2047 = vst [vmem:[#allocation2 + $0x20] sm:$0xff] %v1900
  %2048 = vst [vmem:[#allocation2 + $0x28] sm:$0xff] %v2010
  %2049 = vst [vmem:[#allocation2 + $0x30] sm:$0xff] %v1904
  %2050 = vst [vmem:[#allocation2 + $0x38] sm:$0xff] %v1906
  %2051 = vst [vmem:[#allocation2 + $0x40] sm:$0xff] %v2015
  %2052 = vst [vmem:[#allocation2 + $0x48] sm:$0xff] %v1910
  %2053 = vst [vmem:[#allocation2 + $0x50] sm:$0xff] %v1912
  %2054 = vst [vmem:[#allocation2 + $0x58] sm:$0xff] %v2020
  %2055 = vst [vmem:[#allocation2 + $0x60] sm:$0xff] %v1916
  %2056 = vst [vmem:[#allocation2 + $0x68] sm:$0xff] %v1918
  %2057 = vst [vmem:[#allocation2 + $0x70] sm:$0xff] %v2025
  %2058 = vst [vmem:[#allocation2 + $0x78] sm:$0xff] %v1922
  %2059 = vst [vmem:[#allocation2 + $0x80] sm:$0xff] %v1924
  %2060 = vst [vmem:[#allocation2 + $0x88] sm:$0xff] %v2030
  %2061 = vst [vmem:[#allocation2 + $0x90] sm:$0xff] %v1928
  %2062 = vst [vmem:[#allocation2 + $0x98] sm:$0xff] %v1930
  %2063 = vst [vmem:[#allocation2 + $0xa0] sm:$0xff] %v2035
  %2064 = vst [vmem:[#allocation2 + $0xa8] sm:$0xff] %v1934
  %2065 = vst [vmem:[#allocation2 + $0xb0] sm:$0xff] %v1936
  %2066 = vst [vmem:[#allocation2 + $0xb8] sm:$0xff] %v2040
  %v2067 = vld [vmem:[%s6] sm:$0xff]
  %v2068 = vld [vmem:[%s6 + $0x8] sm:$0xff]
  %v2069 = vld [vmem:[%s6 + $0x10] sm:$0xff]
  %v2070 = vld [vmem:[%s6 + $0x18] sm:$0xff]
  %v2071 = vld [vmem:[%s6 + $0x20] sm:$0xff]
  %v2072 = vld [vmem:[%s6 + $0x28] sm:$0xff]
  %v2073 = vld [vmem:[%s6 + $0x30] sm:$0xff]
  %v2074 = vld [vmem:[%s6 + $0x38] sm:$0xff]
  %v2075 = vld [vmem:[%s6 + $0x40] sm:$0xff]
  %v2076 = vld [vmem:[%s6 + $0x48] sm:$0xff]
  %v2077 = vld [vmem:[%s6 + $0x50] sm:$0xff]
  %v2078 = vld [vmem:[%s6 + $0x58] sm:$0xff]
  %v2079 = vld [vmem:[%s6 + $0x60] sm:$0xff]
  %v2080 = vld [vmem:[%s6 + $0x68] sm:$0xff]
  %v2081 = vld [vmem:[%s6 + $0x70] sm:$0xff]
  %v2082 = vld [vmem:[%s6 + $0x78] sm:$0xff]
  %v2083 = vld [vmem:[%s6 + $0x80] sm:$0xff]
  %v2084 = vld [vmem:[%s6 + $0x88] sm:$0xff]
  %v2085 = vld [vmem:[%s6 + $0x90] sm:$0xff]
  %v2086 = vld [vmem:[%s6 + $0x98] sm:$0xff]
  %v2087 = vld [vmem:[%s6 + $0xa0] sm:$0xff]
  %v2088 = vld [vmem:[%s6 + $0xa8] sm:$0xff]
  %v2089 = vld [vmem:[%s6 + $0xb0] sm:$0xff]
  %v2090 = vld [vmem:[%s6 + $0xb8] sm:$0xff]
  %v2091 = vld [vmem:[%s6 + $0xc0] sm:$0xff]
  %v2092 = vld [vmem:[%s6 + $0xc8] sm:$0xff]
  %v2093 = vld [vmem:[%s6 + $0xd0] sm:$0xff]
  %v2094 = vld [vmem:[%s6 + $0xd8] sm:$0xff]
  %v2095 = vld [vmem:[%s6 + $0xe0] sm:$0xff]
  %v2096 = vld [vmem:[%s6 + $0xe8] sm:$0xff]
  %v2097 = vld [vmem:[%s6 + $0xf0] sm:$0xff]
  %v2098 = vld [vmem:[%s6 + $0xf8] sm:$0xff]
  %v2099 = vld [vmem:[%s6 + $0x100] sm:$0xff]
  %v2100 = vld [vmem:[%s6 + $0x108] sm:$0xff]
  %v2101 = vld [vmem:[%s6 + $0x110] sm:$0xff]
  %v2102 = vld [vmem:[%s6 + $0x118] sm:$0xff]
  %v2103 = vld [vmem:[%s6 + $0x120] sm:$0xff]
  %v2104 = vld [vmem:[%s6 + $0x128] sm:$0xff]
  %v2105 = vld [vmem:[%s6 + $0x130] sm:$0xff]
  %v2106 = vld [vmem:[%s6 + $0x138] sm:$0xff]
  %v2107 = vld [vmem:[%s6 + $0x140] sm:$0xff]
  %v2108 = vld [vmem:[%s6 + $0x148] sm:$0xff]
  %v2109 = vld [vmem:[%s6 + $0x150] sm:$0xff]
  %v2110 = vld [vmem:[%s6 + $0x158] sm:$0xff]
  %v2111 = vld [vmem:[%s6 + $0x160] sm:$0xff]
  %v2112 = vld [vmem:[%s6 + $0x168] sm:$0xff]
  %v2113 = vld [vmem:[%s6 + $0x170] sm:$0xff]
  %v2114 = vld [vmem:[%s6 + $0x178] sm:$0xff]
  %v2115 = vld [vmem:[%s8] sm:$0x1]
  %v2117 = vlaneseq
  %v2118 = vshrl.u32 %v2117, 7
  %v2119 = vsub.s32 0, %v2118
  %v2120 = vrot.slane %v2115, %v2119
  %2122 = vmatprep.subr.mxu0 %v2068
  %2123 = vmatpush1.msra.mxu0 %v2067
  %2124 = vmatprep.subr.mxu0 %v2071
  %2125 = vmatpush1.msra.mxu0 %v2070
  %2126 = vmatprep.subr.mxu0 %v2074
  %2127 = vmatpush1.msra.mxu0 %v2073
  %2128 = vmatprep.subr.mxu0 %v2077
  %2129 = vmatpush1.msra.mxu0 %v2076
  %2130 = vmatprep.subr.mxu0 %v2080
  %2131 = vmatpush1.msra.mxu0 %v2079
  %2132 = vmatprep.subr.mxu0 %v2083
  %2133 = vmatpush1.msra.mxu0 %v2082
  %2134 = vmatprep.subr.mxu0 %v2086
  %2135 = vmatpush1.msra.mxu0 %v2085
  %2136 = vmatprep.subr.mxu0 %v2089
  %2137 = vmatpush1.msra.mxu0 %v2088
  %2138 = vmatprep.subr.mxu0 %v2092
  %2139 = vmatpush1.msra.mxu0 %v2091
  %2140 = vmatprep.subr.mxu0 %v2095
  %2141 = vmatpush1.msra.mxu0 %v2094
  %2142 = vmatprep.subr.mxu0 %v2098
  %2143 = vmatpush1.msra.mxu0 %v2097
  %2144 = vmatprep.subr.mxu0 %v2101
  %2145 = vmatpush1.msra.mxu0 %v2100
  %2146 = vmatprep.subr.mxu0 %v2104
  %2147 = vmatpush1.msra.mxu0 %v2103
  %2148 = vmatprep.subr.mxu0 %v2107
  %2149 = vmatpush1.msra.mxu0 %v2106
  %2150 = vmatprep.subr.mxu0 %v2110
  %2151 = vmatpush1.msra.mxu0 %v2109
  %2152 = vmatprep.subr.mxu0 %v2113
  %2153 = vmatpush1.msra.mxu0 %v2112
  %2154 = vmatprep.subr.mxu0 0.0
  %2155 = vmatpush1.msra.mxu0 0.0
  %2156 = vmatprep.subr.mxu0 0.0
  %2157 = vmatpush1.msra.mxu0 0.0
  %2158 = vmatprep.subr.mxu0 0.0
  %2159 = vmatpush1.msra.mxu0 0.0
  %2160 = vmatprep.subr.mxu0 0.0
  %2161 = vmatpush1.msra.mxu0 0.0
  %2162 = vmatprep.subr.mxu0 0.0
  %2163 = vmatpush1.msra.mxu0 0.0
  %2164 = vmatprep.subr.mxu0 0.0
  %2165 = vmatpush1.msra.mxu0 0.0
  %2166 = vmatprep.subr.mxu0 0.0
  %2167 = vmatpush1.msra.mxu0 0.0
  %2168 = vmatprep.subr.mxu0 0.0
  %2169 = vmatpush1.msra.mxu0 0.0
  %2170 = vmatprep.subr.mxu0 0.0
  %2171 = vmatpush1.msra.mxu0 0.0
  %2172 = vmatprep.subr.mxu0 0.0
  %2173 = vmatpush1.msra.mxu0 0.0
  %2174 = vmatprep.subr.mxu0 0.0
  %2175 = vmatpush1.msra.mxu0 0.0
  %2176 = vmatprep.subr.mxu0 0.0
  %2177 = vmatpush1.msra.mxu0 0.0
  %2178 = vmatprep.subr.mxu0 0.0
  %2179 = vmatpush1.msra.mxu0 0.0
  %2180 = vmatprep.subr.mxu0 0.0
  %2181 = vmatpush1.msra.mxu0 0.0
  %2182 = vmatprep.subr.mxu0 0.0
  %2183 = vmatpush1.msra.mxu0 0.0
  %2184 = vmatprep.subr.mxu0 0.0
  %2185 = vmatpush1.msra.mxu0 0.0
  %2186 = vmatprep.mubr.f32.mxu0 0.0
  %2187 = vmatmul.mubr.f32.gmra.mrb[0].mxu0 0.0
  %v2188 = vpop.f32.mrb[0].mxu0
  %v2189 = vadd.f32 0.0, %v2188
  %v2190 = vpop.f32.mrb[0].mxu0
  %v2191 = vadd.f32 0.0, %v2190
  %2192 = vdwg.mxu0
  %2193 = vmatprep.subr.mxu0 0.0
  %2194 = vmatpush1.msra.mxu0 %v2069
  %2195 = vmatprep.subr.mxu0 0.0
  %2196 = vmatpush1.msra.mxu0 %v2072
  %2197 = vmatprep.subr.mxu0 0.0
  %2198 = vmatpush1.msra.mxu0 %v2075
  %2199 = vmatprep.subr.mxu0 0.0
  %2200 = vmatpush1.msra.mxu0 %v2078
  %2201 = vmatprep.subr.mxu0 0.0
  %2202 = vmatpush1.msra.mxu0 %v2081
  %2203 = vmatprep.subr.mxu0 0.0
  %2204 = vmatpush1.msra.mxu0 %v2084
  %2205 = vmatprep.subr.mxu0 0.0
  %2206 = vmatpush1.msra.mxu0 %v2087
  %2207 = vmatprep.subr.mxu0 0.0
  %2208 = vmatpush1.msra.mxu0 %v2090
  %2209 = vmatprep.subr.mxu0 0.0
  %2210 = vmatpush1.msra.mxu0 %v2093
  %2211 = vmatprep.subr.mxu0 0.0
  %2212 = vmatpush1.msra.mxu0 %v2096
  %2213 = vmatprep.subr.mxu0 0.0
  %2214 = vmatpush1.msra.mxu0 %v2099
  %2215 = vmatprep.subr.mxu0 0.0
  %2216 = vmatpush1.msra.mxu0 %v2102
  %2217 = vmatprep.subr.mxu0 0.0
  %2218 = vmatpush1.msra.mxu0 %v2105
  %2219 = vmatprep.subr.mxu0 0.0
  %2220 = vmatpush1.msra.mxu0 %v2108
  %2221 = vmatprep.subr.mxu0 0.0
  %2222 = vmatpush1.msra.mxu0 %v2111
  %2223 = vmatprep.subr.mxu0 0.0
  %2224 = vmatpush1.msra.mxu0 %v2114
  %2225 = vmatprep.subr.mxu0 0.0
  %2226 = vmatpush1.msra.mxu0 0.0
  %2227 = vmatprep.subr.mxu0 0.0
  %2228 = vmatpush1.msra.mxu0 0.0
  %2229 = vmatprep.subr.mxu0 0.0
  %2230 = vmatpush1.msra.mxu0 0.0
  %2231 = vmatprep.subr.mxu0 0.0
  %2232 = vmatpush1.msra.mxu0 0.0
  %2233 = vmatprep.subr.mxu0 0.0
  %2234 = vmatpush1.msra.mxu0 0.0
  %2235 = vmatprep.subr.mxu0 0.0
  %2236 = vmatpush1.msra.mxu0 0.0
  %2237 = vmatprep.subr.mxu0 0.0
  %2238 = vmatpush1.msra.mxu0 0.0
  %2239 = vmatprep.subr.mxu0 0.0
  %2240 = vmatpush1.msra.mxu0 0.0
  %2241 = vmatprep.subr.mxu0 0.0
  %2242 = vmatpush1.msra.mxu0 0.0
  %2243 = vmatprep.subr.mxu0 0.0
  %2244 = vmatpush1.msra.mxu0 0.0
  %2245 = vmatprep.subr.mxu0 0.0
  %2246 = vmatpush1.msra.mxu0 0.0
  %2247 = vmatprep.subr.mxu0 0.0
  %2248 = vmatpush1.msra.mxu0 0.0
  %2249 = vmatprep.subr.mxu0 0.0
  %2250 = vmatpush1.msra.mxu0 0.0
  %2251 = vmatprep.subr.mxu0 0.0
  %2252 = vmatpush1.msra.mxu0 0.0
  %2253 = vmatprep.subr.mxu0 0.0
  %2254 = vmatpush1.msra.mxu0 0.0
  %2255 = vmatprep.subr.mxu0 0.0
  %2256 = vmatpush1.msra.mxu0 0.0
  %2257 = vmatprep.mubr.f32.mxu0 0.0
  %2258 = vmatmul.mubr.f32.gmra.mrb[0].mxu0 0.0
  %v2259 = vpop.f32.mrb[0].mxu0
  %v2260 = vadd.f32 0.0, %v2259
  %v2261 = vpop.f32.mrb[0].mxu0
  %2262 = vdwg.mxu0
  %v2263 = vld [vmem:[#allocation2] sm:$0xff]
  %v2264 = vld [vmem:[#allocation2 + $0x8] sm:$0xff]
  %v2265 = vld [vmem:[#allocation2 + $0x10] sm:$0xff]
  %v2266 = vadd.f32 %v2263, %v2189
  %v2267 = vadd.f32 %v2264, %v2191
  %v2268 = vxor.u32 %v2266, 2147483648
  %v2269 = vxor.u32 %v2267, 2147483648
  %v2270 = vmul.f32 %v2268, 1.442695
  %v2271 = vpow.pop %v2270
  %v2272 = vmul.f32 %v2269, 1.442695
  %v2273 = vpow.pop %v2272
  %v2274 = vadd.f32 %v2271, 1.0
  %v2275 = vadd.f32 %v2273, 1.0
  %v2276 = vrcp.pop %v2274
  %v2277 = vmul.f32 1.0, %v2276
  %v2278 = vrcp.pop %v2275
  %v2279 = vmul.f32 1.0, %v2278
  %v2280 = vadd.f32 %v2260, %v2120
  %v2281 = vmul.f32 %v2277, %v2280
  %v2282 = vadd.f32 %v2265, %v2281
  %v2283 = vtanh.pop %v2282
  %v2284 = vsub.f32 1.0, %v2279
  %v2285 = vmul.f32 %v2284, %v2283
  %v2286 = vmul.f32 %v2279, 0.0
  %v2287 = vadd.f32 %v2285, %v2286
  %2288 = vst [vmem:[#allocation4] sm:$0xff] %v2287
  %2289 = vmatprep.subr.mxu0 %v2068
  %2290 = vmatpush1.msra.mxu0 %v2067
  %2291 = vmatprep.subr.mxu0 %v2071
  %2292 = vmatpush1.msra.mxu0 %v2070
  %2293 = vmatprep.subr.mxu0 %v2074
  %2294 = vmatpush1.msra.mxu0 %v2073
  %2295 = vmatprep.subr.mxu0 %v2077
  %2296 = vmatpush1.msra.mxu0 %v2076
  %2297 = vmatprep.subr.mxu0 %v2080
  %2298 = vmatpush1.msra.mxu0 %v2079
  %2299 = vmatprep.subr.mxu0 %v2083
  %2300 = vmatpush1.msra.mxu0 %v2082
  %2301 = vmatprep.subr.mxu0 %v2086
  %2302 = vmatpush1.msra.mxu0 %v2085
  %2303 = vmatprep.subr.mxu0 %v2089
  %2304 = vmatpush1.msra.mxu0 %v2088
  %2305 = vmatprep.subr.mxu0 %v2092
  %2306 = vmatpush1.msra.mxu0 %v2091
  %2307 = vmatprep.subr.mxu0 %v2095
  %2308 = vmatpush1.msra.mxu0 %v2094
  %2309 = vmatprep.subr.mxu0 %v2098
  %2310 = vmatpush1.msra.mxu0 %v2097
  %2311 = vmatprep.subr.mxu0 %v2101
  %2312 = vmatpush1.msra.mxu0 %v2100
  %2313 = vmatprep.subr.mxu0 %v2104
  %2314 = vmatpush1.msra.mxu0 %v2103
  %2315 = vmatprep.subr.mxu0 %v2107
  %2316 = vmatpush1.msra.mxu0 %v2106
  %2317 = vmatprep.subr.mxu0 %v2110
  %2318 = vmatpush1.msra.mxu0 %v2109
  %2319 = vmatprep.subr.mxu0 %v2113
  %2320 = vmatpush1.msra.mxu0 %v2112
  %2321 = vmatprep.subr.mxu0 0.0
  %2322 = vmatpush1.msra.mxu0 0.0
  %2323 = vmatprep.subr.mxu0 0.0
  %2324 = vmatpush1.msra.mxu0 0.0
  %2325 = vmatprep.subr.mxu0 0.0
  %2326 = vmatpush1.msra.mxu0 0.0
  %2327 = vmatprep.subr.mxu0 0.0
  %2328 = vmatpush1.msra.mxu0 0.0
  %2329 = vmatprep.subr.mxu0 0.0
  %2330 = vmatpush1.msra.mxu0 0.0
  %2331 = vmatprep.subr.mxu0 0.0
  %2332 = vmatpush1.msra.mxu0 0.0
  %2333 = vmatprep.subr.mxu0 0.0
  %2334 = vmatpush1.msra.mxu0 0.0
  %2335 = vmatprep.subr.mxu0 0.0
  %2336 = vmatpush1.msra.mxu0 0.0
  %2337 = vmatprep.subr.mxu0 0.0
  %2338 = vmatpush1.msra.mxu0 0.0
  %2339 = vmatprep.subr.mxu0 0.0
  %2340 = vmatpush1.msra.mxu0 0.0
  %2341 = vmatprep.subr.mxu0 0.0
  %2342 = vmatpush1.msra.mxu0 0.0
  %2343 = vmatprep.subr.mxu0 0.0
  %2344 = vmatpush1.msra.mxu0 0.0
  %2345 = vmatprep.subr.mxu0 0.0
  %2346 = vmatpush1.msra.mxu0 0.0
  %2347 = vmatprep.subr.mxu0 0.0
  %2348 = vmatpush1.msra.mxu0 0.0
  %2349 = vmatprep.subr.mxu0 0.0
  %2350 = vmatpush1.msra.mxu0 0.0
  %2351 = vmatprep.subr.mxu0 0.0
  %2352 = vmatpush1.msra.mxu0 0.0
  %2353 = vmatprep.mubr.f32.mxu0 0.0
  %2354 = vmatmul.mubr.f32.gmra.mrb[0].mxu0 %v2287
  %v2355 = vpop.f32.mrb[0].mxu0
  %v2356 = vadd.f32 0.0, %v2355
  %v2357 = vpop.f32.mrb[0].mxu0
  %v2358 = vadd.f32 0.0, %v2357
  %2359 = vdwg.mxu0
  %2360 = vmatprep.subr.mxu0 0.0
  %2361 = vmatpush1.msra.mxu0 %v2069
  %2362 = vmatprep.subr.mxu0 0.0
  %2363 = vmatpush1.msra.mxu0 %v2072
  %2364 = vmatprep.subr.mxu0 0.0
  %2365 = vmatpush1.msra.mxu0 %v2075
  %2366 = vmatprep.subr.mxu0 0.0
  %2367 = vmatpush1.msra.mxu0 %v2078
  %2368 = vmatprep.subr.mxu0 0.0
  %2369 = vmatpush1.msra.mxu0 %v2081
  %2370 = vmatprep.subr.mxu0 0.0
  %2371 = vmatpush1.msra.mxu0 %v2084
  %2372 = vmatprep.subr.mxu0 0.0
  %2373 = vmatpush1.msra.mxu0 %v2087
  %2374 = vmatprep.subr.mxu0 0.0
  %2375 = vmatpush1.msra.mxu0 %v2090
  %2376 = vmatprep.subr.mxu0 0.0
  %2377 = vmatpush1.msra.mxu0 %v2093
  %2378 = vmatprep.subr.mxu0 0.0
  %2379 = vmatpush1.msra.mxu0 %v2096
  %2380 = vmatprep.subr.mxu0 0.0
  %2381 = vmatpush1.msra.mxu0 %v2099
  %2382 = vmatprep.subr.mxu0 0.0
  %2383 = vmatpush1.msra.mxu0 %v2102
  %2384 = vmatprep.subr.mxu0 0.0
  %2385 = vmatpush1.msra.mxu0 %v2105
  %2386 = vmatprep.subr.mxu0 0.0
  %2387 = vmatpush1.msra.mxu0 %v2108
  %2388 = vmatprep.subr.mxu0 0.0
  %2389 = vmatpush1.msra.mxu0 %v2111
  %2390 = vmatprep.subr.mxu0 0.0
  %2391 = vmatpush1.msra.mxu0 %v2114
  %2392 = vmatprep.subr.mxu0 0.0
  %2393 = vmatpush1.msra.mxu0 0.0
  %2394 = vmatprep.subr.mxu0 0.0
  %2395 = vmatpush1.msra.mxu0 0.0
  %2396 = vmatprep.subr.mxu0 0.0
  %2397 = vmatpush1.msra.mxu0 0.0
  %2398 = vmatprep.subr.mxu0 0.0
  %2399 = vmatpush1.msra.mxu0 0.0
  %2400 = vmatprep.subr.mxu0 0.0
  %2401 = vmatpush1.msra.mxu0 0.0
  %2402 = vmatprep.subr.mxu0 0.0
  %2403 = vmatpush1.msra.mxu0 0.0
  %2404 = vmatprep.subr.mxu0 0.0
  %2405 = vmatpush1.msra.mxu0 0.0
  %2406 = vmatprep.subr.mxu0 0.0
  %2407 = vmatpush1.msra.mxu0 0.0
  %2408 = vmatprep.subr.mxu0 0.0
  %2409 = vmatpush1.msra.mxu0 0.0
  %2410 = vmatprep.subr.mxu0 0.0
  %2411 = vmatpush1.msra.mxu0 0.0
  %2412 = vmatprep.subr.mxu0 0.0
  %2413 = vmatpush1.msra.mxu0 0.0
  %2414 = vmatprep.subr.mxu0 0.0
  %2415 = vmatpush1.msra.mxu0 0.0
  %2416 = vmatprep.subr.mxu0 0.0
  %2417 = vmatpush1.msra.mxu0 0.0
  %2418 = vmatprep.subr.mxu0 0.0
  %2419 = vmatpush1.msra.mxu0 0.0
  %2420 = vmatprep.subr.mxu0 0.0
  %2421 = vmatpush1.msra.mxu0 0.0
  %2422 = vmatprep.subr.mxu0 0.0
  %2423 = vmatpush1.msra.mxu0 0.0
  %2424 = vmatprep.mubr.f32.mxu0 0.0
  %2425 = vmatmul.mubr.f32.gmra.mrb[0].mxu0 %v2287
  %v2426 = vpop.f32.mrb[0].mxu0
  %v2427 = vadd.f32 0.0, %v2426
  %v2428 = vpop.f32.mrb[0].mxu0
  %2429 = vdwg.mxu0
  %v2430 = vld [vmem:[#allocation2 + $0x18] sm:$0xff]
  %v2431 = vld [vmem:[#allocation2 + $0x20] sm:$0xff]
  %v2432 = vld [vmem:[#allocation2 + $0x28] sm:$0xff]
  %v2433 = vadd.f32 %v2430, %v2356
  %v2434 = vadd.f32 %v2431, %v2358
  %v2435 = vxor.u32 %v2433, 2147483648
  %v2436 = vxor.u32 %v2434, 2147483648
  %v2437 = vmul.f32 %v2435, 1.442695
  %v2438 = vpow.pop %v2437
  %v2439 = vmul.f32 %v2436, 1.442695
  %v2440 = vpow.pop %v2439
  %v2441 = vadd.f32 %v2438, 1.0
  %v2442 = vadd.f32 %v2440, 1.0
  %v2443 = vrcp.pop %v2441
  %v2444 = vmul.f32 1.0, %v2443
  %v2445 = vrcp.pop %v2442
  %v2446 = vmul.f32 1.0, %v2445
  %v2447 = vadd.f32 %v2427, %v2120
  %v2448 = vmul.f32 %v2444, %v2447
  %v2449 = vadd.f32 %v2432, %v2448
  %v2450 = vtanh.pop %v2449
  %v2451 = vsub.f32 1.0, %v2446
  %v2452 = vmul.f32 %v2451, %v2450
  %v2453 = vmul.f32 %v2446, %v2287
  %v2454 = vadd.f32 %v2452, %v2453
  %2455 = vst [vmem:[#allocation4 + $0x8] sm:$0xff] %v2454
  %2456 = vmatprep.subr.mxu0 %v2068
  %2457 = vmatpush1.msra.mxu0 %v2067
  %2458 = vmatprep.subr.mxu0 %v2071
  %2459 = vmatpush1.msra.mxu0 %v2070
  %2460 = vmatprep.subr.mxu0 %v2074
  %2461 = vmatpush1.msra.mxu0 %v2073
  %2462 = vmatprep.subr.mxu0 %v2077
  %2463 = vmatpush1.msra.mxu0 %v2076
  %2464 = vmatprep.subr.mxu0 %v2080
  %2465 = vmatpush1.msra.mxu0 %v2079
  %2466 = vmatprep.subr.mxu0 %v2083
  %2467 = vmatpush1.msra.mxu0 %v2082
  %2468 = vmatprep.subr.mxu0 %v2086
  %2469 = vmatpush1.msra.mxu0 %v2085
  %2470 = vmatprep.subr.mxu0 %v2089
  %2471 = vmatpush1.msra.mxu0 %v2088
  %2472 = vmatprep.subr.mxu0 %v2092
  %2473 = vmatpush1.msra.mxu0 %v2091
  %2474 = vmatprep.subr.mxu0 %v2095
  %2475 = vmatpush1.msra.mxu0 %v2094
  %2476 = vmatprep.subr.mxu0 %v2098
  %2477 = vmatpush1.msra.mxu0 %v2097
  %2478 = vmatprep.subr.mxu0 %v2101
  %2479 = vmatpush1.msra.mxu0 %v2100
  %2480 = vmatprep.subr.mxu0 %v2104
  %2481 = vmatpush1.msra.mxu0 %v2103
  %2482 = vmatprep.subr.mxu0 %v2107
  %2483 = vmatpush1.msra.mxu0 %v2106
  %2484 = vmatprep.subr.mxu0 %v2110
  %2485 = vmatpush1.msra.mxu0 %v2109
  %2486 = vmatprep.subr.mxu0 %v2113
  %2487 = vmatpush1.msra.mxu0 %v2112
  %2488 = vmatprep.subr.mxu0 0.0
  %2489 = vmatpush1.msra.mxu0 0.0
  %2490 = vmatprep.subr.mxu0 0.0
  %2491 = vmatpush1.msra.mxu0 0.0
  %2492 = vmatprep.subr.mxu0 0.0
  %2493 = vmatpush1.msra.mxu0 0.0
  %2494 = vmatprep.subr.mxu0 0.0
  %2495 = vmatpush1.msra.mxu0 0.0
  %2496 = vmatprep.subr.mxu0 0.0
  %2497 = vmatpush1.msra.mxu0 0.0
  %2498 = vmatprep.subr.mxu0 0.0
  %2499 = vmatpush1.msra.mxu0 0.0
  %2500 = vmatprep.subr.mxu0 0.0
  %2501 = vmatpush1.msra.mxu0 0.0
  %2502 = vmatprep.subr.mxu0 0.0
  %2503 = vmatpush1.msra.mxu0 0.0
  %2504 = vmatprep.subr.mxu0 0.0
  %2505 = vmatpush1.msra.mxu0 0.0
  %2506 = vmatprep.subr.mxu0 0.0
  %2507 = vmatpush1.msra.mxu0 0.0
  %2508 = vmatprep.subr.mxu0 0.0
  %2509 = vmatpush1.msra.mxu0 0.0
  %2510 = vmatprep.subr.mxu0 0.0
  %2511 = vmatpush1.msra.mxu0 0.0
  %2512 = vmatprep.subr.mxu0 0.0
  %2513 = vmatpush1.msra.mxu0 0.0
  %2514 = vmatprep.subr.mxu0 0.0
  %2515 = vmatpush1.msra.mxu0 0.0
  %2516 = vmatprep.subr.mxu0 0.0
  %2517 = vmatpush1.msra.mxu0 0.0
  %2518 = vmatprep.subr.mxu0 0.0
  %2519 = vmatpush1.msra.mxu0 0.0
  %2520 = vmatprep.mubr.f32.mxu0 0.0
  %2521 = vmatmul.mubr.f32.gmra.mrb[0].mxu0 %v2454
  %v2522 = vpop.f32.mrb[0].mxu0
  %v2523 = vadd.f32 0.0, %v2522
  %v2524 = vpop.f32.mrb[0].mxu0
  %v2525 = vadd.f32 0.0, %v2524
  %2526 = vdwg.mxu0
  %2527 = vmatprep.subr.mxu0 0.0
  %2528 = vmatpush1.msra.mxu0 %v2069
  %2529 = vmatprep.subr.mxu0 0.0
  %2530 = vmatpush1.msra.mxu0 %v2072
  %2531 = vmatprep.subr.mxu0 0.0
  %2532 = vmatpush1.msra.mxu0 %v2075
  %2533 = vmatprep.subr.mxu0 0.0
  %2534 = vmatpush1.msra.mxu0 %v2078
  %2535 = vmatprep.subr.mxu0 0.0
  %2536 = vmatpush1.msra.mxu0 %v2081
  %2537 = vmatprep.subr.mxu0 0.0
  %2538 = vmatpush1.msra.mxu0 %v2084
  %2539 = vmatprep.subr.mxu0 0.0
  %2540 = vmatpush1.msra.mxu0 %v2087
  %2541 = vmatprep.subr.mxu0 0.0
  %2542 = vmatpush1.msra.mxu0 %v2090
  %2543 = vmatprep.subr.mxu0 0.0
  %2544 = vmatpush1.msra.mxu0 %v2093
  %2545 = vmatprep.subr.mxu0 0.0
  %2546 = vmatpush1.msra.mxu0 %v2096
  %2547 = vmatprep.subr.mxu0 0.0
  %2548 = vmatpush1.msra.mxu0 %v2099
  %2549 = vmatprep.subr.mxu0 0.0
  %2550 = vmatpush1.msra.mxu0 %v2102
  %2551 = vmatprep.subr.mxu0 0.0
  %2552 = vmatpush1.msra.mxu0 %v2105
  %2553 = vmatprep.subr.mxu0 0.0
  %2554 = vmatpush1.msra.mxu0 %v2108
  %2555 = vmatprep.subr.mxu0 0.0
  %2556 = vmatpush1.msra.mxu0 %v2111
  %2557 = vmatprep.subr.mxu0 0.0
  %2558 = vmatpush1.msra.mxu0 %v2114
  %2559 = vmatprep.subr.mxu0 0.0
  %2560 = vmatpush1.msra.mxu0 0.0
  %2561 = vmatprep.subr.mxu0 0.0
  %2562 = vmatpush1.msra.mxu0 0.0
  %2563 = vmatprep.subr.mxu0 0.0
  %2564 = vmatpush1.msra.mxu0 0.0
  %2565 = vmatprep.subr.mxu0 0.0
  %2566 = vmatpush1.msra.mxu0 0.0
  %2567 = vmatprep.subr.mxu0 0.0
  %2568 = vmatpush1.msra.mxu0 0.0
  %2569 = vmatprep.subr.mxu0 0.0
  %2570 = vmatpush1.msra.mxu0 0.0
  %2571 = vmatprep.subr.mxu0 0.0
  %2572 = vmatpush1.msra.mxu0 0.0
  %2573 = vmatprep.subr.mxu0 0.0
  %2574 = vmatpush1.msra.mxu0 0.0
  %2575 = vmatprep.subr.mxu0 0.0
  %2576 = vmatpush1.msra.mxu0 0.0
  %2577 = vmatprep.subr.mxu0 0.0
  %2578 = vmatpush1.msra.mxu0 0.0
  %2579 = vmatprep.subr.mxu0 0.0
  %2580 = vmatpush1.msra.mxu0 0.0
  %2581 = vmatprep.subr.mxu0 0.0
  %2582 = vmatpush1.msra.mxu0 0.0
  %2583 = vmatprep.subr.mxu0 0.0
  %2584 = vmatpush1.msra.mxu0 0.0
  %2585 = vmatprep.subr.mxu0 0.0
  %2586 = vmatpush1.msra.mxu0 0.0
  %2587 = vmatprep.subr.mxu0 0.0
  %2588 = vmatpush1.msra.mxu0 0.0
  %2589 = vmatprep.subr.mxu0 0.0
  %2590 = vmatpush1.msra.mxu0 0.0
  %2591 = vmatprep.mubr.f32.mxu0 0.0
  %2592 = vmatmul.mubr.f32.gmra.mrb[0].mxu0 %v2454
  %v2593 = vpop.f32.mrb[0].mxu0
  %v2594 = vadd.f32 0.0, %v2593
  %v2595 = vpop.f32.mrb[0].mxu0
  %2596 = vdwg.mxu0
  %v2597 = vld [vmem:[#allocation2 + $0x30] sm:$0xff]
  %v2598 = vld [vmem:[#allocation2 + $0x38] sm:$0xff]
  %v2599 = vld [vmem:[#allocation2 + $0x40] sm:$0xff]
  %v2600 = vadd.f32 %v2597, %v2523
  %v2601 = vadd.f32 %v2598, %v2525
  %v2602 = vxor.u32 %v2600, 2147483648
  %v2603 = vxor.u32 %v2601, 2147483648
  %v2604 = vmul.f32 %v2602, 1.442695
  %v2605 = vpow.pop %v2604
  %v2606 = vmul.f32 %v2603, 1.442695
  %v2607 = vpow.pop %v2606
  %v2608 = vadd.f32 %v2605, 1.0
  %v2609 = vadd.f32 %v2607, 1.0
  %v2610 = vrcp.pop %v2608
  %v2611 = vmul.f32 1.0, %v2610
  %v2612 = vrcp.pop %v2609
  %v2613 = vmul.f32 1.0, %v2612
  %v2614 = vadd.f32 %v2594, %v2120
  %v2615 = vmul.f32 %v2611, %v2614
  %v2616 = vadd.f32 %v2599, %v2615
  %v2617 = vtanh.pop %v2616
  %v2618 = vsub.f32 1.0, %v2613
  %v2619 = vmul.f32 %v2618, %v2617
  %v2620 = vmul.f32 %v2613, %v2454
  %v2621 = vadd.f32 %v2619, %v2620
  %2622 = vst [vmem:[#allocation4 + $0x10] sm:$0xff] %v2621
  %2623 = vmatprep.subr.mxu0 %v2068
  %2624 = vmatpush1.msra.mxu0 %v2067
  %2625 = vmatprep.subr.mxu0 %v2071
  %2626 = vmatpush1.msra.mxu0 %v2070
  %2627 = vmatprep.subr.mxu0 %v2074
  %2628 = vmatpush1.msra.mxu0 %v2073
  %2629 = vmatprep.subr.mxu0 %v2077
  %2630 = vmatpush1.msra.mxu0 %v2076
  %2631 = vmatprep.subr.mxu0 %v2080
  %2632 = vmatpush1.msra.mxu0 %v2079
  %2633 = vmatprep.subr.mxu0 %v2083
  %2634 = vmatpush1.msra.mxu0 %v2082
  %2635 = vmatprep.subr.mxu0 %v2086
  %2636 = vmatpush1.msra.mxu0 %v2085
  %2637 = vmatprep.subr.mxu0 %v2089
  %2638 = vmatpush1.msra.mxu0 %v2088
  %2639 = vmatprep.subr.mxu0 %v2092
  %2640 = vmatpush1.msra.mxu0 %v2091
  %2641 = vmatprep.subr.mxu0 %v2095
  %2642 = vmatpush1.msra.mxu0 %v2094
  %2643 = vmatprep.subr.mxu0 %v2098
  %2644 = vmatpush1.msra.mxu0 %v2097
  %2645 = vmatprep.subr.mxu0 %v2101
  %2646 = vmatpush1.msra.mxu0 %v2100
  %2647 = vmatprep.subr.mxu0 %v2104
  %2648 = vmatpush1.msra.mxu0 %v2103
  %2649 = vmatprep.subr.mxu0 %v2107
  %2650 = vmatpush1.msra.mxu0 %v2106
  %2651 = vmatprep.subr.mxu0 %v2110
  %2652 = vmatpush1.msra.mxu0 %v2109
  %2653 = vmatprep.subr.mxu0 %v2113
  %2654 = vmatpush1.msra.mxu0 %v2112
  %2655 = vmatprep.subr.mxu0 0.0
  %2656 = vmatpush1.msra.mxu0 0.0
  %2657 = vmatprep.subr.mxu0 0.0
  %2658 = vmatpush1.msra.mxu0 0.0
  %2659 = vmatprep.subr.mxu0 0.0
  %2660 = vmatpush1.msra.mxu0 0.0
  %2661 = vmatprep.subr.mxu0 0.0
  %2662 = vmatpush1.msra.mxu0 0.0
  %2663 = vmatprep.subr.mxu0 0.0
  %2664 = vmatpush1.msra.mxu0 0.0
  %2665 = vmatprep.subr.mxu0 0.0
  %2666 = vmatpush1.msra.mxu0 0.0
  %2667 = vmatprep.subr.mxu0 0.0
  %2668 = vmatpush1.msra.mxu0 0.0
  %2669 = vmatprep.subr.mxu0 0.0
  %2670 = vmatpush1.msra.mxu0 0.0
  %2671 = vmatprep.subr.mxu0 0.0
  %2672 = vmatpush1.msra.mxu0 0.0
  %2673 = vmatprep.subr.mxu0 0.0
  %2674 = vmatpush1.msra.mxu0 0.0
  %2675 = vmatprep.subr.mxu0 0.0
  %2676 = vmatpush1.msra.mxu0 0.0
  %2677 = vmatprep.subr.mxu0 0.0
  %2678 = vmatpush1.msra.mxu0 0.0
  %2679 = vmatprep.subr.mxu0 0.0
  %2680 = vmatpush1.msra.mxu0 0.0
  %2681 = vmatprep.subr.mxu0 0.0
  %2682 = vmatpush1.msra.mxu0 0.0
  %2683 = vmatprep.subr.mxu0 0.0
  %2684 = vmatpush1.msra.mxu0 0.0
  %2685 = vmatprep.subr.mxu0 0.0
  %2686 = vmatpush1.msra.mxu0 0.0
  %2687 = vmatprep.mubr.f32.mxu0 0.0
  %2688 = vmatmul.mubr.f32.gmra.mrb[0].mxu0 %v2621
  %v2689 = vpop.f32.mrb[0].mxu0
  %v2690 = vadd.f32 0.0, %v2689
  %v2691 = vpop.f32.mrb[0].mxu0
  %v2692 = vadd.f32 0.0, %v2691
  %2693 = vdwg.mxu0
  %2694 = vmatprep.subr.mxu0 0.0
  %2695 = vmatpush1.msra.mxu0 %v2069
  %2696 = vmatprep.subr.mxu0 0.0
  %2697 = vmatpush1.msra.mxu0 %v2072
  %2698 = vmatprep.subr.mxu0 0.0
  %2699 = vmatpush1.msra.mxu0 %v2075
  %2700 = vmatprep.subr.mxu0 0.0
  %2701 = vmatpush1.msra.mxu0 %v2078
  %2702 = vmatprep.subr.mxu0 0.0
  %2703 = vmatpush1.msra.mxu0 %v2081
  %2704 = vmatprep.subr.mxu0 0.0
  %2705 = vmatpush1.msra.mxu0 %v2084
  %2706 = vmatprep.subr.mxu0 0.0
  %2707 = vmatpush1.msra.mxu0 %v2087
  %2708 = vmatprep.subr.mxu0 0.0
  %2709 = vmatpush1.msra.mxu0 %v2090
  %2710 = vmatprep.subr.mxu0 0.0
  %2711 = vmatpush1.msra.mxu0 %v2093
  %2712 = vmatprep.subr.mxu0 0.0
  %2713 = vmatpush1.msra.mxu0 %v2096
  %2714 = vmatprep.subr.mxu0 0.0
  %2715 = vmatpush1.msra.mxu0 %v2099
  %2716 = vmatprep.subr.mxu0 0.0
  %2717 = vmatpush1.msra.mxu0 %v2102
  %2718 = vmatprep.subr.mxu0 0.0
  %2719 = vmatpush1.msra.mxu0 %v2105
  %2720 = vmatprep.subr.mxu0 0.0
  %2721 = vmatpush1.msra.mxu0 %v2108
  %2722 = vmatprep.subr.mxu0 0.0
  %2723 = vmatpush1.msra.mxu0 %v2111
  %2724 = vmatprep.subr.mxu0 0.0
  %2725 = vmatpush1.msra.mxu0 %v2114
  %2726 = vmatprep.subr.mxu0 0.0
  %2727 = vmatpush1.msra.mxu0 0.0
  %2728 = vmatprep.subr.mxu0 0.0
  %2729 = vmatpush1.msra.mxu0 0.0
  %2730 = vmatprep.subr.mxu0 0.0
  %2731 = vmatpush1.msra.mxu0 0.0
  %2732 = vmatprep.subr.mxu0 0.0
  %2733 = vmatpush1.msra.mxu0 0.0
  %2734 = vmatprep.subr.mxu0 0.0
  %2735 = vmatpush1.msra.mxu0 0.0
  %2736 = vmatprep.subr.mxu0 0.0
  %2737 = vmatpush1.msra.mxu0 0.0
  %2738 = vmatprep.subr.mxu0 0.0
  %2739 = vmatpush1.msra.mxu0 0.0
  %2740 = vmatprep.subr.mxu0 0.0
  %2741 = vmatpush1.msra.mxu0 0.0
  %2742 = vmatprep.subr.mxu0 0.0
  %2743 = vmatpush1.msra.mxu0 0.0
  %2744 = vmatprep.subr.mxu0 0.0
  %2745 = vmatpush1.msra.mxu0 0.0
  %2746 = vmatprep.subr.mxu0 0.0
  %2747 = vmatpush1.msra.mxu0 0.0
  %2748 = vmatprep.subr.mxu0 0.0
  %2749 = vmatpush1.msra.mxu0 0.0
  %2750 = vmatprep.subr.mxu0 0.0
  %2751 = vmatpush1.msra.mxu0 0.0
  %2752 = vmatprep.subr.mxu0 0.0
  %2753 = vmatpush1.msra.mxu0 0.0
  %2754 = vmatprep.subr.mxu0 0.0
  %2755 = vmatpush1.msra.mxu0 0.0
  %2756 = vmatprep.subr.mxu0 0.0
  %2757 = vmatpush1.msra.mxu0 0.0
  %2758 = vmatprep.mubr.f32.mxu0 0.0
  %2759 = vmatmul.mubr.f32.gmra.mrb[0].mxu0 %v2621
  %v2760 = vpop.f32.mrb[0].mxu0
  %v2761 = vadd.f32 0.0, %v2760
  %v2762 = vpop.f32.mrb[0].mxu0
  %2763 = vdwg.mxu0
  %v2764 = vld [vmem:[#allocation2 + $0x48] sm:$0xff]
  %v2765 = vld [vmem:[#allocation2 + $0x50] sm:$0xff]
  %v2766 = vld [vmem:[#allocation2 + $0x58] sm:$0xff]
  %v2767 = vadd.f32 %v2764, %v2690
  %v2768 = vadd.f32 %v2765, %v2692
  %v2769 = vxor.u32 %v2767, 2147483648
  %v2770 = vxor.u32 %v2768, 2147483648
  %v2771 = vmul.f32 %v2769, 1.442695
  %v2772 = vpow.pop %v2771
  %v2773 = vmul.f32 %v2770, 1.442695
  %v2774 = vpow.pop %v2773
  %v2775 = vadd.f32 %v2772, 1.0
  %v2776 = vadd.f32 %v2774, 1.0
  %v2777 = vrcp.pop %v2775
  %v2778 = vmul.f32 1.0, %v2777
  %v2779 = vrcp.pop %v2776
  %v2780 = vmul.f32 1.0, %v2779
  %v2781 = vadd.f32 %v2761, %v2120
  %v2782 = vmul.f32 %v2778, %v2781
  %v2783 = vadd.f32 %v2766, %v2782
  %v2784 = vtanh.pop %v2783
  %v2785 = vsub.f32 1.0, %v2780
  %v2786 = vmul.f32 %v2785, %v2784
  %v2787 = vmul.f32 %v2780, %v2621
  %v2788 = vadd.f32 %v2786, %v2787
  %2789 = vst [vmem:[#allocation4 + $0x18] sm:$0xff] %v2788
  %2790 = vmatprep.subr.mxu0 %v2068
  %2791 = vmatpush1.msra.mxu0 %v2067
  %2792 = vmatprep.subr.mxu0 %v2071
  %2793 = vmatpush1.msra.mxu0 %v2070
  %2794 = vmatprep.subr.mxu0 %v2074
  %2795 = vmatpush1.msra.mxu0 %v2073
  %2796 = vmatprep.subr.mxu0 %v2077
  %2797 = vmatpush1.msra.mxu0 %v2076
  %2798 = vmatprep.subr.mxu0 %v2080
  %2799 = vmatpush1.msra.mxu0 %v2079
  %2800 = vmatprep.subr.mxu0 %v2083
  %2801 = vmatpush1.msra.mxu0 %v2082
  %2802 = vmatprep.subr.mxu0 %v2086
  %2803 = vmatpush1.msra.mxu0 %v2085
  %2804 = vmatprep.subr.mxu0 %v2089
  %2805 = vmatpush1.msra.mxu0 %v2088
  %2806 = vmatprep.subr.mxu0 %v2092
  %2807 = vmatpush1.msra.mxu0 %v2091
  %2808 = vmatprep.subr.mxu0 %v2095
  %2809 = vmatpush1.msra.mxu0 %v2094
  %2810 = vmatprep.subr.mxu0 %v2098
  %2811 = vmatpush1.msra.mxu0 %v2097
  %2812 = vmatprep.subr.mxu0 %v2101
  %2813 = vmatpush1.msra.mxu0 %v2100
  %2814 = vmatprep.subr.mxu0 %v2104
  %2815 = vmatpush1.msra.mxu0 %v2103
  %2816 = vmatprep.subr.mxu0 %v2107
  %2817 = vmatpush1.msra.mxu0 %v2106
  %2818 = vmatprep.subr.mxu0 %v2110
  %2819 = vmatpush1.msra.mxu0 %v2109
  %2820 = vmatprep.subr.mxu0 %v2113
  %2821 = vmatpush1.msra.mxu0 %v2112
  %2822 = vmatprep.subr.mxu0 0.0
  %2823 = vmatpush1.msra.mxu0 0.0
  %2824 = vmatprep.subr.mxu0 0.0
  %2825 = vmatpush1.msra.mxu0 0.0
  %2826 = vmatprep.subr.mxu0 0.0
  %2827 = vmatpush1.msra.mxu0 0.0
  %2828 = vmatprep.subr.mxu0 0.0
  %2829 = vmatpush1.msra.mxu0 0.0
  %2830 = vmatprep.subr.mxu0 0.0
  %2831 = vmatpush1.msra.mxu0 0.0
  %2832 = vmatprep.subr.mxu0 0.0
  %2833 = vmatpush1.msra.mxu0 0.0
  %2834 = vmatprep.subr.mxu0 0.0
  %2835 = vmatpush1.msra.mxu0 0.0
  %2836 = vmatprep.subr.mxu0 0.0
  %2837 = vmatpush1.msra.mxu0 0.0
  %2838 = vmatprep.subr.mxu0 0.0
  %2839 = vmatpush1.msra.mxu0 0.0
  %2840 = vmatprep.subr.mxu0 0.0
  %2841 = vmatpush1.msra.mxu0 0.0
  %2842 = vmatprep.subr.mxu0 0.0
  %2843 = vmatpush1.msra.mxu0 0.0
  %2844 = vmatprep.subr.mxu0 0.0
  %2845 = vmatpush1.msra.mxu0 0.0
  %2846 = vmatprep.subr.mxu0 0.0
  %2847 = vmatpush1.msra.mxu0 0.0
  %2848 = vmatprep.subr.mxu0 0.0
  %2849 = vmatpush1.msra.mxu0 0.0
  %2850 = vmatprep.subr.mxu0 0.0
  %2851 = vmatpush1.msra.mxu0 0.0
  %2852 = vmatprep.subr.mxu0 0.0
  %2853 = vmatpush1.msra.mxu0 0.0
  %2854 = vmatprep.mubr.f32.mxu0 0.0
  %2855 = vmatmul.mubr.f32.gmra.mrb[0].mxu0 %v2788
  %v2856 = vpop.f32.mrb[0].mxu0
  %v2857 = vadd.f32 0.0, %v2856
  %v2858 = vpop.f32.mrb[0].mxu0
  %v2859 = vadd.f32 0.0, %v2858
  %2860 = vdwg.mxu0
  %2861 = vmatprep.subr.mxu0 0.0
  %2862 = vmatpush1.msra.mxu0 %v2069
  %2863 = vmatprep.subr.mxu0 0.0
  %2864 = vmatpush1.msra.mxu0 %v2072
  %2865 = vmatprep.subr.mxu0 0.0
  %2866 = vmatpush1.msra.mxu0 %v2075
  %2867 = vmatprep.subr.mxu0 0.0
  %2868 = vmatpush1.msra.mxu0 %v2078
  %2869 = vmatprep.subr.mxu0 0.0
  %2870 = vmatpush1.msra.mxu0 %v2081
  %2871 = vmatprep.subr.mxu0 0.0
  %2872 = vmatpush1.msra.mxu0 %v2084
  %2873 = vmatprep.subr.mxu0 0.0
  %2874 = vmatpush1.msra.mxu0 %v2087
  %2875 = vmatprep.subr.mxu0 0.0
  %2876 = vmatpush1.msra.mxu0 %v2090
  %2877 = vmatprep.subr.mxu0 0.0
  %2878 = vmatpush1.msra.mxu0 %v2093
  %2879 = vmatprep.subr.mxu0 0.0
  %2880 = vmatpush1.msra.mxu0 %v2096
  %2881 = vmatprep.subr.mxu0 0.0
  %2882 = vmatpush1.msra.mxu0 %v2099
  %2883 = vmatprep.subr.mxu0 0.0
  %2884 = vmatpush1.msra.mxu0 %v2102
  %2885 = vmatprep.subr.mxu0 0.0
  %2886 = vmatpush1.msra.mxu0 %v2105
  %2887 = vmatprep.subr.mxu0 0.0
  %2888 = vmatpush1.msra.mxu0 %v2108
  %2889 = vmatprep.subr.mxu0 0.0
  %2890 = vmatpush1.msra.mxu0 %v2111
  %2891 = vmatprep.subr.mxu0 0.0
  %2892 = vmatpush1.msra.mxu0 %v2114
  %2893 = vmatprep.subr.mxu0 0.0
  %2894 = vmatpush1.msra.mxu0 0.0
  %2895 = vmatprep.subr.mxu0 0.0
  %2896 = vmatpush1.msra.mxu0 0.0
  %2897 = vmatprep.subr.mxu0 0.0
  %2898 = vmatpush1.msra.mxu0 0.0
  %2899 = vmatprep.subr.mxu0 0.0
  %2900 = vmatpush1.msra.mxu0 0.0
  %2901 = vmatprep.subr.mxu0 0.0
  %2902 = vmatpush1.msra.mxu0 0.0
  %2903 = vmatprep.subr.mxu0 0.0
  %2904 = vmatpush1.msra.mxu0 0.0
  %2905 = vmatprep.subr.mxu0 0.0
  %2906 = vmatpush1.msra.mxu0 0.0
  %2907 = vmatprep.subr.mxu0 0.0
  %2908 = vmatpush1.msra.mxu0 0.0
  %2909 = vmatprep.subr.mxu0 0.0
  %2910 = vmatpush1.msra.mxu0 0.0
  %2911 = vmatprep.subr.mxu0 0.0
  %2912 = vmatpush1.msra.mxu0 0.0
  %2913 = vmatprep.subr.mxu0 0.0
  %2914 = vmatpush1.msra.mxu0 0.0
  %2915 = vmatprep.subr.mxu0 0.0
  %2916 = vmatpush1.msra.mxu0 0.0
  %2917 = vmatprep.subr.mxu0 0.0
  %2918 = vmatpush1.msra.mxu0 0.0
  %2919 = vmatprep.subr.mxu0 0.0
  %2920 = vmatpush1.msra.mxu0 0.0
  %2921 = vmatprep.subr.mxu0 0.0
  %2922 = vmatpush1.msra.mxu0 0.0
  %2923 = vmatprep.subr.mxu0 0.0
  %2924 = vmatpush1.msra.mxu0 0.0
  %2925 = vmatprep.mubr.f32.mxu0 0.0
  %2926 = vmatmul.mubr.f32.gmra.mrb[0].mxu0 %v2788
  %v2927 = vpop.f32.mrb[0].mxu0
  %v2928 = vadd.f32 0.0, %v2927
  %v2929 = vpop.f32.mrb[0].mxu0
  %2930 = vdwg.mxu0
  %v2931 = vld [vmem:[#allocation2 + $0x60] sm:$0xff]
  %v2932 = vld [vmem:[#allocation2 + $0x68] sm:$0xff]
  %v2933 = vld [vmem:[#allocation2 + $0x70] sm:$0xff]
  %v2934 = vadd.f32 %v2931, %v2857
  %v2935 = vadd.f32 %v2932, %v2859
  %v2936 = vxor.u32 %v2934, 2147483648
  %v2937 = vxor.u32 %v2935, 2147483648
  %v2938 = vmul.f32 %v2936, 1.442695
  %v2939 = vpow.pop %v2938
  %v2940 = vmul.f32 %v2937, 1.442695
  %v2941 = vpow.pop %v2940
  %v2942 = vadd.f32 %v2939, 1.0
  %v2943 = vadd.f32 %v2941, 1.0
  %v2944 = vrcp.pop %v2942
  %v2945 = vmul.f32 1.0, %v2944
  %v2946 = vrcp.pop %v2943
  %v2947 = vmul.f32 1.0, %v2946
  %v2948 = vadd.f32 %v2928, %v2120
  %v2949 = vmul.f32 %v2945, %v2948
  %v2950 = vadd.f32 %v2933, %v2949
  %v2951 = vtanh.pop %v2950
  %v2952 = vsub.f32 1.0, %v2947
  %v2953 = vmul.f32 %v2952, %v2951
  %v2954 = vmul.f32 %v2947, %v2788
  %v2955 = vadd.f32 %v2953, %v2954
  %2956 = vst [vmem:[#allocation4 + $0x20] sm:$0xff] %v2955
  %2957 = vmatprep.subr.mxu0 %v2068
  %2958 = vmatpush1.msra.mxu0 %v2067
  %2959 = vmatprep.subr.mxu0 %v2071
  %2960 = vmatpush1.msra.mxu0 %v2070
  %2961 = vmatprep.subr.mxu0 %v2074
  %2962 = vmatpush1.msra.mxu0 %v2073
  %2963 = vmatprep.subr.mxu0 %v2077
  %2964 = vmatpush1.msra.mxu0 %v2076
  %2965 = vmatprep.subr.mxu0 %v2080
  %2966 = vmatpush1.msra.mxu0 %v2079
  %2967 = vmatprep.subr.mxu0 %v2083
  %2968 = vmatpush1.msra.mxu0 %v2082
  %2969 = vmatprep.subr.mxu0 %v2086
  %2970 = vmatpush1.msra.mxu0 %v2085
  %2971 = vmatprep.subr.mxu0 %v2089
  %2972 = vmatpush1.msra.mxu0 %v2088
  %2973 = vmatprep.subr.mxu0 %v2092
  %2974 = vmatpush1.msra.mxu0 %v2091
  %2975 = vmatprep.subr.mxu0 %v2095
  %2976 = vmatpush1.msra.mxu0 %v2094
  %2977 = vmatprep.subr.mxu0 %v2098
  %2978 = vmatpush1.msra.mxu0 %v2097
  %2979 = vmatprep.subr.mxu0 %v2101
  %2980 = vmatpush1.msra.mxu0 %v2100
  %2981 = vmatprep.subr.mxu0 %v2104
  %2982 = vmatpush1.msra.mxu0 %v2103
  %2983 = vmatprep.subr.mxu0 %v2107
  %2984 = vmatpush1.msra.mxu0 %v2106
  %2985 = vmatprep.subr.mxu0 %v2110
  %2986 = vmatpush1.msra.mxu0 %v2109
  %2987 = vmatprep.subr.mxu0 %v2113
  %2988 = vmatpush1.msra.mxu0 %v2112
  %2989 = vmatprep.subr.mxu0 0.0
  %2990 = vmatpush1.msra.mxu0 0.0
  %2991 = vmatprep.subr.mxu0 0.0
  %2992 = vmatpush1.msra.mxu0 0.0
  %2993 = vmatprep.subr.mxu0 0.0
  %2994 = vmatpush1.msra.mxu0 0.0
  %2995 = vmatprep.subr.mxu0 0.0
  %2996 = vmatpush1.msra.mxu0 0.0
  %2997 = vmatprep.subr.mxu0 0.0
  %2998 = vmatpush1.msra.mxu0 0.0
  %2999 = vmatprep.subr.mxu0 0.0
  %3000 = vmatpush1.msra.mxu0 0.0
  %3001 = vmatprep.subr.mxu0 0.0
  %3002 = vmatpush1.msra.mxu0 0.0
  %3003 = vmatprep.subr.mxu0 0.0
  %3004 = vmatpush1.msra.mxu0 0.0
  %3005 = vmatprep.subr.mxu0 0.0
  %3006 = vmatpush1.msra.mxu0 0.0
  %3007 = vmatprep.subr.mxu0 0.0
  %3008 = vmatpush1.msra.mxu0 0.0
  %3009 = vmatprep.subr.mxu0 0.0
  %3010 = vmatpush1.msra.mxu0 0.0
  %3011 = vmatprep.subr.mxu0 0.0
  %3012 = vmatpush1.msra.mxu0 0.0
  %3013 = vmatprep.subr.mxu0 0.0
  %3014 = vmatpush1.msra.mxu0 0.0
  %3015 = vmatprep.subr.mxu0 0.0
  %3016 = vmatpush1.msra.mxu0 0.0
  %3017 = vmatprep.subr.mxu0 0.0
  %3018 = vmatpush1.msra.mxu0 0.0
  %3019 = vmatprep.subr.mxu0 0.0
  %3020 = vmatpush1.msra.mxu0 0.0
  %3021 = vmatprep.mubr.f32.mxu0 0.0
  %3022 = vmatmul.mubr.f32.gmra.mrb[0].mxu0 %v2955
  %v3023 = vpop.f32.mrb[0].mxu0
  %v3024 = vadd.f32 0.0, %v3023
  %v3025 = vpop.f32.mrb[0].mxu0
  %v3026 = vadd.f32 0.0, %v3025
  %3027 = vdwg.mxu0
  %3028 = vmatprep.subr.mxu0 0.0
  %3029 = vmatpush1.msra.mxu0 %v2069
  %3030 = vmatprep.subr.mxu0 0.0
  %3031 = vmatpush1.msra.mxu0 %v2072
  %3032 = vmatprep.subr.mxu0 0.0
  %3033 = vmatpush1.msra.mxu0 %v2075
  %3034 = vmatprep.subr.mxu0 0.0
  %3035 = vmatpush1.msra.mxu0 %v2078
  %3036 = vmatprep.subr.mxu0 0.0
  %3037 = vmatpush1.msra.mxu0 %v2081
  %3038 = vmatprep.subr.mxu0 0.0
  %3039 = vmatpush1.msra.mxu0 %v2084
  %3040 = vmatprep.subr.mxu0 0.0
  %3041 = vmatpush1.msra.mxu0 %v2087
  %3042 = vmatprep.subr.mxu0 0.0
  %3043 = vmatpush1.msra.mxu0 %v2090
  %3044 = vmatprep.subr.mxu0 0.0
  %3045 = vmatpush1.msra.mxu0 %v2093
  %3046 = vmatprep.subr.mxu0 0.0
  %3047 = vmatpush1.msra.mxu0 %v2096
  %3048 = vmatprep.subr.mxu0 0.0
  %3049 = vmatpush1.msra.mxu0 %v2099
  %3050 = vmatprep.subr.mxu0 0.0
  %3051 = vmatpush1.msra.mxu0 %v2102
  %3052 = vmatprep.subr.mxu0 0.0
  %3053 = vmatpush1.msra.mxu0 %v2105
  %3054 = vmatprep.subr.mxu0 0.0
  %3055 = vmatpush1.msra.mxu0 %v2108
  %3056 = vmatprep.subr.mxu0 0.0
  %3057 = vmatpush1.msra.mxu0 %v2111
  %3058 = vmatprep.subr.mxu0 0.0
  %3059 = vmatpush1.msra.mxu0 %v2114
  %3060 = vmatprep.subr.mxu0 0.0
  %3061 = vmatpush1.msra.mxu0 0.0
  %3062 = vmatprep.subr.mxu0 0.0
  %3063 = vmatpush1.msra.mxu0 0.0
  %3064 = vmatprep.subr.mxu0 0.0
  %3065 = vmatpush1.msra.mxu0 0.0
  %3066 = vmatprep.subr.mxu0 0.0
  %3067 = vmatpush1.msra.mxu0 0.0
  %3068 = vmatprep.subr.mxu0 0.0
  %3069 = vmatpush1.msra.mxu0 0.0
  %3070 = vmatprep.subr.mxu0 0.0
  %3071 = vmatpush1.msra.mxu0 0.0
  %3072 = vmatprep.subr.mxu0 0.0
  %3073 = vmatpush1.msra.mxu0 0.0
  %3074 = vmatprep.subr.mxu0 0.0
  %3075 = vmatpush1.msra.mxu0 0.0
  %3076 = vmatprep.subr.mxu0 0.0
  %3077 = vmatpush1.msra.mxu0 0.0
  %3078 = vmatprep.subr.mxu0 0.0
  %3079 = vmatpush1.msra.mxu0 0.0
  %3080 = vmatprep.subr.mxu0 0.0
  %3081 = vmatpush1.msra.mxu0 0.0
  %3082 = vmatprep.subr.mxu0 0.0
  %3083 = vmatpush1.msra.mxu0 0.0
  %3084 = vmatprep.subr.mxu0 0.0
  %3085 = vmatpush1.msra.mxu0 0.0
  %3086 = vmatprep.subr.mxu0 0.0
  %3087 = vmatpush1.msra.mxu0 0.0
  %3088 = vmatprep.subr.mxu0 0.0
  %3089 = vmatpush1.msra.mxu0 0.0
  %3090 = vmatprep.subr.mxu0 0.0
  %3091 = vmatpush1.msra.mxu0 0.0
  %3092 = vmatprep.mubr.f32.mxu0 0.0
  %3093 = vmatmul.mubr.f32.gmra.mrb[0].mxu0 %v2955
  %v3094 = vpop.f32.mrb[0].mxu0
  %v3095 = vadd.f32 0.0, %v3094
  %v3096 = vpop.f32.mrb[0].mxu0
  %3097 = vdwg.mxu0
  %v3098 = vld [vmem:[#allocation2 + $0x78] sm:$0xff]
  %v3099 = vld [vmem:[#allocation2 + $0x80] sm:$0xff]
  %v3100 = vld [vmem:[#allocation2 + $0x88] sm:$0xff]
  %v3101 = vadd.f32 %v3098, %v3024
  %v3102 = vadd.f32 %v3099, %v3026
  %v3103 = vxor.u32 %v3101, 2147483648
  %v3104 = vxor.u32 %v3102, 2147483648
  %v3105 = vmul.f32 %v3103, 1.442695
  %v3106 = vpow.pop %v3105
  %v3107 = vmul.f32 %v3104, 1.442695
  %v3108 = vpow.pop %v3107
  %v3109 = vadd.f32 %v3106, 1.0
  %v3110 = vadd.f32 %v3108, 1.0
  %v3111 = vrcp.pop %v3109
  %v3112 = vmul.f32 1.0, %v3111
  %v3113 = vrcp.pop %v3110
  %v3114 = vmul.f32 1.0, %v3113
  %v3115 = vadd.f32 %v3095, %v2120
  %v3116 = vmul.f32 %v3112, %v3115
  %v3117 = vadd.f32 %v3100, %v3116
  %v3118 = vtanh.pop %v3117
  %v3119 = vsub.f32 1.0, %v3114
  %v3120 = vmul.f32 %v3119, %v3118
  %v3121 = vmul.f32 %v3114, %v2955
  %v3122 = vadd.f32 %v3120, %v3121
  %3123 = vst [vmem:[#allocation4 + $0x28] sm:$0xff] %v3122
  %3124 = vmatprep.subr.mxu0 %v2068
  %3125 = vmatpush1.msra.mxu0 %v2067
  %3126 = vmatprep.subr.mxu0 %v2071
  %3127 = vmatpush1.msra.mxu0 %v2070
  %3128 = vmatprep.subr.mxu0 %v2074
  %3129 = vmatpush1.msra.mxu0 %v2073
  %3130 = vmatprep.subr.mxu0 %v2077
  %3131 = vmatpush1.msra.mxu0 %v2076
  %3132 = vmatprep.subr.mxu0 %v2080
  %3133 = vmatpush1.msra.mxu0 %v2079
  %3134 = vmatprep.subr.mxu0 %v2083
  %3135 = vmatpush1.msra.mxu0 %v2082
  %3136 = vmatprep.subr.mxu0 %v2086
  %3137 = vmatpush1.msra.mxu0 %v2085
  %3138 = vmatprep.subr.mxu0 %v2089
  %3139 = vmatpush1.msra.mxu0 %v2088
  %3140 = vmatprep.subr.mxu0 %v2092
  %3141 = vmatpush1.msra.mxu0 %v2091
  %3142 = vmatprep.subr.mxu0 %v2095
  %3143 = vmatpush1.msra.mxu0 %v2094
  %3144 = vmatprep.subr.mxu0 %v2098
  %3145 = vmatpush1.msra.mxu0 %v2097
  %3146 = vmatprep.subr.mxu0 %v2101
  %3147 = vmatpush1.msra.mxu0 %v2100
  %3148 = vmatprep.subr.mxu0 %v2104
  %3149 = vmatpush1.msra.mxu0 %v2103
  %3150 = vmatprep.subr.mxu0 %v2107
  %3151 = vmatpush1.msra.mxu0 %v2106
  %3152 = vmatprep.subr.mxu0 %v2110
  %3153 = vmatpush1.msra.mxu0 %v2109
  %3154 = vmatprep.subr.mxu0 %v2113
  %3155 = vmatpush1.msra.mxu0 %v2112
  %3156 = vmatprep.subr.mxu0 0.0
  %3157 = vmatpush1.msra.mxu0 0.0
  %3158 = vmatprep.subr.mxu0 0.0
  %3159 = vmatpush1.msra.mxu0 0.0
  %3160 = vmatprep.subr.mxu0 0.0
  %3161 = vmatpush1.msra.mxu0 0.0
  %3162 = vmatprep.subr.mxu0 0.0
  %3163 = vmatpush1.msra.mxu0 0.0
  %3164 = vmatprep.subr.mxu0 0.0
  %3165 = vmatpush1.msra.mxu0 0.0
  %3166 = vmatprep.subr.mxu0 0.0
  %3167 = vmatpush1.msra.mxu0 0.0
  %3168 = vmatprep.subr.mxu0 0.0
  %3169 = vmatpush1.msra.mxu0 0.0
  %3170 = vmatprep.subr.mxu0 0.0
  %3171 = vmatpush1.msra.mxu0 0.0
  %3172 = vmatprep.subr.mxu0 0.0
  %3173 = vmatpush1.msra.mxu0 0.0
  %3174 = vmatprep.subr.mxu0 0.0
  %3175 = vmatpush1.msra.mxu0 0.0
  %3176 = vmatprep.subr.mxu0 0.0
  %3177 = vmatpush1.msra.mxu0 0.0
  %3178 = vmatprep.subr.mxu0 0.0
  %3179 = vmatpush1.msra.mxu0 0.0
  %3180 = vmatprep.subr.mxu0 0.0
  %3181 = vmatpush1.msra.mxu0 0.0
  %3182 = vmatprep.subr.mxu0 0.0
  %3183 = vmatpush1.msra.mxu0 0.0
  %3184 = vmatprep.subr.mxu0 0.0
  %3185 = vmatpush1.msra.mxu0 0.0
  %3186 = vmatprep.subr.mxu0 0.0
  %3187 = vmatpush1.msra.mxu0 0.0
  %3188 = vmatprep.mubr.f32.mxu0 0.0
  %3189 = vmatmul.mubr.f32.gmra.mrb[0].mxu0 %v3122
  %v3190 = vpop.f32.mrb[0].mxu0
  %v3191 = vadd.f32 0.0, %v3190
  %v3192 = vpop.f32.mrb[0].mxu0
  %v3193 = vadd.f32 0.0, %v3192
  %3194 = vdwg.mxu0
  %3195 = vmatprep.subr.mxu0 0.0
  %3196 = vmatpush1.msra.mxu0 %v2069
  %3197 = vmatprep.subr.mxu0 0.0
  %3198 = vmatpush1.msra.mxu0 %v2072
  %3199 = vmatprep.subr.mxu0 0.0
  %3200 = vmatpush1.msra.mxu0 %v2075
  %3201 = vmatprep.subr.mxu0 0.0
  %3202 = vmatpush1.msra.mxu0 %v2078
  %3203 = vmatprep.subr.mxu0 0.0
  %3204 = vmatpush1.msra.mxu0 %v2081
  %3205 = vmatprep.subr.mxu0 0.0
  %3206 = vmatpush1.msra.mxu0 %v2084
  %3207 = vmatprep.subr.mxu0 0.0
  %3208 = vmatpush1.msra.mxu0 %v2087
  %3209 = vmatprep.subr.mxu0 0.0
  %3210 = vmatpush1.msra.mxu0 %v2090
  %3211 = vmatprep.subr.mxu0 0.0
  %3212 = vmatpush1.msra.mxu0 %v2093
  %3213 = vmatprep.subr.mxu0 0.0
  %3214 = vmatpush1.msra.mxu0 %v2096
  %3215 = vmatprep.subr.mxu0 0.0
  %3216 = vmatpush1.msra.mxu0 %v2099
  %3217 = vmatprep.subr.mxu0 0.0
  %3218 = vmatpush1.msra.mxu0 %v2102
  %3219 = vmatprep.subr.mxu0 0.0
  %3220 = vmatpush1.msra.mxu0 %v2105
  %3221 = vmatprep.subr.mxu0 0.0
  %3222 = vmatpush1.msra.mxu0 %v2108
  %3223 = vmatprep.subr.mxu0 0.0
  %3224 = vmatpush1.msra.mxu0 %v2111
  %3225 = vmatprep.subr.mxu0 0.0
  %3226 = vmatpush1.msra.mxu0 %v2114
  %3227 = vmatprep.subr.mxu0 0.0
  %3228 = vmatpush1.msra.mxu0 0.0
  %3229 = vmatprep.subr.mxu0 0.0
  %3230 = vmatpush1.msra.mxu0 0.0
  %3231 = vmatprep.subr.mxu0 0.0
  %3232 = vmatpush1.msra.mxu0 0.0
  %3233 = vmatprep.subr.mxu0 0.0
  %3234 = vmatpush1.msra.mxu0 0.0
  %3235 = vmatprep.subr.mxu0 0.0
  %3236 = vmatpush1.msra.mxu0 0.0
  %3237 = vmatprep.subr.mxu0 0.0
  %3238 = vmatpush1.msra.mxu0 0.0
  %3239 = vmatprep.subr.mxu0 0.0
  %3240 = vmatpush1.msra.mxu0 0.0
  %3241 = vmatprep.subr.mxu0 0.0
  %3242 = vmatpush1.msra.mxu0 0.0
  %3243 = vmatprep.subr.mxu0 0.0
  %3244 = vmatpush1.msra.mxu0 0.0
  %3245 = vmatprep.subr.mxu0 0.0
  %3246 = vmatpush1.msra.mxu0 0.0
  %3247 = vmatprep.subr.mxu0 0.0
  %3248 = vmatpush1.msra.mxu0 0.0
  %3249 = vmatprep.subr.mxu0 0.0
  %3250 = vmatpush1.msra.mxu0 0.0
  %3251 = vmatprep.subr.mxu0 0.0
  %3252 = vmatpush1.msra.mxu0 0.0
  %3253 = vmatprep.subr.mxu0 0.0
  %3254 = vmatpush1.msra.mxu0 0.0
  %3255 = vmatprep.subr.mxu0 0.0
  %3256 = vmatpush1.msra.mxu0 0.0
  %3257 = vmatprep.subr.mxu0 0.0
  %3258 = vmatpush1.msra.mxu0 0.0
  %3259 = vmatprep.mubr.f32.mxu0 0.0
  %3260 = vmatmul.mubr.f32.gmra.mrb[0].mxu0 %v3122
  %v3261 = vpop.f32.mrb[0].mxu0
  %v3262 = vadd.f32 0.0, %v3261
  %v3263 = vpop.f32.mrb[0].mxu0
  %3264 = vdwg.mxu0
  %v3265 = vld [vmem:[#allocation2 + $0x90] sm:$0xff]
  %v3266 = vld [vmem:[#allocation2 + $0x98] sm:$0xff]
  %v3267 = vld [vmem:[#allocation2 + $0xa0] sm:$0xff]
  %v3268 = vadd.f32 %v3265, %v3191
  %v3269 = vadd.f32 %v3266, %v3193
  %v3270 = vxor.u32 %v3268, 2147483648
  %v3271 = vxor.u32 %v3269, 2147483648
  %v3272 = vmul.f32 %v3270, 1.442695
  %v3273 = vpow.pop %v3272
  %v3274 = vmul.f32 %v3271, 1.442695
  %v3275 = vpow.pop %v3274
  %v3276 = vadd.f32 %v3273, 1.0
  %v3277 = vadd.f32 %v3275, 1.0
  %v3278 = vrcp.pop %v3276
  %v3279 = vmul.f32 1.0, %v3278
  %v3280 = vrcp.pop %v3277
  %v3281 = vmul.f32 1.0, %v3280
  %v3282 = vadd.f32 %v3262, %v2120
  %v3283 = vmul.f32 %v3279, %v3282
  %v3284 = vadd.f32 %v3267, %v3283
  %v3285 = vtanh.pop %v3284
  %v3286 = vsub.f32 1.0, %v3281
  %v3287 = vmul.f32 %v3286, %v3285
  %v3288 = vmul.f32 %v3281, %v3122
  %v3289 = vadd.f32 %v3287, %v3288
  %3290 = vst [vmem:[#allocation4 + $0x30] sm:$0xff] %v3289
  %3291 = vmatprep.subr.mxu0 %v2068
  %3292 = vmatpush1.msra.mxu0 %v2067
  %3293 = vmatprep.subr.mxu0 %v2071
  %3294 = vmatpush1.msra.mxu0 %v2070
  %3295 = vmatprep.subr.mxu0 %v2074
  %3296 = vmatpush1.msra.mxu0 %v2073
  %3297 = vmatprep.subr.mxu0 %v2077
  %3298 = vmatpush1.msra.mxu0 %v2076
  %3299 = vmatprep.subr.mxu0 %v2080
  %3300 = vmatpush1.msra.mxu0 %v2079
  %3301 = vmatprep.subr.mxu0 %v2083
  %3302 = vmatpush1.msra.mxu0 %v2082
  %3303 = vmatprep.subr.mxu0 %v2086
  %3304 = vmatpush1.msra.mxu0 %v2085
  %3305 = vmatprep.subr.mxu0 %v2089
  %3306 = vmatpush1.msra.mxu0 %v2088
  %3307 = vmatprep.subr.mxu0 %v2092
  %3308 = vmatpush1.msra.mxu0 %v2091
  %3309 = vmatprep.subr.mxu0 %v2095
  %3310 = vmatpush1.msra.mxu0 %v2094
  %3311 = vmatprep.subr.mxu0 %v2098
  %3312 = vmatpush1.msra.mxu0 %v2097
  %3313 = vmatprep.subr.mxu0 %v2101
  %3314 = vmatpush1.msra.mxu0 %v2100
  %3315 = vmatprep.subr.mxu0 %v2104
  %3316 = vmatpush1.msra.mxu0 %v2103
  %3317 = vmatprep.subr.mxu0 %v2107
  %3318 = vmatpush1.msra.mxu0 %v2106
  %3319 = vmatprep.subr.mxu0 %v2110
  %3320 = vmatpush1.msra.mxu0 %v2109
  %3321 = vmatprep.subr.mxu0 %v2113
  %3322 = vmatpush1.msra.mxu0 %v2112
  %3323 = vmatprep.subr.mxu0 0.0
  %3324 = vmatpush1.msra.mxu0 0.0
  %3325 = vmatprep.subr.mxu0 0.0
  %3326 = vmatpush1.msra.mxu0 0.0
  %3327 = vmatprep.subr.mxu0 0.0
  %3328 = vmatpush1.msra.mxu0 0.0
  %3329 = vmatprep.subr.mxu0 0.0
  %3330 = vmatpush1.msra.mxu0 0.0
  %3331 = vmatprep.subr.mxu0 0.0
  %3332 = vmatpush1.msra.mxu0 0.0
  %3333 = vmatprep.subr.mxu0 0.0
  %3334 = vmatpush1.msra.mxu0 0.0
  %3335 = vmatprep.subr.mxu0 0.0
  %3336 = vmatpush1.msra.mxu0 0.0
  %3337 = vmatprep.subr.mxu0 0.0
  %3338 = vmatpush1.msra.mxu0 0.0
  %3339 = vmatprep.subr.mxu0 0.0
  %3340 = vmatpush1.msra.mxu0 0.0
  %3341 = vmatprep.subr.mxu0 0.0
  %3342 = vmatpush1.msra.mxu0 0.0
  %3343 = vmatprep.subr.mxu0 0.0
  %3344 = vmatpush1.msra.mxu0 0.0
  %3345 = vmatprep.subr.mxu0 0.0
  %3346 = vmatpush1.msra.mxu0 0.0
  %3347 = vmatprep.subr.mxu0 0.0
  %3348 = vmatpush1.msra.mxu0 0.0
  %3349 = vmatprep.subr.mxu0 0.0
  %3350 = vmatpush1.msra.mxu0 0.0
  %3351 = vmatprep.subr.mxu0 0.0
  %3352 = vmatpush1.msra.mxu0 0.0
  %3353 = vmatprep.subr.mxu0 0.0
  %3354 = vmatpush1.msra.mxu0 0.0
  %3355 = vmatprep.mubr.f32.mxu0 0.0
  %3356 = vmatmul.mubr.f32.gmra.mrb[0].mxu0 %v3289
  %v3357 = vpop.f32.mrb[0].mxu0
  %v3358 = vadd.f32 0.0, %v3357
  %v3359 = vpop.f32.mrb[0].mxu0
  %v3360 = vadd.f32 0.0, %v3359
  %3361 = vdwg.mxu0
  %3362 = vmatprep.subr.mxu0 0.0
  %3363 = vmatpush1.msra.mxu0 %v2069
  %3364 = vmatprep.subr.mxu0 0.0
  %3365 = vmatpush1.msra.mxu0 %v2072
  %3366 = vmatprep.subr.mxu0 0.0
  %3367 = vmatpush1.msra.mxu0 %v2075
  %3368 = vmatprep.subr.mxu0 0.0
  %3369 = vmatpush1.msra.mxu0 %v2078
  %3370 = vmatprep.subr.mxu0 0.0
  %3371 = vmatpush1.msra.mxu0 %v2081
  %3372 = vmatprep.subr.mxu0 0.0
  %3373 = vmatpush1.msra.mxu0 %v2084
  %3374 = vmatprep.subr.mxu0 0.0
  %3375 = vmatpush1.msra.mxu0 %v2087
  %3376 = vmatprep.subr.mxu0 0.0
  %3377 = vmatpush1.msra.mxu0 %v2090
  %3378 = vmatprep.subr.mxu0 0.0
  %3379 = vmatpush1.msra.mxu0 %v2093
  %3380 = vmatprep.subr.mxu0 0.0
  %3381 = vmatpush1.msra.mxu0 %v2096
  %3382 = vmatprep.subr.mxu0 0.0
  %3383 = vmatpush1.msra.mxu0 %v2099
  %3384 = vmatprep.subr.mxu0 0.0
  %3385 = vmatpush1.msra.mxu0 %v2102
  %3386 = vmatprep.subr.mxu0 0.0
  %3387 = vmatpush1.msra.mxu0 %v2105
  %3388 = vmatprep.subr.mxu0 0.0
  %3389 = vmatpush1.msra.mxu0 %v2108
  %3390 = vmatprep.subr.mxu0 0.0
  %3391 = vmatpush1.msra.mxu0 %v2111
  %3392 = vmatprep.subr.mxu0 0.0
  %3393 = vmatpush1.msra.mxu0 %v2114
  %3394 = vmatprep.subr.mxu0 0.0
  %3395 = vmatpush1.msra.mxu0 0.0
  %3396 = vmatprep.subr.mxu0 0.0
  %3397 = vmatpush1.msra.mxu0 0.0
  %3398 = vmatprep.subr.mxu0 0.0
  %3399 = vmatpush1.msra.mxu0 0.0
  %3400 = vmatprep.subr.mxu0 0.0
  %3401 = vmatpush1.msra.mxu0 0.0
  %3402 = vmatprep.subr.mxu0 0.0
  %3403 = vmatpush1.msra.mxu0 0.0
  %3404 = vmatprep.subr.mxu0 0.0
  %3405 = vmatpush1.msra.mxu0 0.0
  %3406 = vmatprep.subr.mxu0 0.0
  %3407 = vmatpush1.msra.mxu0 0.0
  %3408 = vmatprep.subr.mxu0 0.0
  %3409 = vmatpush1.msra.mxu0 0.0
  %3410 = vmatprep.subr.mxu0 0.0
  %3411 = vmatpush1.msra.mxu0 0.0
  %3412 = vmatprep.subr.mxu0 0.0
  %3413 = vmatpush1.msra.mxu0 0.0
  %3414 = vmatprep.subr.mxu0 0.0
  %3415 = vmatpush1.msra.mxu0 0.0
  %3416 = vmatprep.subr.mxu0 0.0
  %3417 = vmatpush1.msra.mxu0 0.0
  %3418 = vmatprep.subr.mxu0 0.0
  %3419 = vmatpush1.msra.mxu0 0.0
  %3420 = vmatprep.subr.mxu0 0.0
  %3421 = vmatpush1.msra.mxu0 0.0
  %3422 = vmatprep.subr.mxu0 0.0
  %3423 = vmatpush1.msra.mxu0 0.0
  %3424 = vmatprep.subr.mxu0 0.0
  %3425 = vmatpush1.msra.mxu0 0.0
  %3426 = vmatprep.mubr.f32.mxu0 0.0
  %3427 = vmatmul.mubr.f32.gmra.mrb[0].mxu0 %v3289
  %v3428 = vpop.f32.mrb[0].mxu0
  %v3429 = vadd.f32 0.0, %v3428
  %v3430 = vpop.f32.mrb[0].mxu0
  %3431 = vdwg.mxu0
  %v3432 = vld [vmem:[#allocation2 + $0xa8] sm:$0xff]
  %v3433 = vld [vmem:[#allocation2 + $0xb0] sm:$0xff]
  %v3434 = vld [vmem:[#allocation2 + $0xb8] sm:$0xff]
  %v3435 = vadd.f32 %v3432, %v3358
  %v3436 = vadd.f32 %v3433, %v3360
  %v3437 = vxor.u32 %v3435, 2147483648
  %v3438 = vxor.u32 %v3436, 2147483648
  %v3439 = vmul.f32 %v3437, 1.442695
  %v3440 = vpow.pop %v3439
  %v3441 = vmul.f32 %v3438, 1.442695
  %v3442 = vpow.pop %v3441
  %v3443 = vadd.f32 %v3440, 1.0
  %v3444 = vadd.f32 %v3442, 1.0
  %v3445 = vrcp.pop %v3443
  %v3446 = vmul.f32 1.0, %v3445
  %v3447 = vrcp.pop %v3444
  %v3448 = vmul.f32 1.0, %v3447
  %v3449 = vadd.f32 %v3429, %v2120
  %v3450 = vmul.f32 %v3446, %v3449
  %v3451 = vadd.f32 %v3434, %v3450
  %v3452 = vtanh.pop %v3451
  %v3453 = vsub.f32 1.0, %v3448
  %v3454 = vmul.f32 %v3453, %v3452
  %v3455 = vmul.f32 %v3448, %v3289
  %v3456 = vadd.f32 %v3454, %v3455
  %3457 = vst [vmem:[#allocation4 + $0x38] sm:$0xff] %v3456
  %v3458 = vld [vmem:[#allocation4] sm:$0xff]
  %v3459 = vld [vmem:[#allocation4 + $0x8] sm:$0xff]
  %v3460 = vld [vmem:[#allocation4 + $0x10] sm:$0xff]
  %v3461 = vld [vmem:[#allocation4 + $0x18] sm:$0xff]
  %v3462 = vld [vmem:[#allocation4 + $0x20] sm:$0xff]
  %v3463 = vld [vmem:[#allocation4 + $0x28] sm:$0xff]
  %v3464 = vld [vmem:[#allocation4 + $0x30] sm:$0xff]
  %v3465 = vld [vmem:[#allocation4 + $0x38] sm:$0xff]
  %v3466 = vld [vmem:[%s9] sm:$0xff]
  %v3467 = vld [vmem:[%s9 + $0x8] sm:$0xff]
  %v3468 = vld [vmem:[%s9 + $0x10] sm:$0xff]
  %v3469 = vld [vmem:[%s9 + $0x18] sm:$0xff]
  %v3470 = vld [vmem:[%s9 + $0x20] sm:$0xff]
  %v3471 = vld [vmem:[%s9 + $0x28] sm:$0xff]
  %v3472 = vld [vmem:[%s9 + $0x30] sm:$0xff]
  %v3473 = vld [vmem:[%s9 + $0x38] sm:$0xff]
  %v3474 = vld [vmem:[%s9 + $0x40] sm:$0xff]
  %v3475 = vld [vmem:[%s9 + $0x48] sm:$0xff]
  %v3476 = vld [vmem:[%s9 + $0x50] sm:$0xff]
  %v3477 = vld [vmem:[%s9 + $0x58] sm:$0xff]
  %v3478 = vld [vmem:[%s9 + $0x60] sm:$0xff]
  %v3479 = vld [vmem:[%s9 + $0x68] sm:$0xff]
  %v3480 = vld [vmem:[%s9 + $0x70] sm:$0xff]
  %v3481 = vld [vmem:[%s9 + $0x78] sm:$0xff]
  %v3482 = vld [vmem:[%s10] sm:$0x1]
  %v3484 = vlaneseq
  %v3485 = vshrl.u32 %v3484, 7
  %v3486 = vsub.s32 0, %v3485
  %v3487 = vrot.slane %v3482, %v3486
  %3489 = vmatprep.subr.mxu0 0.0
  %3490 = vmatpush1.msra.mxu0 %v3466
  %3491 = vmatprep.subr.mxu0 0.0
  %3492 = vmatpush1.msra.mxu0 %v3467
  %3493 = vmatprep.subr.mxu0 0.0
  %3494 = vmatpush1.msra.mxu0 %v3468
  %3495 = vmatprep.subr.mxu0 0.0
  %3496 = vmatpush1.msra.mxu0 %v3469
  %3497 = vmatprep.subr.mxu0 0.0
  %3498 = vmatpush1.msra.mxu0 %v3470
  %3499 = vmatprep.subr.mxu0 0.0
  %3500 = vmatpush1.msra.mxu0 %v3471
  %3501 = vmatprep.subr.mxu0 0.0
  %3502 = vmatpush1.msra.mxu0 %v3472
  %3503 = vmatprep.subr.mxu0 0.0
  %3504 = vmatpush1.msra.mxu0 %v3473
  %3505 = vmatprep.subr.mxu0 0.0
  %3506 = vmatpush1.msra.mxu0 %v3474
  %3507 = vmatprep.subr.mxu0 0.0
  %3508 = vmatpush1.msra.mxu0 %v3475
  %3509 = vmatprep.subr.mxu0 0.0
  %3510 = vmatpush1.msra.mxu0 %v3476
  %3511 = vmatprep.subr.mxu0 0.0
  %3512 = vmatpush1.msra.mxu0 %v3477
  %3513 = vmatprep.subr.mxu0 0.0
  %3514 = vmatpush1.msra.mxu0 %v3478
  %3515 = vmatprep.subr.mxu0 0.0
  %3516 = vmatpush1.msra.mxu0 %v3479
  %3517 = vmatprep.subr.mxu0 0.0
  %3518 = vmatpush1.msra.mxu0 %v3480
  %3519 = vmatprep.subr.mxu0 0.0
  %3520 = vmatpush1.msra.mxu0 %v3481
  %3521 = vmatprep.subr.mxu0 0.0
  %3522 = vmatpush1.msra.mxu0 0.0
  %3523 = vmatprep.subr.mxu0 0.0
  %3524 = vmatpush1.msra.mxu0 0.0
  %3525 = vmatprep.subr.mxu0 0.0
  %3526 = vmatpush1.msra.mxu0 0.0
  %3527 = vmatprep.subr.mxu0 0.0
  %3528 = vmatpush1.msra.mxu0 0.0
  %3529 = vmatprep.subr.mxu0 0.0
  %3530 = vmatpush1.msra.mxu0 0.0
  %3531 = vmatprep.subr.mxu0 0.0
  %3532 = vmatpush1.msra.mxu0 0.0
  %3533 = vmatprep.subr.mxu0 0.0
  %3534 = vmatpush1.msra.mxu0 0.0
  %3535 = vmatprep.subr.mxu0 0.0
  %3536 = vmatpush1.msra.mxu0 0.0
  %3537 = vmatprep.subr.mxu0 0.0
  %3538 = vmatpush1.msra.mxu0 0.0
  %3539 = vmatprep.subr.mxu0 0.0
  %3540 = vmatpush1.msra.mxu0 0.0
  %3541 = vmatprep.subr.mxu0 0.0
  %3542 = vmatpush1.msra.mxu0 0.0
  %3543 = vmatprep.subr.mxu0 0.0
  %3544 = vmatpush1.msra.mxu0 0.0
  %3545 = vmatprep.subr.mxu0 0.0
  %3546 = vmatpush1.msra.mxu0 0.0
  %3547 = vmatprep.subr.mxu0 0.0
  %3548 = vmatpush1.msra.mxu0 0.0
  %3549 = vmatprep.subr.mxu0 0.0
  %3550 = vmatpush1.msra.mxu0 0.0
  %3551 = vmatprep.subr.mxu0 0.0
  %3552 = vmatpush1.msra.mxu0 0.0
  %3553 = vmatprep.mubr.f32.mxu0 0.0
  %3554 = vmatmul.mubr.f32.gmra.mrb[0].mxu0 %v3458
  %v3555 = vpop.f32.mrb[0].mxu0
  %v3556 = vadd.f32 %v3487, %v3555
  %v3557 = vpop.f32.mrb[0].mxu0
  %3558 = vmatprep.mubr.f32.mxu0 0.0
  %3559 = vmatmul.mubr.f32.gmra.mrb[0].mxu0 %v3459
  %v3560 = vpop.f32.mrb[0].mxu0
  %v3561 = vadd.f32 %v3487, %v3560
  %v3562 = vpop.f32.mrb[0].mxu0
  %3563 = vmatprep.mubr.f32.mxu0 0.0
  %3564 = vmatmul.mubr.f32.gmra.mrb[0].mxu0 %v3460
  %v3565 = vpop.f32.mrb[0].mxu0
  %v3566 = vadd.f32 %v3487, %v3565
  %v3567 = vpop.f32.mrb[0].mxu0
  %3568 = vmatprep.mubr.f32.mxu0 0.0
  %3569 = vmatmul.mubr.f32.gmra.mrb[0].mxu0 %v3461
  %v3570 = vpop.f32.mrb[0].mxu0
  %v3571 = vadd.f32 %v3487, %v3570
  %v3572 = vpop.f32.mrb[0].mxu0
  %3573 = vmatprep.mubr.f32.mxu0 0.0
  %3574 = vmatmul.mubr.f32.gmra.mrb[0].mxu0 %v3462
  %v3575 = vpop.f32.mrb[0].mxu0
  %v3576 = vadd.f32 %v3487, %v3575
  %v3577 = vpop.f32.mrb[0].mxu0
  %3578 = vmatprep.mubr.f32.mxu0 0.0
  %3579 = vmatmul.mubr.f32.gmra.mrb[0].mxu0 %v3463
  %v3580 = vpop.f32.mrb[0].mxu0
  %v3581 = vadd.f32 %v3487, %v3580
  %v3582 = vpop.f32.mrb[0].mxu0
  %3583 = vmatprep.mubr.f32.mxu0 0.0
  %3584 = vmatmul.mubr.f32.gmra.mrb[0].mxu0 %v3464
  %v3585 = vpop.f32.mrb[0].mxu0
  %v3586 = vadd.f32 %v3487, %v3585
  %v3587 = vpop.f32.mrb[0].mxu0
  %3588 = vmatprep.mubr.f32.mxu0 0.0
  %3589 = vmatmul.mubr.f32.gmra.mrb[0].mxu0 %v3465
  %v3590 = vpop.f32.mrb[0].mxu0
  %v3591 = vadd.f32 %v3487, %v3590
  %v3592 = vpop.f32.mrb[0].mxu0
  %3593 = vdwg.mxu0
  %v3594 = vtanh.pop %v3556
  %v3595 = vtanh.pop %v3561
  %v3596 = vtanh.pop %v3566
  %v3597 = vtanh.pop %v3571
  %v3598 = vtanh.pop %v3576
  %v3599 = vtanh.pop %v3581
  %v3600 = vtanh.pop %v3586
  %v3601 = vtanh.pop %v3591
  %v3602 = vld [vmem:[%s11] sm:$0xff]
  %v3603 = vld [vmem:[%s11 + $0x8] sm:$0xff]
  %v3604 = vld [vmem:[%s11 + $0x10] sm:$0xff]
  %v3605 = vld [vmem:[%s11 + $0x18] sm:$0xff]
  %v3606 = vld [vmem:[%s11 + $0x20] sm:$0xff]
  %v3607 = vld [vmem:[%s11 + $0x28] sm:$0xff]
  %v3608 = vld [vmem:[%s11 + $0x30] sm:$0xff]
  %v3609 = vld [vmem:[%s11 + $0x38] sm:$0xff]
  %v3610 = vmul.f32 %v3594, %v3602
  %v3611 = vmul.f32 %v3595, %v3603
  %v3612 = vmul.f32 %v3596, %v3604
  %v3613 = vmul.f32 %v3597, %v3605
  %v3614 = vmul.f32 %v3598, %v3606
  %v3615 = vmul.f32 %v3599, %v3607
  %v3616 = vmul.f32 %v3600, %v3608
  %v3617 = vmul.f32 %v3601, %v3609
  %3618 = vadd.xlane.f32.xlu0 %v3610
  %v3619 = vpop.xlane.xlu0 %3618
  %3620 = vadd.xlane.f32.xlu0 %v3611
  %v3621 = vpop.xlane.xlu0 %3620
  %3622 = vadd.xlane.f32.xlu0 %v3612
  %v3623 = vpop.xlane.xlu0 %3622
  %3624 = vadd.xlane.f32.xlu0 %v3613
  %v3625 = vpop.xlane.xlu0 %3624
  %3626 = vadd.xlane.f32.xlu0 %v3614
  %v3627 = vpop.xlane.xlu0 %3626
  %3628 = vadd.xlane.f32.xlu0 %v3615
  %v3629 = vpop.xlane.xlu0 %3628
  %3630 = vadd.xlane.f32.xlu0 %v3616
  %v3631 = vpop.xlane.xlu0 %3630
  %3632 = vadd.xlane.f32.xlu0 %v3617
  %v3633 = vpop.xlane.xlu0 %3632
  %v3642 = vlaneseq
  %v3643 = vand.u32 %v3642, 127
  %v3644 = vlaneseq
  %v3645 = vshrl.u32 %v3644, 7
  %v3646 = vsub.s32 %v3643, %v3645
  %v3647 = vrot.slane %v3619, %v3646
  %v3648 = vadd.s32 %v3643, 4294967288
  %v3649 = vlaneseq
  %v3650 = vshrl.u32 %v3649, 7
  %v3651 = vsub.s32 %v3648, %v3650
  %v3652 = vrot.slane %v3621, %v3651
  %vm3653 = vcmask 130112
  %v3654 = vsel %vm3653, %v3652, %v3647
  %v3655 = vadd.s32 %v3643, 4294967280
  %v3656 = vlaneseq
  %v3657 = vshrl.u32 %v3656, 7
  %v3658 = vsub.s32 %v3655, %v3657
  %v3659 = vrot.slane %v3623, %v3658
  %vm3660 = vcmask 195712
  %v3661 = vsel %vm3660, %v3659, %v3654
  %v3662 = vadd.s32 %v3643, 4294967272
  %v3663 = vlaneseq
  %v3664 = vshrl.u32 %v3663, 7
  %v3665 = vsub.s32 %v3662, %v3664
  %v3666 = vrot.slane %v3625, %v3665
  %vm3667 = vcmask 261312
  %v3668 = vsel %vm3667, %v3666, %v3661
  %v3669 = vadd.s32 %v3643, 4294967264
  %v3670 = vlaneseq
  %v3671 = vshrl.u32 %v3670, 7
  %v3672 = vsub.s32 %v3669, %v3671
  %v3673 = vrot.slane %v3627, %v3672
  %vm3674 = vcmask 326912
  %v3675 = vsel %vm3674, %v3673, %v3668
  %v3676 = vadd.s32 %v3643, 4294967256
  %v3677 = vlaneseq
  %v3678 = vshrl.u32 %v3677, 7
  %v3679 = vsub.s32 %v3676, %v3678
  %v3680 = vrot.slane %v3629, %v3679
  %vm3681 = vcmask 392512
  %v3682 = vsel %vm3681, %v3680, %v3675
  %v3683 = vadd.s32 %v3643, 4294967248
  %v3684 = vlaneseq
  %v3685 = vshrl.u32 %v3684, 7
  %v3686 = vsub.s32 %v3683, %v3685
  %v3687 = vrot.slane %v3631, %v3686
  %vm3688 = vcmask 458112
  %v3689 = vsel %vm3688, %v3687, %v3682
  %v3690 = vadd.s32 %v3643, 4294967240
  %v3691 = vlaneseq
  %v3692 = vshrl.u32 %v3691, 7
  %v3693 = vsub.s32 %v3690, %v3692
  %v3694 = vrot.slane %v3633, %v3693
  %vm3695 = vcmask 523712
  %v3696 = vsel %vm3695, %v3694, %v3689
  %vm3698 = vcmask 516096
  %3699 = vst.msk [vmem:[%s13] sm:$0x1] %vm3698, %v3696
  %v3700 = vld [vmem:[%s12] sm:$0xff]
  %v3701 = vld [vmem:[%s12 + $0x8] sm:$0xff]
  %v3702 = vld [vmem:[%s12 + $0x10] sm:$0xff]
  %v3703 = vld [vmem:[%s12 + $0x18] sm:$0xff]
  %v3704 = vld [vmem:[%s12 + $0x20] sm:$0xff]
  %v3705 = vld [vmem:[%s12 + $0x28] sm:$0xff]
  %v3706 = vld [vmem:[%s12 + $0x30] sm:$0xff]
  %v3707 = vld [vmem:[%s12 + $0x38] sm:$0xff]
  %v3708 = vmul.f32 %v3594, %v3700
  %v3709 = vmul.f32 %v3595, %v3701
  %v3710 = vmul.f32 %v3596, %v3702
  %v3711 = vmul.f32 %v3597, %v3703
  %v3712 = vmul.f32 %v3598, %v3704
  %v3713 = vmul.f32 %v3599, %v3705
  %v3714 = vmul.f32 %v3600, %v3706
  %v3715 = vmul.f32 %v3601, %v3707
  %3716 = vadd.xlane.f32.xlu0 %v3708
  %v3717 = vpop.xlane.xlu0 %3716
  %3718 = vadd.xlane.f32.xlu0 %v3709
  %v3719 = vpop.xlane.xlu0 %3718
  %3720 = vadd.xlane.f32.xlu0 %v3710
  %v3721 = vpop.xlane.xlu0 %3720
  %3722 = vadd.xlane.f32.xlu0 %v3711
  %v3723 = vpop.xlane.xlu0 %3722
  %3724 = vadd.xlane.f32.xlu0 %v3712
  %v3725 = vpop.xlane.xlu0 %3724
  %3726 = vadd.xlane.f32.xlu0 %v3713
  %v3727 = vpop.xlane.xlu0 %3726
  %3728 = vadd.xlane.f32.xlu0 %v3714
  %v3729 = vpop.xlane.xlu0 %3728
  %3730 = vadd.xlane.f32.xlu0 %v3715
  %v3731 = vpop.xlane.xlu0 %3730
  %v3740 = vlaneseq
  %v3741 = vshrl.u32 %v3740, 7
  %v3742 = vsub.s32 %v3643, %v3741
  %v3743 = vrot.slane %v3717, %v3742
  %v3744 = vlaneseq
  %v3745 = vshrl.u32 %v3744, 7
  %v3746 = vsub.s32 %v3648, %v3745
  %v3747 = vrot.slane %v3719, %v3746
  %v3748 = vsel %vm3653, %v3747, %v3743
  %v3749 = vlaneseq
  %v3750 = vshrl.u32 %v3749, 7
  %v3751 = vsub.s32 %v3655, %v3750
  %v3752 = vrot.slane %v3721, %v3751
  %v3753 = vsel %vm3660, %v3752, %v3748
  %v3754 = vlaneseq
  %v3755 = vshrl.u32 %v3754, 7
  %v3756 = vsub.s32 %v3662, %v3755
  %v3757 = vrot.slane %v3723, %v3756
  %v3758 = vsel %vm3667, %v3757, %v3753
  %v3759 = vlaneseq
  %v3760 = vshrl.u32 %v3759, 7
  %v3761 = vsub.s32 %v3669, %v3760
  %v3762 = vrot.slane %v3725, %v3761
  %v3763 = vsel %vm3674, %v3762, %v3758
  %v3764 = vlaneseq
  %v3765 = vshrl.u32 %v3764, 7
  %v3766 = vsub.s32 %v3676, %v3765
  %v3767 = vrot.slane %v3727, %v3766
  %v3768 = vsel %vm3681, %v3767, %v3763
  %v3769 = vlaneseq
  %v3770 = vshrl.u32 %v3769, 7
  %v3771 = vsub.s32 %v3683, %v3770
  %v3772 = vrot.slane %v3729, %v3771
  %v3773 = vsel %vm3688, %v3772, %v3768
  %v3774 = vlaneseq
  %v3775 = vshrl.u32 %v3774, 7
  %v3776 = vsub.s32 %v3690, %v3775
  %v3777 = vrot.slane %v3731, %v3776
  %v3778 = vsel %vm3695, %v3777, %v3773
  %3780 = vst.msk [vmem:[%s14] sm:$0x1] %vm3698, %v3778
  // Predicated region
  $region54: #{gru4rec_forward.1} parent=0 // pred_check
    _
  $region55: #{gru4rec_forward.1} parent=0 // pred_check_branch
    %3782 = sbr.rel (0) target = $region57
  $region56: #{gru4rec_forward.1} parent=0 // pred_region
    _
  $region57: #{gru4rec_forward.1} parent=0 // pred_fallthru
    _
  // Predicated region
  $region58: #{gru4rec_forward.1} parent=0 // pred_check
    _
  $region59: #{gru4rec_forward.1} parent=0 // pred_check_branch
    %3784 = sbr.rel (0) target = $region61
  $region60: #{gru4rec_forward.1} parent=0 // pred_region
    _
  $region61: #{gru4rec_forward.1} parent=0 // pred_fallthru
    _
  // Predicated region
  $region62: #{gru4rec_forward.1} parent=0 // pred_check
    _
  $region63: #{gru4rec_forward.1} parent=0 // pred_check_branch
    %3786 = sbr.rel (0) target = $region65
  $region64: #{gru4rec_forward.1} parent=0 // pred_region
    _
  $region65: #{gru4rec_forward.1} parent=0 // pred_fallthru
    _
  // Predicated region
  $region66: #{gru4rec_forward.1} parent=0 // pred_check
    _
  $region67: #{gru4rec_forward.1} parent=0 // pred_check_branch
    %3788 = sbr.rel (0) target = $region69
  $region68: #{gru4rec_forward.1} parent=0 // pred_region
    _
  $region69: #{gru4rec_forward.1} parent=0 // pred_fallthru
    _

</llo_original>
